<compile_context>
chip_gen: v7x
topology: tpu7x:2x2x1
jax: 0.10.0
libtpu: 0.0.40
codegen_flags: <defaults>
</compile_context>

<pallas_src>
import jax
import jax.numpy as jnp
import numpy as np
from jax.experimental import pallas as pl
from jax.experimental.pallas import tpu as pltpu

# ----------------------- fixed configuration ------------------------------
BATCH = 8         # number of graphs
N_NODES = 64      # number of graph nodes per graph
NUM_FEAT = 16     # input feature dim        ('in')
HIDDEN = 32       # hidden dim
NUM_OUT = 8       # output classes           ('out')
NUM_EGO = 2       # number of ego networks
LOCAL_POWER = 2   # number of spmm applications per ego net
GIN_EPS = 0.0     # GINConv default eps
LANE_PAD = 128    # lane-dense class padding for the final projection


# ----------------------------- kernel --------------------------------------
def ego_gnn_kernel(
    ops_ref,    # (2, G, N, N) bf16  [0]=S (combined ego op), [1]=adj+(1+eps)I
    x0_ref,     # (G, N, F)    bf16  x @ ew0 (layer-0 ego Linear hoisted)
    eb0_ref,    # (1, F)  f32
    gw0_ref,    # (F, H)  bf16
    gb0_ref,    # (1, H)  f32
    ew1_ref,    # (H, H)  bf16
    eb1_ref,    # (1, H)  f32
    gw1_ref,    # (H, 128) bf16  (classes padded to 128 lanes with zeros)
    gb1_ref,    # (1, 128) f32   (padded lanes = -1e30)
    out_ref,    # (G, N, 128) f32  log-softmax (padded lanes are garbage)
):
    f32, bf16 = jnp.float32, jnp.bfloat16
    G, N, F = x0_ref.shape
    H = gw0_ref.shape[-1]
    C = gw1_ref.shape[-1]          # padded class width (128)
    GN = G * N

    S = ops_ref[0]                 # (G, N, N) bf16
    A = ops_ref[1]                 # (G, N, N) bf16

    # ----- layer 0: Ego conv (Linear hoisted) -> bias -> ReLU -> GIN --------
    h = jnp.einsum('gnm,gmf->gnf', S, x0_ref[...],
                   preferred_element_type=f32)                        # (G,N,F)
    h = jnp.maximum(h.reshape(GN, F) + eb0_ref[...], 0.0)             # (GN,F)
    # GIN: ((adj + (1+eps)I) @ h) @ W0 + b0   (aggregate first: F < H)
    h = jnp.einsum('gnm,gmf->gnf', A, h.reshape(G, N, F).astype(bf16),
                   preferred_element_type=f32)                        # (G,N,F)
    h = jnp.dot(h.reshape(GN, F).astype(bf16), gw0_ref[...],
                preferred_element_type=f32) + gb0_ref[...]            # (GN,H)

    # ----- layer 1: Ego conv -> Linear -> ReLU -> GIN -----------------------
    h = jnp.einsum('gnm,gmh->gnh', S, h.reshape(G, N, H).astype(bf16),
                   preferred_element_type=f32)                        # (G,N,H)
    h = jnp.dot(h.reshape(GN, H).astype(bf16), ew1_ref[...],
                preferred_element_type=f32) + eb1_ref[...]            # (GN,H)
    h = jnp.maximum(h, 0.0)
    # GIN reordered (associativity): adj_plus @ (h @ W1) + b1
    t = jnp.dot(h.astype(bf16), gw1_ref[...],
                preferred_element_type=f32)                           # (GN,C)
    h = jnp.einsum('gnm,gmc->gnc', A, t.reshape(G, N, C).astype(bf16),
                   preferred_element_type=f32)                        # (G,N,C)
    h = h.reshape(GN, C) + gb1_ref[...]                               # (GN,C)

    # ----- F.log_softmax(x, dim=1) over the (padded) class axis, in f32 -----
    m = jnp.max(h, axis=-1, keepdims=True)
    s = h - m
    lse = jnp.log(jnp.sum(jnp.exp(s), axis=-1, keepdims=True))
    out_ref[...] = (s - lse).reshape(G, N, C)


# ------------------------------ wrapper -------------------------------------
def _grid_steps(batch):
    # v7x has 2 TensorCores per chip -> 2 parallel steps shard the graphs
    # across both cores.  Single-TC chips (v5e/v6e): 1 step (every extra grid
    # step is pure sequential overhead on an overhead-bound kernel).
    try:
        kind = jax.devices()[0].device_kind.lower()
    except Exception:
        kind = ""
    if ("v7" in kind or "tpu7" in kind) and batch % 2 == 0:
        return 2
    return 1


def ego_gnn_forward(x, ego_adj, norm_degrees, adj, params):
    """x: (B,N,F), ego_adj: (B,E,N,N), norm_degrees: (B,N,1), adj: (B,N,N)."""
    (ew0, eb0, gw0, gb0, ew1, eb1, gw1, gb1) = params
    bf16 = jnp.bfloat16
    B, N, F = x.shape
    H = gw0.shape[1]
    C = gw1.shape[1]

    # Combined ego operator (exact: do_conv is linear in its input).
    p = ego_adj
    for _ in range(LOCAL_POWER - 1):
        p = jnp.einsum('benm,bemk->benk', p, ego_adj)
    S = norm_degrees * jnp.sum(p, axis=1)                             # (B,N,N)
    # GIN self-term folded into the adjacency.
    adj_plus = adj + (1.0 + GIN_EPS) * jnp.eye(N, dtype=adj.dtype)
    ops = jnp.stack([S, adj_plus], axis=0).astype(bf16)               # (2,B,N,N)

    # Layer-0 ego Linear hoisted ((S@x)@W0 == S@(x@W0)); bias added in-kernel.
    x0 = jnp.einsum('bnf,fg->bng', x, ew0).astype(bf16)               # (B,N,F)

    # Lane-dense final projection: pad classes to 128 lanes; padded bias lanes
    # are a large negative constant so the in-kernel log_softmax is exact.
    gw1p = jnp.zeros((H, LANE_PAD), jnp.float32).at[:, :C].set(gw1).astype(bf16)
    gb1p = jnp.full((1, LANE_PAD), -1e30, jnp.float32).at[:, :C].set(gb1)

    steps = _grid_steps(B)
    G = B // steps

    def per_step(shape):
        nd = len(shape)
        return pl.BlockSpec((G,) + shape, lambda b, _nd=nd: (b,) + (0,) * _nd)

    def shared(arr):
        return pl.BlockSpec(arr.shape, lambda b, _nd=arr.ndim: (0,) * _nd)

    w_args = (eb0, gw0.astype(bf16), gb0, ew1.astype(bf16), eb1, gw1p, gb1p)

    out = pl.pallas_call(
        ego_gnn_kernel,
        out_shape=jax.ShapeDtypeStruct((B, N, LANE_PAD), jnp.float32),
        grid=(steps,),
        in_specs=[pl.BlockSpec((2, G, N, N), lambda b: (0, b, 0, 0)),
                  per_step((N, F))]
                 + [shared(w) for w in w_args],
        out_specs=per_step((N, LANE_PAD)),
        compiler_params=pltpu.CompilerParams(
            dimension_semantics=("parallel",)),
    )(ops, x0, *w_args)

    return out[..., :C]                                               # (B,N,C)


# ------------------------- pure-JAX reference (f32) --------------------------
def ego_gnn_reference(x, ego_adj, norm_degrees, adj, params):
    (ew0, eb0, gw0, gb0, ew1, eb1, gw1, gb1) = params

    def do_conv(h):
        acc = jnp.zeros_like(h)
        for e in range(NUM_EGO):
            t = h
            for _ in range(LOCAL_POWER):
                t = jnp.einsum('bnm,bmf->bnf', ego_adj[:, e], t)
            acc = acc + t
        return acc * norm_degrees

    def gin(h, w, b):
        agg = jnp.einsum('bnm,bmf->bnf', adj, h)
        return ((1.0 + GIN_EPS) * h + agg) @ w + b

    h = do_conv(x) @ ew0 + eb0
    h = jnp.maximum(h, 0.0)
    h = gin(h, gw0, gb0)
    h = do_conv(h) @ ew1 + eb1
    h = jnp.maximum(h, 0.0)
    h = gin(h, gw1, gb1)
    return jax.nn.log_softmax(h, axis=-1)


# ------------------------------- driver -------------------------------------
if __name__ == "__main__":
    key = jax.random.PRNGKey(0)
    k_x, k_graph, k_ego, k_par = jax.random.split(key, 4)

    # Node features for B graphs.
    x = jax.random.normal(k_x, (BATCH, N_NODES, NUM_FEAT), dtype=jnp.float32)

    # Per-graph dense symmetric adjacency (no self loops; GIN adds its own).
    gk = jax.random.split(k_graph, BATCH)
    adj_list = []
    for b in range(BATCH):
        m = (jax.random.uniform(gk[b], (N_NODES, N_NODES)) < 0.06).astype(jnp.float32)
        a = jnp.maximum(m, m.T)
        a = a * (1.0 - jnp.eye(N_NODES, dtype=jnp.float32))
        adj_list.append(a)
    adj = jnp.stack(adj_list, axis=0)                        # (B, N, N)

    # Per-graph dense "ego network" operators: row-normalized masks + identity.
    ek = jax.random.split(k_ego, BATCH * NUM_EGO).reshape(BATCH, NUM_EGO, 2)
    ego_list = []
    for b in range(BATCH):
        per = []
        for e in range(NUM_EGO):
            mask = (jax.random.uniform(ek[b, e], (N_NODES, N_NODES)) < 0.1)
            a = mask.astype(jnp.float32) + jnp.eye(N_NODES, dtype=jnp.float32)
            a = a / jnp.sum(a, axis=1, keepdims=True)        # row-stochastic
            per.append(a)
        ego_list.append(jnp.stack(per, axis=0))
    ego_adj = jnp.stack(ego_list, axis=0)                    # (B, E, N, N)

    # norm_degrees: 1 / (1 + degree), per graph -> (B, N, 1)
    degrees = jnp.sum(adj, axis=2, keepdims=True)
    norm_degrees = 1.0 / (1.0 + degrees)

    # Deterministic Linear parameters (stored as (in, out); torch uses (out, in)).
    pkeys = jax.random.split(k_par, 4)

    def lin(k, n_in, n_out):
        kw, kb = jax.random.split(k)
        bound = 1.0 / np.sqrt(n_in)
        w = jax.random.uniform(kw, (n_in, n_out), jnp.float32, -bound, bound)
        b = jax.random.uniform(kb, (1, n_out), jnp.float32, -bound, bound)
        return w, b

    ew0, eb0 = lin(pkeys[0], NUM_FEAT, NUM_FEAT)   # ego Linear, layer 0
    gw0, gb0 = lin(pkeys[1], NUM_FEAT, HIDDEN)     # GINConv Linear, layer 0
    ew1, eb1 = lin(pkeys[2], HIDDEN, HIDDEN)       # ego Linear, layer 1
    gw1, gb1 = lin(pkeys[3], HIDDEN, NUM_OUT)      # GINConv Linear, layer 1
    params = (ew0, eb0, gw0, gb0, ew1, eb1, gw1, gb1)

    forward = jax.jit(ego_gnn_forward)
    out = jax.block_until_ready(forward(x, ego_adj, norm_degrees, adj, params))

    ref = ego_gnn_reference(x, ego_adj, norm_degrees, adj, params)
    # Tolerance loosened: MXU operands are bf16 (f32 accumulation), the f32
    # reference differs by O(1e-2) in the log-probabilities.
    np.testing.assert_allclose(np.asarray(out), np.asarray(ref),
                               rtol=5e-2, atol=1e-1)

    print("KERNEL_OK")
</pallas_src>

<mosaic_0001>
module attributes {stable_mosaic.version = 11 : i64} {
  func.func @ego_gnn_kernel(%arg0: i32, %arg1: memref<2x8x64x64xbf16, #tpu.memory_space<vmem>>, %arg2: memref<8x64x16xbf16, #tpu.memory_space<vmem>>, %arg3: memref<1x16xf32, #tpu.memory_space<vmem>>, %arg4: memref<16x32xbf16, #tpu.memory_space<vmem>>, %arg5: memref<1x32xf32, #tpu.memory_space<vmem>>, %arg6: memref<32x32xbf16, #tpu.memory_space<vmem>>, %arg7: memref<1x32xf32, #tpu.memory_space<vmem>>, %arg8: memref<32x128xbf16, #tpu.memory_space<vmem>>, %arg9: memref<1x128xf32, #tpu.memory_space<vmem>>, %arg10: memref<8x64x128xf32, #tpu.memory_space<vmem>>) attributes {dimension_semantics = [#tpu.dimension_semantics<parallel>], iteration_bounds = array<i64: 1>, scalar_prefetch = 0 : i64, scratch_operands = 0 : i64, tpu.core_type = #tpu.core_type<tc>, window_params = [{transform_indices = @transform_0, window_bounds = array<i64: 2, 8, 64, 64>}, {transform_indices = @transform_1, window_bounds = array<i64: 8, 64, 16>}, {pipeline_mode = #tpu.pipeline_mode<synchronous>, transform_indices = @transform_2, window_bounds = array<i64: 1, 16>}, {pipeline_mode = #tpu.pipeline_mode<synchronous>, transform_indices = @transform_3, window_bounds = array<i64: 16, 32>}, {pipeline_mode = #tpu.pipeline_mode<synchronous>, transform_indices = @transform_4, window_bounds = array<i64: 1, 32>}, {pipeline_mode = #tpu.pipeline_mode<synchronous>, transform_indices = @transform_5, window_bounds = array<i64: 32, 32>}, {pipeline_mode = #tpu.pipeline_mode<synchronous>, transform_indices = @transform_6, window_bounds = array<i64: 1, 32>}, {pipeline_mode = #tpu.pipeline_mode<synchronous>, transform_indices = @transform_7, window_bounds = array<i64: 32, 128>}, {pipeline_mode = #tpu.pipeline_mode<synchronous>, transform_indices = @transform_8, window_bounds = array<i64: 1, 128>}, {transform_indices = @transform_9, window_bounds = array<i64: 8, 64, 128>}]} {
    %c0 = arith.constant 0 : index
    %c0_0 = arith.constant 0 : index
    %c0_1 = arith.constant 0 : index
    %c0_2 = arith.constant 0 : index
    %0 = vector.load %arg1[%c0, %c0_0, %c0_1, %c0_2] : memref<2x8x64x64xbf16, #tpu.memory_space<vmem>>, vector<1x8x64x64xbf16>
    %1 = vector.shape_cast %0 : vector<1x8x64x64xbf16> to vector<8x64x64xbf16>
    %c1 = arith.constant 1 : index
    %c0_3 = arith.constant 0 : index
    %c0_4 = arith.constant 0 : index
    %c0_5 = arith.constant 0 : index
    %2 = vector.load %arg1[%c1, %c0_3, %c0_4, %c0_5] : memref<2x8x64x64xbf16, #tpu.memory_space<vmem>>, vector<1x8x64x64xbf16>
    %3 = vector.shape_cast %2 : vector<1x8x64x64xbf16> to vector<8x64x64xbf16>
    %c0_6 = arith.constant 0 : index
    %c0_7 = arith.constant 0 : index
    %c0_8 = arith.constant 0 : index
    %4 = vector.load %arg2[%c0_6, %c0_7, %c0_8] : memref<8x64x16xbf16, #tpu.memory_space<vmem>>, vector<8x64x16xbf16>
    "tpu.trace_start"() <{level = 10 : i32, message = "gnm,gmf->gnf"}> : () -> ()
    %cst = arith.constant dense<0.000000e+00> : vector<8x64x16xf32>
    %5 = tpu.matmul %1, %4, %cst {dimension_numbers = #tpu.dot_dimension_numbers<[2], [1], [1], [2], [0, 0, 0, 1, 1, 2], [0], [0]>} : vector<8x64x64xbf16>, vector<8x64x16xbf16>, vector<8x64x16xf32> -> vector<8x64x16xf32>
    "tpu.trace_stop"() : () -> ()
    %6 = vector.shape_cast %5 : vector<8x64x16xf32> to vector<512x16xf32>
    %c0_9 = arith.constant 0 : index
    %c0_10 = arith.constant 0 : index
    %7 = vector.load %arg3[%c0_9, %c0_10] : memref<1x16xf32, #tpu.memory_space<vmem>>, vector<1x16xf32>
    %8 = vector.broadcast %7 : vector<1x16xf32> to vector<512x16xf32>
    %9 = arith.addf %6, %8 : vector<512x16xf32>
    %cst_11 = arith.constant 0.000000e+00 : f32
    %10 = vector.broadcast %cst_11 : f32 to vector<512x16xf32>
    %11 = arith.maximumf %9, %10 : vector<512x16xf32>
    %12 = vector.shape_cast %11 : vector<512x16xf32> to vector<8x64x16xf32>
    %13 = arith.truncf %12 : vector<8x64x16xf32> to vector<8x64x16xbf16>
    "tpu.trace_start"() <{level = 10 : i32, message = "gnm,gmf->gnf"}> : () -> ()
    %cst_12 = arith.constant dense<0.000000e+00> : vector<8x64x16xf32>
    %14 = tpu.matmul %3, %13, %cst_12 {dimension_numbers = #tpu.dot_dimension_numbers<[2], [1], [1], [2], [0, 0, 0, 1, 1, 2], [0], [0]>} : vector<8x64x64xbf16>, vector<8x64x16xbf16>, vector<8x64x16xf32> -> vector<8x64x16xf32>
    "tpu.trace_stop"() : () -> ()
    %15 = vector.shape_cast %14 : vector<8x64x16xf32> to vector<512x16xf32>
    %16 = arith.truncf %15 : vector<512x16xf32> to vector<512x16xbf16>
    %c0_13 = arith.constant 0 : index
    %c0_14 = arith.constant 0 : index
    %17 = vector.load %arg4[%c0_13, %c0_14] : memref<16x32xbf16, #tpu.memory_space<vmem>>, vector<16x32xbf16>
    %cst_15 = arith.constant dense<0.000000e+00> : vector<512x32xf32>
    %18 = tpu.matmul %16, %17, %cst_15 {dimension_numbers = #tpu.dot_dimension_numbers<[1], [0], [0], [1], [0, 0, 1, 1], [], []>} : vector<512x16xbf16>, vector<16x32xbf16>, vector<512x32xf32> -> vector<512x32xf32>
    %c0_16 = arith.constant 0 : index
    %c0_17 = arith.constant 0 : index
    %19 = vector.load %arg5[%c0_16, %c0_17] : memref<1x32xf32, #tpu.memory_space<vmem>>, vector<1x32xf32>
    %20 = vector.broadcast %19 : vector<1x32xf32> to vector<512x32xf32>
    %21 = arith.addf %18, %20 : vector<512x32xf32>
    %22 = vector.shape_cast %21 : vector<512x32xf32> to vector<8x64x32xf32>
    %23 = arith.truncf %22 : vector<8x64x32xf32> to vector<8x64x32xbf16>
    "tpu.trace_start"() <{level = 10 : i32, message = "gnm,gmh->gnh"}> : () -> ()
    %cst_18 = arith.constant dense<0.000000e+00> : vector<8x64x32xf32>
    %24 = tpu.matmul %1, %23, %cst_18 {dimension_numbers = #tpu.dot_dimension_numbers<[2], [1], [1], [2], [0, 0, 0, 1, 1, 2], [0], [0]>} : vector<8x64x64xbf16>, vector<8x64x32xbf16>, vector<8x64x32xf32> -> vector<8x64x32xf32>
    "tpu.trace_stop"() : () -> ()
    %25 = vector.shape_cast %24 : vector<8x64x32xf32> to vector<512x32xf32>
    %26 = arith.truncf %25 : vector<512x32xf32> to vector<512x32xbf16>
    %c0_19 = arith.constant 0 : index
    %c0_20 = arith.constant 0 : index
    %27 = vector.load %arg6[%c0_19, %c0_20] : memref<32x32xbf16, #tpu.memory_space<vmem>>, vector<32x32xbf16>
    %cst_21 = arith.constant dense<0.000000e+00> : vector<512x32xf32>
    %28 = tpu.matmul %26, %27, %cst_21 {dimension_numbers = #tpu.dot_dimension_numbers<[1], [0], [0], [1], [0, 0, 1, 1], [], []>} : vector<512x32xbf16>, vector<32x32xbf16>, vector<512x32xf32> -> vector<512x32xf32>
    %c0_22 = arith.constant 0 : index
    %c0_23 = arith.constant 0 : index
    %29 = vector.load %arg7[%c0_22, %c0_23] : memref<1x32xf32, #tpu.memory_space<vmem>>, vector<1x32xf32>
    %30 = vector.broadcast %29 : vector<1x32xf32> to vector<512x32xf32>
    %31 = arith.addf %28, %30 : vector<512x32xf32>
    %cst_24 = arith.constant 0.000000e+00 : f32
    %32 = vector.broadcast %cst_24 : f32 to vector<512x32xf32>
    %33 = arith.maximumf %31, %32 : vector<512x32xf32>
    %34 = arith.truncf %33 : vector<512x32xf32> to vector<512x32xbf16>
    %c0_25 = arith.constant 0 : index
    %c0_26 = arith.constant 0 : index
    %35 = vector.load %arg8[%c0_25, %c0_26] : memref<32x128xbf16, #tpu.memory_space<vmem>>, vector<32x128xbf16>
    %cst_27 = arith.constant dense<0.000000e+00> : vector<512x128xf32>
    %36 = tpu.matmul %34, %35, %cst_27 {dimension_numbers = #tpu.dot_dimension_numbers<[1], [0], [0], [1], [0, 0, 1, 1], [], []>} : vector<512x32xbf16>, vector<32x128xbf16>, vector<512x128xf32> -> vector<512x128xf32>
    %37 = vector.shape_cast %36 : vector<512x128xf32> to vector<8x64x128xf32>
    %38 = arith.truncf %37 : vector<8x64x128xf32> to vector<8x64x128xbf16>
    "tpu.trace_start"() <{level = 10 : i32, message = "gnm,gmc->gnc"}> : () -> ()
    %cst_28 = arith.constant dense<0.000000e+00> : vector<8x64x128xf32>
    %39 = tpu.matmul %3, %38, %cst_28 {dimension_numbers = #tpu.dot_dimension_numbers<[2], [1], [1], [2], [0, 0, 0, 1, 1, 2], [0], [0]>} : vector<8x64x64xbf16>, vector<8x64x128xbf16>, vector<8x64x128xf32> -> vector<8x64x128xf32>
    "tpu.trace_stop"() : () -> ()
    %40 = vector.shape_cast %39 : vector<8x64x128xf32> to vector<512x128xf32>
    %c0_29 = arith.constant 0 : index
    %c0_30 = arith.constant 0 : index
    %41 = vector.load %arg9[%c0_29, %c0_30] : memref<1x128xf32, #tpu.memory_space<vmem>>, vector<1x128xf32>
    %42 = vector.broadcast %41 : vector<1x128xf32> to vector<512x128xf32>
    %43 = arith.addf %40, %42 : vector<512x128xf32>
    %cst_31 = arith.constant dense<0xFF800000> : vector<512xf32>
    %44 = vector.multi_reduction <maximumf>, %43, %cst_31 [1] : vector<512x128xf32> to vector<512xf32>
    %45 = vector.shape_cast %44 : vector<512xf32> to vector<512x1xf32>
    %46 = vector.broadcast %45 : vector<512x1xf32> to vector<512x128xf32>
    %47 = arith.subf %43, %46 : vector<512x128xf32>
    %48 = math.exp %47 : vector<512x128xf32>
    %cst_32 = arith.constant dense<0.000000e+00> : vector<512xf32>
    %49 = vector.multi_reduction <add>, %48, %cst_32 [1] : vector<512x128xf32> to vector<512xf32>
    %50 = vector.shape_cast %49 : vector<512xf32> to vector<512x1xf32>
    %51 = math.log %50 : vector<512x1xf32>
    %52 = vector.broadcast %51 : vector<512x1xf32> to vector<512x128xf32>
    %53 = arith.subf %47, %52 : vector<512x128xf32>
    %54 = vector.shape_cast %53 : vector<512x128xf32> to vector<8x64x128xf32>
    %c0_33 = arith.constant 0 : index
    %c0_34 = arith.constant 0 : index
    %c0_35 = arith.constant 0 : index
    %55 = vector.load %arg10[%c0_33, %c0_34, %c0_35] : memref<8x64x128xf32, #tpu.memory_space<vmem>>, vector<8x64x128xf32>
    tpu.vector_store %arg10[%c0_33, %c0_34, %c0_35], %54 {strides = array<i32>} : memref<8x64x128xf32, #tpu.memory_space<vmem>>, vector<8x64x128xf32>,
    return
  }
  func.func @transform_0(%arg0: i32) -> (i32, i32, i32, i32) {
    %c0_i32 = arith.constant 0 : i32
    %c0_i32_0 = arith.constant 0 : i32
    %c0_i32_1 = arith.constant 0 : i32
    %c0_i32_2 = arith.constant 0 : i32
    return %c0_i32, %arg0, %c0_i32_0, %c0_i32_1 : i32, i32, i32, i32
  }
  func.func @transform_1(%arg0: i32) -> (i32, i32, i32) {
    %c0_i32 = arith.constant 0 : i32
    %c0_i32_0 = arith.constant 0 : i32
    %c0_i32_1 = arith.constant 0 : i32
    return %arg0, %c0_i32, %c0_i32_0 : i32, i32, i32
  }
  func.func @transform_2(%arg0: i32) -> (i32, i32) {
    %c0_i32 = arith.constant 0 : i32
    %c0_i32_0 = arith.constant 0 : i32
    %c0_i32_1 = arith.constant 0 : i32
    return %c0_i32, %c0_i32_0 : i32, i32
  }
  func.func @transform_3(%arg0: i32) -> (i32, i32) {
    %c0_i32 = arith.constant 0 : i32
    %c0_i32_0 = arith.constant 0 : i32
    %c0_i32_1 = arith.constant 0 : i32
    return %c0_i32, %c0_i32_0 : i32, i32
  }
  func.func @transform_4(%arg0: i32) -> (i32, i32) {
    %c0_i32 = arith.constant 0 : i32
    %c0_i32_0 = arith.constant 0 : i32
    %c0_i32_1 = arith.constant 0 : i32
    return %c0_i32, %c0_i32_0 : i32, i32
  }
  func.func @transform_5(%arg0: i32) -> (i32, i32) {
    %c0_i32 = arith.constant 0 : i32
    %c0_i32_0 = arith.constant 0 : i32
    %c0_i32_1 = arith.constant 0 : i32
    return %c0_i32, %c0_i32_0 : i32, i32
  }
  func.func @transform_6(%arg0: i32) -> (i32, i32) {
    %c0_i32 = arith.constant 0 : i32
    %c0_i32_0 = arith.constant 0 : i32
    %c0_i32_1 = arith.constant 0 : i32
    return %c0_i32, %c0_i32_0 : i32, i32
  }
  func.func @transform_7(%arg0: i32) -> (i32, i32) {
    %c0_i32 = arith.constant 0 : i32
    %c0_i32_0 = arith.constant 0 : i32
    %c0_i32_1 = arith.constant 0 : i32
    return %c0_i32, %c0_i32_0 : i32, i32
  }
  func.func @transform_8(%arg0: i32) -> (i32, i32) {
    %c0_i32 = arith.constant 0 : i32
    %c0_i32_0 = arith.constant 0 : i32
    %c0_i32_1 = arith.constant 0 : i32
    return %c0_i32, %c0_i32_0 : i32, i32
  }
  func.func @transform_9(%arg0: i32) -> (i32, i32, i32) {
    %c0_i32 = arith.constant 0 : i32
    %c0_i32_0 = arith.constant 0 : i32
    %c0_i32_1 = arith.constant 0 : i32
    return %arg0, %c0_i32, %c0_i32_0 : i32, i32, i32
  }
}

</mosaic_0001>

<llo_original>
// kernel: ego_gnn_forward.1
$region0: #{ego_gnn_forward.1}
  #allocation0 [shape = 'u32[]', space=smem, size = 0x4, offset = 0x4, fixed_abs, tag = 'smem constant byte address 0x4 - core index']
  #allocation1 [shape = 'u32[144,128]{1,0:T(1,128)}', space=vmem, size = 0x12000, scoped, tag = 'internal scratch']
  %s0 = inlined_call_operand.vmem [shape: bf16[2,8,64,64], index: 0, kind: input, shape index: {}]
  %s1 = inlined_call_operand.vmem [shape: bf16[8,64,16], index: 1, kind: input, shape index: {}]
  %s2 = inlined_call_operand.vmem [shape: f32[1,16], index: 2, kind: input, shape index: {}]
  %s3 = inlined_call_operand.vmem [shape: bf16[16,32], index: 3, kind: input, shape index: {}]
  %s4 = inlined_call_operand.vmem [shape: f32[1,32], index: 4, kind: input, shape index: {}]
  %s5 = inlined_call_operand.vmem [shape: bf16[32,32], index: 5, kind: input, shape index: {}]
  %s6 = inlined_call_operand.vmem [shape: f32[1,32], index: 6, kind: input, shape index: {}]
  %s7 = inlined_call_operand.vmem [shape: bf16[32,128], index: 7, kind: input, shape index: {}]
  %s8 = inlined_call_operand.vmem [shape: f32[1,128], index: 8, kind: input, shape index: {}]
  %s9 = inlined_call_operand.vmem [shape: f32[8,64,128], index: 9, kind: output, shape index: {}]
  %s10 = sld [smem:[#allocation0]]
  $region46: #{ego_gnn_forward.1} parent=0
    _
  %s12 = ssub.s32 1, %s10
  %s13 = scalar_select 0, %s12, %s10
  // Predicated region
  $region2: #{ego_gnn_forward.1} parent=0 // pred_check
    _
  $region3: #{ego_gnn_forward.1} parent=0 // pred_check_branch
    %15 = sbr.rel (0) target = $region5
  $region4: #{ego_gnn_forward.1} parent=0 // pred_region
    _
  $region5: #{ego_gnn_forward.1} parent=0 // pred_fallthru
    _
  // Predicated region
  $region6: #{ego_gnn_forward.1} parent=0 // pred_check
    _
  $region7: #{ego_gnn_forward.1} parent=0 // pred_check_branch
    %17 = sbr.rel (0) target = $region9
  $region8: #{ego_gnn_forward.1} parent=0 // pred_region
    _
  $region9: #{ego_gnn_forward.1} parent=0 // pred_fallthru
    _
  // Predicated region
  $region10: #{ego_gnn_forward.1} parent=0 // pred_check
    _
  $region11: #{ego_gnn_forward.1} parent=0 // pred_check_branch
    %19 = sbr.rel (0) target = $region13
  $region12: #{ego_gnn_forward.1} parent=0 // pred_region
    _
  $region13: #{ego_gnn_forward.1} parent=0 // pred_fallthru
    _
  // Predicated region
  $region14: #{ego_gnn_forward.1} parent=0 // pred_check
    _
  $region15: #{ego_gnn_forward.1} parent=0 // pred_check_branch
    %21 = sbr.rel (0) target = $region17
  $region16: #{ego_gnn_forward.1} parent=0 // pred_region
    _
  $region17: #{ego_gnn_forward.1} parent=0 // pred_fallthru
    _
  // Predicated region
  $region18: #{ego_gnn_forward.1} parent=0 // pred_check
    _
  $region19: #{ego_gnn_forward.1} parent=0 // pred_check_branch
    %23 = sbr.rel (0) target = $region21
  $region20: #{ego_gnn_forward.1} parent=0 // pred_region
    _
  $region21: #{ego_gnn_forward.1} parent=0 // pred_fallthru
    _
  // Predicated region
  $region22: #{ego_gnn_forward.1} parent=0 // pred_check
    _
  $region23: #{ego_gnn_forward.1} parent=0 // pred_check_branch
    %25 = sbr.rel (0) target = $region25
  $region24: #{ego_gnn_forward.1} parent=0 // pred_region
    _
  $region25: #{ego_gnn_forward.1} parent=0 // pred_fallthru
    _
  // Predicated region
  $region26: #{ego_gnn_forward.1} parent=0 // pred_check
    _
  $region27: #{ego_gnn_forward.1} parent=0 // pred_check_branch
    %27 = sbr.rel (0) target = $region29
  $region28: #{ego_gnn_forward.1} parent=0 // pred_region
    _
  $region29: #{ego_gnn_forward.1} parent=0 // pred_fallthru
    _
  // Predicated region
  $region30: #{ego_gnn_forward.1} parent=0 // pred_check
    _
  $region31: #{ego_gnn_forward.1} parent=0 // pred_check_branch
    %29 = sbr.rel (0) target = $region33
  $region32: #{ego_gnn_forward.1} parent=0 // pred_region
    _
  $region33: #{ego_gnn_forward.1} parent=0 // pred_fallthru
    _
  // Predicated region
  $region34: #{ego_gnn_forward.1} parent=0 // pred_check
    _
  $region35: #{ego_gnn_forward.1} parent=0 // pred_check_branch
    %31 = sbr.rel (0) target = $region37
  $region36: #{ego_gnn_forward.1} parent=0 // pred_region
    _
  $region37: #{ego_gnn_forward.1} parent=0 // pred_fallthru
    _
  %v33 = vld [vmem:[%s0] sm:$0xf]
  %v34 = vld [vmem:[%s0 + $0x4] sm:$0xf]
  %v35 = vld [vmem:[%s0 + $0x8] sm:$0xf]
  %v36 = vld [vmem:[%s0 + $0xc] sm:$0xf]
  %v37 = vld [vmem:[%s0 + $0x10] sm:$0xf]
  %v38 = vld [vmem:[%s0 + $0x14] sm:$0xf]
  %v39 = vld [vmem:[%s0 + $0x18] sm:$0xf]
  %v40 = vld [vmem:[%s0 + $0x1c] sm:$0xf]
  %v41 = vld [vmem:[%s0 + $0x20] sm:$0xf]
  %v42 = vld [vmem:[%s0 + $0x24] sm:$0xf]
  %v43 = vld [vmem:[%s0 + $0x28] sm:$0xf]
  %v44 = vld [vmem:[%s0 + $0x2c] sm:$0xf]
  %v45 = vld [vmem:[%s0 + $0x30] sm:$0xf]
  %v46 = vld [vmem:[%s0 + $0x34] sm:$0xf]
  %v47 = vld [vmem:[%s0 + $0x38] sm:$0xf]
  %v48 = vld [vmem:[%s0 + $0x3c] sm:$0xf]
  %v49 = vld [vmem:[%s0 + $0x40] sm:$0xf]
  %v50 = vld [vmem:[%s0 + $0x44] sm:$0xf]
  %v51 = vld [vmem:[%s0 + $0x48] sm:$0xf]
  %v52 = vld [vmem:[%s0 + $0x4c] sm:$0xf]
  %v53 = vld [vmem:[%s0 + $0x50] sm:$0xf]
  %v54 = vld [vmem:[%s0 + $0x54] sm:$0xf]
  %v55 = vld [vmem:[%s0 + $0x58] sm:$0xf]
  %v56 = vld [vmem:[%s0 + $0x5c] sm:$0xf]
  %v57 = vld [vmem:[%s0 + $0x60] sm:$0xf]
  %v58 = vld [vmem:[%s0 + $0x64] sm:$0xf]
  %v59 = vld [vmem:[%s0 + $0x68] sm:$0xf]
  %v60 = vld [vmem:[%s0 + $0x6c] sm:$0xf]
  %v61 = vld [vmem:[%s0 + $0x70] sm:$0xf]
  %v62 = vld [vmem:[%s0 + $0x74] sm:$0xf]
  %v63 = vld [vmem:[%s0 + $0x78] sm:$0xf]
  %v64 = vld [vmem:[%s0 + $0x7c] sm:$0xf]
  %v65 = vld [vmem:[%s0 + $0x80] sm:$0xf]
  %v66 = vld [vmem:[%s0 + $0x84] sm:$0xf]
  %v67 = vld [vmem:[%s0 + $0x88] sm:$0xf]
  %v68 = vld [vmem:[%s0 + $0x8c] sm:$0xf]
  %v69 = vld [vmem:[%s0 + $0x90] sm:$0xf]
  %v70 = vld [vmem:[%s0 + $0x94] sm:$0xf]
  %v71 = vld [vmem:[%s0 + $0x98] sm:$0xf]
  %v72 = vld [vmem:[%s0 + $0x9c] sm:$0xf]
  %v73 = vld [vmem:[%s0 + $0xa0] sm:$0xf]
  %v74 = vld [vmem:[%s0 + $0xa4] sm:$0xf]
  %v75 = vld [vmem:[%s0 + $0xa8] sm:$0xf]
  %v76 = vld [vmem:[%s0 + $0xac] sm:$0xf]
  %v77 = vld [vmem:[%s0 + $0xb0] sm:$0xf]
  %v78 = vld [vmem:[%s0 + $0xb4] sm:$0xf]
  %v79 = vld [vmem:[%s0 + $0xb8] sm:$0xf]
  %v80 = vld [vmem:[%s0 + $0xbc] sm:$0xf]
  %v81 = vld [vmem:[%s0 + $0xc0] sm:$0xf]
  %v82 = vld [vmem:[%s0 + $0xc4] sm:$0xf]
  %v83 = vld [vmem:[%s0 + $0xc8] sm:$0xf]
  %v84 = vld [vmem:[%s0 + $0xcc] sm:$0xf]
  %v85 = vld [vmem:[%s0 + $0xd0] sm:$0xf]
  %v86 = vld [vmem:[%s0 + $0xd4] sm:$0xf]
  %v87 = vld [vmem:[%s0 + $0xd8] sm:$0xf]
  %v88 = vld [vmem:[%s0 + $0xdc] sm:$0xf]
  %v89 = vld [vmem:[%s0 + $0xe0] sm:$0xf]
  %v90 = vld [vmem:[%s0 + $0xe4] sm:$0xf]
  %v91 = vld [vmem:[%s0 + $0xe8] sm:$0xf]
  %v92 = vld [vmem:[%s0 + $0xec] sm:$0xf]
  %v93 = vld [vmem:[%s0 + $0xf0] sm:$0xf]
  %v94 = vld [vmem:[%s0 + $0xf4] sm:$0xf]
  %v95 = vld [vmem:[%s0 + $0xf8] sm:$0xf]
  %v96 = vld [vmem:[%s0 + $0xfc] sm:$0xf]
  %s97 = scalar_lea.vmem %s0, 256
  %v98 = vld [vmem:[%s97] sm:$0xf]
  %v99 = vld [vmem:[%s97 + $0x4] sm:$0xf]
  %v100 = vld [vmem:[%s97 + $0x8] sm:$0xf]
  %v101 = vld [vmem:[%s97 + $0xc] sm:$0xf]
  %v102 = vld [vmem:[%s97 + $0x10] sm:$0xf]
  %v103 = vld [vmem:[%s97 + $0x14] sm:$0xf]
  %v104 = vld [vmem:[%s97 + $0x18] sm:$0xf]
  %v105 = vld [vmem:[%s97 + $0x1c] sm:$0xf]
  %v106 = vld [vmem:[%s97 + $0x20] sm:$0xf]
  %v107 = vld [vmem:[%s97 + $0x24] sm:$0xf]
  %v108 = vld [vmem:[%s97 + $0x28] sm:$0xf]
  %v109 = vld [vmem:[%s97 + $0x2c] sm:$0xf]
  %v110 = vld [vmem:[%s97 + $0x30] sm:$0xf]
  %v111 = vld [vmem:[%s97 + $0x34] sm:$0xf]
  %v112 = vld [vmem:[%s97 + $0x38] sm:$0xf]
  %v113 = vld [vmem:[%s97 + $0x3c] sm:$0xf]
  %v114 = vld [vmem:[%s97 + $0x40] sm:$0xf]
  %v115 = vld [vmem:[%s97 + $0x44] sm:$0xf]
  %v116 = vld [vmem:[%s97 + $0x48] sm:$0xf]
  %v117 = vld [vmem:[%s97 + $0x4c] sm:$0xf]
  %v118 = vld [vmem:[%s97 + $0x50] sm:$0xf]
  %v119 = vld [vmem:[%s97 + $0x54] sm:$0xf]
  %v120 = vld [vmem:[%s97 + $0x58] sm:$0xf]
  %v121 = vld [vmem:[%s97 + $0x5c] sm:$0xf]
  %v122 = vld [vmem:[%s97 + $0x60] sm:$0xf]
  %v123 = vld [vmem:[%s97 + $0x64] sm:$0xf]
  %v124 = vld [vmem:[%s97 + $0x68] sm:$0xf]
  %v125 = vld [vmem:[%s97 + $0x6c] sm:$0xf]
  %v126 = vld [vmem:[%s97 + $0x70] sm:$0xf]
  %v127 = vld [vmem:[%s97 + $0x74] sm:$0xf]
  %v128 = vld [vmem:[%s97 + $0x78] sm:$0xf]
  %v129 = vld [vmem:[%s97 + $0x7c] sm:$0xf]
  %v130 = vld [vmem:[%s97 + $0x80] sm:$0xf]
  %v131 = vld [vmem:[%s97 + $0x84] sm:$0xf]
  %v132 = vld [vmem:[%s97 + $0x88] sm:$0xf]
  %v133 = vld [vmem:[%s97 + $0x8c] sm:$0xf]
  %v134 = vld [vmem:[%s97 + $0x90] sm:$0xf]
  %v135 = vld [vmem:[%s97 + $0x94] sm:$0xf]
  %v136 = vld [vmem:[%s97 + $0x98] sm:$0xf]
  %v137 = vld [vmem:[%s97 + $0x9c] sm:$0xf]
  %v138 = vld [vmem:[%s97 + $0xa0] sm:$0xf]
  %v139 = vld [vmem:[%s97 + $0xa4] sm:$0xf]
  %v140 = vld [vmem:[%s97 + $0xa8] sm:$0xf]
  %v141 = vld [vmem:[%s97 + $0xac] sm:$0xf]
  %v142 = vld [vmem:[%s97 + $0xb0] sm:$0xf]
  %v143 = vld [vmem:[%s97 + $0xb4] sm:$0xf]
  %v144 = vld [vmem:[%s97 + $0xb8] sm:$0xf]
  %v145 = vld [vmem:[%s97 + $0xbc] sm:$0xf]
  %v146 = vld [vmem:[%s97 + $0xc0] sm:$0xf]
  %v147 = vld [vmem:[%s97 + $0xc4] sm:$0xf]
  %v148 = vld [vmem:[%s97 + $0xc8] sm:$0xf]
  %v149 = vld [vmem:[%s97 + $0xcc] sm:$0xf]
  %v150 = vld [vmem:[%s97 + $0xd0] sm:$0xf]
  %v151 = vld [vmem:[%s97 + $0xd4] sm:$0xf]
  %v152 = vld [vmem:[%s97 + $0xd8] sm:$0xf]
  %v153 = vld [vmem:[%s97 + $0xdc] sm:$0xf]
  %v154 = vld [vmem:[%s97 + $0xe0] sm:$0xf]
  %v155 = vld [vmem:[%s97 + $0xe4] sm:$0xf]
  %v156 = vld [vmem:[%s97 + $0xe8] sm:$0xf]
  %v157 = vld [vmem:[%s97 + $0xec] sm:$0xf]
  %v158 = vld [vmem:[%s97 + $0xf0] sm:$0xf]
  %v159 = vld [vmem:[%s97 + $0xf4] sm:$0xf]
  %v160 = vld [vmem:[%s97 + $0xf8] sm:$0xf]
  %v161 = vld [vmem:[%s97 + $0xfc] sm:$0xf]
  %v162 = vld [vmem:[%s1] sm:$0xf]
  %v163 = vld [vmem:[%s1 + $0x4] sm:$0xf]
  %v164 = vld [vmem:[%s1 + $0x8] sm:$0xf]
  %v165 = vld [vmem:[%s1 + $0xc] sm:$0xf]
  %v166 = vld [vmem:[%s1 + $0x10] sm:$0xf]
  %v167 = vld [vmem:[%s1 + $0x14] sm:$0xf]
  %v168 = vld [vmem:[%s1 + $0x18] sm:$0xf]
  %v169 = vld [vmem:[%s1 + $0x1c] sm:$0xf]
  %v170 = vld [vmem:[%s1 + $0x20] sm:$0xf]
  %v171 = vld [vmem:[%s1 + $0x24] sm:$0xf]
  %v172 = vld [vmem:[%s1 + $0x28] sm:$0xf]
  %v173 = vld [vmem:[%s1 + $0x2c] sm:$0xf]
  %v174 = vld [vmem:[%s1 + $0x30] sm:$0xf]
  %v175 = vld [vmem:[%s1 + $0x34] sm:$0xf]
  %v176 = vld [vmem:[%s1 + $0x38] sm:$0xf]
  %v177 = vld [vmem:[%s1 + $0x3c] sm:$0xf]
  %v178 = vld [vmem:[%s1 + $0x40] sm:$0xf]
  %v179 = vld [vmem:[%s1 + $0x44] sm:$0xf]
  %v180 = vld [vmem:[%s1 + $0x48] sm:$0xf]
  %v181 = vld [vmem:[%s1 + $0x4c] sm:$0xf]
  %v182 = vld [vmem:[%s1 + $0x50] sm:$0xf]
  %v183 = vld [vmem:[%s1 + $0x54] sm:$0xf]
  %v184 = vld [vmem:[%s1 + $0x58] sm:$0xf]
  %v185 = vld [vmem:[%s1 + $0x5c] sm:$0xf]
  %v186 = vld [vmem:[%s1 + $0x60] sm:$0xf]
  %v187 = vld [vmem:[%s1 + $0x64] sm:$0xf]
  %v188 = vld [vmem:[%s1 + $0x68] sm:$0xf]
  %v189 = vld [vmem:[%s1 + $0x6c] sm:$0xf]
  %v190 = vld [vmem:[%s1 + $0x70] sm:$0xf]
  %v191 = vld [vmem:[%s1 + $0x74] sm:$0xf]
  %v192 = vld [vmem:[%s1 + $0x78] sm:$0xf]
  %v193 = vld [vmem:[%s1 + $0x7c] sm:$0xf]
  %v194 = vld [vmem:[%s1 + $0x80] sm:$0xf]
  %v195 = vld [vmem:[%s1 + $0x84] sm:$0xf]
  %v196 = vld [vmem:[%s1 + $0x88] sm:$0xf]
  %v197 = vld [vmem:[%s1 + $0x8c] sm:$0xf]
  %v198 = vld [vmem:[%s1 + $0x90] sm:$0xf]
  %v199 = vld [vmem:[%s1 + $0x94] sm:$0xf]
  %v200 = vld [vmem:[%s1 + $0x98] sm:$0xf]
  %v201 = vld [vmem:[%s1 + $0x9c] sm:$0xf]
  %v202 = vld [vmem:[%s1 + $0xa0] sm:$0xf]
  %v203 = vld [vmem:[%s1 + $0xa4] sm:$0xf]
  %v204 = vld [vmem:[%s1 + $0xa8] sm:$0xf]
  %v205 = vld [vmem:[%s1 + $0xac] sm:$0xf]
  %v206 = vld [vmem:[%s1 + $0xb0] sm:$0xf]
  %v207 = vld [vmem:[%s1 + $0xb4] sm:$0xf]
  %v208 = vld [vmem:[%s1 + $0xb8] sm:$0xf]
  %v209 = vld [vmem:[%s1 + $0xbc] sm:$0xf]
  %v210 = vld [vmem:[%s1 + $0xc0] sm:$0xf]
  %v211 = vld [vmem:[%s1 + $0xc4] sm:$0xf]
  %v212 = vld [vmem:[%s1 + $0xc8] sm:$0xf]
  %v213 = vld [vmem:[%s1 + $0xcc] sm:$0xf]
  %v214 = vld [vmem:[%s1 + $0xd0] sm:$0xf]
  %v215 = vld [vmem:[%s1 + $0xd4] sm:$0xf]
  %v216 = vld [vmem:[%s1 + $0xd8] sm:$0xf]
  %v217 = vld [vmem:[%s1 + $0xdc] sm:$0xf]
  %v218 = vld [vmem:[%s1 + $0xe0] sm:$0xf]
  %v219 = vld [vmem:[%s1 + $0xe4] sm:$0xf]
  %v220 = vld [vmem:[%s1 + $0xe8] sm:$0xf]
  %v221 = vld [vmem:[%s1 + $0xec] sm:$0xf]
  %v222 = vld [vmem:[%s1 + $0xf0] sm:$0xf]
  %v223 = vld [vmem:[%s1 + $0xf4] sm:$0xf]
  %v224 = vld [vmem:[%s1 + $0xf8] sm:$0xf]
  %v225 = vld [vmem:[%s1 + $0xfc] sm:$0xf]
  %v234 = vunpack.c.l.b16 %v33
  %v235 = vunpack.c.l.b16 %v34
  %v236 = vunpack.c.l.b16 %v35
  %v237 = vunpack.c.l.b16 %v36
  %v238 = vunpack.c.l.b16 %v37
  %v239 = vunpack.c.l.b16 %v38
  %v240 = vunpack.c.l.b16 %v39
  %v241 = vunpack.c.l.b16 %v40
  %v242 = vpack.c.b16 %v235, %v234
  %v243 = vpack.c.b16 %v237, %v236
  %v244 = vpack.c.b16 %v239, %v238
  %v245 = vpack.c.b16 %v241, %v240
  %v254 = vunpack.c.l.b16 %v162
  %v255 = vunpack.c.l.b16 %v163
  %v256 = vunpack.c.l.b16 %v164
  %v257 = vunpack.c.l.b16 %v165
  %v258 = vunpack.c.l.b16 %v166
  %v259 = vunpack.c.l.b16 %v167
  %v260 = vunpack.c.l.b16 %v168
  %v261 = vunpack.c.l.b16 %v169
  %v262 = vpack.c.b16 %v255, %v254
  %v263 = vpack.c.b16 %v257, %v256
  %v264 = vpack.c.b16 %v259, %v258
  %v265 = vpack.c.b16 %v261, %v260
  %vm270 = vcmask 523264
  %v272 = vsel %vm270, %v242, 0
  %v275 = vsel %vm270, %v243, 0
  %v278 = vsel %vm270, %v244, 0
  %v281 = vsel %vm270, %v245, 0
  %283 = vmatprep.subr.bf16.mxu0 0
  %284 = vmatpush1.bf16.msra.mxu0 %v262
  %285 = vmatprep.subr.bf16.mxu0 0
  %286 = vmatpush1.bf16.msra.mxu0 %v263
  %287 = vmatprep.subr.bf16.mxu0 0
  %288 = vmatpush1.bf16.msra.mxu0 %v264
  %289 = vmatprep.subr.bf16.mxu0 0
  %290 = vmatpush1.bf16.msra.mxu0 %v265
  %291 = vmatprep.subr.bf16.mxu0 0
  %292 = vmatpush1.bf16.msra.mxu0 0
  %293 = vmatprep.subr.bf16.mxu0 0
  %294 = vmatpush1.bf16.msra.mxu0 0
  %295 = vmatprep.subr.bf16.mxu0 0
  %296 = vmatpush1.bf16.msra.mxu0 0
  %297 = vmatprep.subr.bf16.mxu0 0
  %298 = vmatpush1.bf16.msra.mxu0 0
  %299 = vmatprep.subr.bf16.mxu0 0
  %300 = vmatpush1.bf16.msra.mxu0 0
  %301 = vmatprep.subr.bf16.mxu0 0
  %302 = vmatpush1.bf16.msra.mxu0 0
  %303 = vmatprep.subr.bf16.mxu0 0
  %304 = vmatpush1.bf16.msra.mxu0 0
  %305 = vmatprep.subr.bf16.mxu0 0
  %306 = vmatpush1.bf16.msra.mxu0 0
  %307 = vmatprep.subr.bf16.mxu0 0
  %308 = vmatpush1.bf16.msra.mxu0 0
  %309 = vmatprep.subr.bf16.mxu0 0
  %310 = vmatpush1.bf16.msra.mxu0 0
  %311 = vmatprep.subr.bf16.mxu0 0
  %312 = vmatpush1.bf16.msra.mxu0 0
  %313 = vmatprep.subr.bf16.mxu0 0
  %314 = vmatpush1.bf16.msra.mxu0 0
  %315 = vmatprep.mubr.bf16.mxu0 0
  %316 = vmatmul.mubr.bf16.gmra.mrb[0].mxu0 %v272
  %v317 = vpop.f32.mrb[0].mxu0
  %v318 = vadd.f32 0.0, %v317
  %v319 = vpop.f32.mrb[0].mxu0
  %v320 = vpop.f32.mrb[0].mxu0
  %v321 = vadd.f32 0.0, %v320
  %v322 = vpop.f32.mrb[0].mxu0
  %323 = vmatprep.mubr.bf16.mxu0 0
  %324 = vmatmul.mubr.bf16.gmra.mrb[0].mxu0 %v275
  %v325 = vpop.f32.mrb[0].mxu0
  %v326 = vadd.f32 0.0, %v325
  %v327 = vpop.f32.mrb[0].mxu0
  %v328 = vpop.f32.mrb[0].mxu0
  %v329 = vadd.f32 0.0, %v328
  %v330 = vpop.f32.mrb[0].mxu0
  %331 = vmatprep.mubr.bf16.mxu0 0
  %332 = vmatmul.mubr.bf16.gmra.mrb[0].mxu0 %v278
  %v333 = vpop.f32.mrb[0].mxu0
  %v334 = vadd.f32 0.0, %v333
  %v335 = vpop.f32.mrb[0].mxu0
  %v336 = vpop.f32.mrb[0].mxu0
  %v337 = vadd.f32 0.0, %v336
  %v338 = vpop.f32.mrb[0].mxu0
  %339 = vmatprep.mubr.bf16.mxu0 0
  %340 = vmatmul.mubr.bf16.gmra.mrb[0].mxu0 %v281
  %v341 = vpop.f32.mrb[0].mxu0
  %v342 = vadd.f32 0.0, %v341
  %v343 = vpop.f32.mrb[0].mxu0
  %v344 = vpop.f32.mrb[0].mxu0
  %v345 = vadd.f32 0.0, %v344
  %v346 = vpop.f32.mrb[0].mxu0
  %347 = vdwg.mxu0
  %v356 = vunpack.c.l.b16 %v41
  %v357 = vunpack.c.l.b16 %v42
  %v358 = vunpack.c.l.b16 %v43
  %v359 = vunpack.c.l.b16 %v44
  %v360 = vunpack.c.l.b16 %v45
  %v361 = vunpack.c.l.b16 %v46
  %v362 = vunpack.c.l.b16 %v47
  %v363 = vunpack.c.l.b16 %v48
  %v364 = vpack.c.b16 %v357, %v356
  %v365 = vpack.c.b16 %v359, %v358
  %v366 = vpack.c.b16 %v361, %v360
  %v367 = vpack.c.b16 %v363, %v362
  %v376 = vunpack.c.l.b16 %v170
  %v377 = vunpack.c.l.b16 %v171
  %v378 = vunpack.c.l.b16 %v172
  %v379 = vunpack.c.l.b16 %v173
  %v380 = vunpack.c.l.b16 %v174
  %v381 = vunpack.c.l.b16 %v175
  %v382 = vunpack.c.l.b16 %v176
  %v383 = vunpack.c.l.b16 %v177
  %v384 = vpack.c.b16 %v377, %v376
  %v385 = vpack.c.b16 %v379, %v378
  %v386 = vpack.c.b16 %v381, %v380
  %v387 = vpack.c.b16 %v383, %v382
  %v393 = vsel %vm270, %v364, 0
  %v396 = vsel %vm270, %v365, 0
  %v399 = vsel %vm270, %v366, 0
  %v402 = vsel %vm270, %v367, 0
  %404 = vmatprep.subr.bf16.mxu0 0
  %405 = vmatpush1.bf16.msra.mxu0 %v384
  %406 = vmatprep.subr.bf16.mxu0 0
  %407 = vmatpush1.bf16.msra.mxu0 %v385
  %408 = vmatprep.subr.bf16.mxu0 0
  %409 = vmatpush1.bf16.msra.mxu0 %v386
  %410 = vmatprep.subr.bf16.mxu0 0
  %411 = vmatpush1.bf16.msra.mxu0 %v387
  %412 = vmatprep.subr.bf16.mxu0 0
  %413 = vmatpush1.bf16.msra.mxu0 0
  %414 = vmatprep.subr.bf16.mxu0 0
  %415 = vmatpush1.bf16.msra.mxu0 0
  %416 = vmatprep.subr.bf16.mxu0 0
  %417 = vmatpush1.bf16.msra.mxu0 0
  %418 = vmatprep.subr.bf16.mxu0 0
  %419 = vmatpush1.bf16.msra.mxu0 0
  %420 = vmatprep.subr.bf16.mxu0 0
  %421 = vmatpush1.bf16.msra.mxu0 0
  %422 = vmatprep.subr.bf16.mxu0 0
  %423 = vmatpush1.bf16.msra.mxu0 0
  %424 = vmatprep.subr.bf16.mxu0 0
  %425 = vmatpush1.bf16.msra.mxu0 0
  %426 = vmatprep.subr.bf16.mxu0 0
  %427 = vmatpush1.bf16.msra.mxu0 0
  %428 = vmatprep.subr.bf16.mxu0 0
  %429 = vmatpush1.bf16.msra.mxu0 0
  %430 = vmatprep.subr.bf16.mxu0 0
  %431 = vmatpush1.bf16.msra.mxu0 0
  %432 = vmatprep.subr.bf16.mxu0 0
  %433 = vmatpush1.bf16.msra.mxu0 0
  %434 = vmatprep.subr.bf16.mxu0 0
  %435 = vmatpush1.bf16.msra.mxu0 0
  %436 = vmatprep.mubr.bf16.mxu0 0
  %437 = vmatmul.mubr.bf16.gmra.mrb[0].mxu0 %v393
  %v438 = vpop.f32.mrb[0].mxu0
  %v439 = vadd.f32 0.0, %v438
  %v440 = vpop.f32.mrb[0].mxu0
  %v441 = vpop.f32.mrb[0].mxu0
  %v442 = vadd.f32 0.0, %v441
  %v443 = vpop.f32.mrb[0].mxu0
  %444 = vmatprep.mubr.bf16.mxu0 0
  %445 = vmatmul.mubr.bf16.gmra.mrb[0].mxu0 %v396
  %v446 = vpop.f32.mrb[0].mxu0
  %v447 = vadd.f32 0.0, %v446
  %v448 = vpop.f32.mrb[0].mxu0
  %v449 = vpop.f32.mrb[0].mxu0
  %v450 = vadd.f32 0.0, %v449
  %v451 = vpop.f32.mrb[0].mxu0
  %452 = vmatprep.mubr.bf16.mxu0 0
  %453 = vmatmul.mubr.bf16.gmra.mrb[0].mxu0 %v399
  %v454 = vpop.f32.mrb[0].mxu0
  %v455 = vadd.f32 0.0, %v454
  %v456 = vpop.f32.mrb[0].mxu0
  %v457 = vpop.f32.mrb[0].mxu0
  %v458 = vadd.f32 0.0, %v457
  %v459 = vpop.f32.mrb[0].mxu0
  %460 = vmatprep.mubr.bf16.mxu0 0
  %461 = vmatmul.mubr.bf16.gmra.mrb[0].mxu0 %v402
  %v462 = vpop.f32.mrb[0].mxu0
  %v463 = vadd.f32 0.0, %v462
  %v464 = vpop.f32.mrb[0].mxu0
  %v465 = vpop.f32.mrb[0].mxu0
  %v466 = vadd.f32 0.0, %v465
  %v467 = vpop.f32.mrb[0].mxu0
  %468 = vdwg.mxu0
  %v477 = vunpack.c.l.b16 %v49
  %v478 = vunpack.c.l.b16 %v50
  %v479 = vunpack.c.l.b16 %v51
  %v480 = vunpack.c.l.b16 %v52
  %v481 = vunpack.c.l.b16 %v53
  %v482 = vunpack.c.l.b16 %v54
  %v483 = vunpack.c.l.b16 %v55
  %v484 = vunpack.c.l.b16 %v56
  %v485 = vpack.c.b16 %v478, %v477
  %v486 = vpack.c.b16 %v480, %v479
  %v487 = vpack.c.b16 %v482, %v481
  %v488 = vpack.c.b16 %v484, %v483
  %v497 = vunpack.c.l.b16 %v178
  %v498 = vunpack.c.l.b16 %v179
  %v499 = vunpack.c.l.b16 %v180
  %v500 = vunpack.c.l.b16 %v181
  %v501 = vunpack.c.l.b16 %v182
  %v502 = vunpack.c.l.b16 %v183
  %v503 = vunpack.c.l.b16 %v184
  %v504 = vunpack.c.l.b16 %v185
  %v505 = vpack.c.b16 %v498, %v497
  %v506 = vpack.c.b16 %v500, %v499
  %v507 = vpack.c.b16 %v502, %v501
  %v508 = vpack.c.b16 %v504, %v503
  %v514 = vsel %vm270, %v485, 0
  %v517 = vsel %vm270, %v486, 0
  %v520 = vsel %vm270, %v487, 0
  %v523 = vsel %vm270, %v488, 0
  %525 = vmatprep.subr.bf16.mxu0 0
  %526 = vmatpush1.bf16.msra.mxu0 %v505
  %527 = vmatprep.subr.bf16.mxu0 0
  %528 = vmatpush1.bf16.msra.mxu0 %v506
  %529 = vmatprep.subr.bf16.mxu0 0
  %530 = vmatpush1.bf16.msra.mxu0 %v507
  %531 = vmatprep.subr.bf16.mxu0 0
  %532 = vmatpush1.bf16.msra.mxu0 %v508
  %533 = vmatprep.subr.bf16.mxu0 0
  %534 = vmatpush1.bf16.msra.mxu0 0
  %535 = vmatprep.subr.bf16.mxu0 0
  %536 = vmatpush1.bf16.msra.mxu0 0
  %537 = vmatprep.subr.bf16.mxu0 0
  %538 = vmatpush1.bf16.msra.mxu0 0
  %539 = vmatprep.subr.bf16.mxu0 0
  %540 = vmatpush1.bf16.msra.mxu0 0
  %541 = vmatprep.subr.bf16.mxu0 0
  %542 = vmatpush1.bf16.msra.mxu0 0
  %543 = vmatprep.subr.bf16.mxu0 0
  %544 = vmatpush1.bf16.msra.mxu0 0
  %545 = vmatprep.subr.bf16.mxu0 0
  %546 = vmatpush1.bf16.msra.mxu0 0
  %547 = vmatprep.subr.bf16.mxu0 0
  %548 = vmatpush1.bf16.msra.mxu0 0
  %549 = vmatprep.subr.bf16.mxu0 0
  %550 = vmatpush1.bf16.msra.mxu0 0
  %551 = vmatprep.subr.bf16.mxu0 0
  %552 = vmatpush1.bf16.msra.mxu0 0
  %553 = vmatprep.subr.bf16.mxu0 0
  %554 = vmatpush1.bf16.msra.mxu0 0
  %555 = vmatprep.subr.bf16.mxu0 0
  %556 = vmatpush1.bf16.msra.mxu0 0
  %557 = vmatprep.mubr.bf16.mxu0 0
  %558 = vmatmul.mubr.bf16.gmra.mrb[0].mxu0 %v514
  %v559 = vpop.f32.mrb[0].mxu0
  %v560 = vadd.f32 0.0, %v559
  %v561 = vpop.f32.mrb[0].mxu0
  %v562 = vpop.f32.mrb[0].mxu0
  %v563 = vadd.f32 0.0, %v562
  %v564 = vpop.f32.mrb[0].mxu0
  %565 = vmatprep.mubr.bf16.mxu0 0
  %566 = vmatmul.mubr.bf16.gmra.mrb[0].mxu0 %v517
  %v567 = vpop.f32.mrb[0].mxu0
  %v568 = vadd.f32 0.0, %v567
  %v569 = vpop.f32.mrb[0].mxu0
  %v570 = vpop.f32.mrb[0].mxu0
  %v571 = vadd.f32 0.0, %v570
  %v572 = vpop.f32.mrb[0].mxu0
  %573 = vmatprep.mubr.bf16.mxu0 0
  %574 = vmatmul.mubr.bf16.gmra.mrb[0].mxu0 %v520
  %v575 = vpop.f32.mrb[0].mxu0
  %v576 = vadd.f32 0.0, %v575
  %v577 = vpop.f32.mrb[0].mxu0
  %v578 = vpop.f32.mrb[0].mxu0
  %v579 = vadd.f32 0.0, %v578
  %v580 = vpop.f32.mrb[0].mxu0
  %581 = vmatprep.mubr.bf16.mxu0 0
  %582 = vmatmul.mubr.bf16.gmra.mrb[0].mxu0 %v523
  %v583 = vpop.f32.mrb[0].mxu0
  %v584 = vadd.f32 0.0, %v583
  %v585 = vpop.f32.mrb[0].mxu0
  %v586 = vpop.f32.mrb[0].mxu0
  %v587 = vadd.f32 0.0, %v586
  %v588 = vpop.f32.mrb[0].mxu0
  %589 = vdwg.mxu0
  %v598 = vunpack.c.l.b16 %v57
  %v599 = vunpack.c.l.b16 %v58
  %v600 = vunpack.c.l.b16 %v59
  %v601 = vunpack.c.l.b16 %v60
  %v602 = vunpack.c.l.b16 %v61
  %v603 = vunpack.c.l.b16 %v62
  %v604 = vunpack.c.l.b16 %v63
  %v605 = vunpack.c.l.b16 %v64
  %v606 = vpack.c.b16 %v599, %v598
  %v607 = vpack.c.b16 %v601, %v600
  %v608 = vpack.c.b16 %v603, %v602
  %v609 = vpack.c.b16 %v605, %v604
  %v618 = vunpack.c.l.b16 %v186
  %v619 = vunpack.c.l.b16 %v187
  %v620 = vunpack.c.l.b16 %v188
  %v621 = vunpack.c.l.b16 %v189
  %v622 = vunpack.c.l.b16 %v190
  %v623 = vunpack.c.l.b16 %v191
  %v624 = vunpack.c.l.b16 %v192
  %v625 = vunpack.c.l.b16 %v193
  %v626 = vpack.c.b16 %v619, %v618
  %v627 = vpack.c.b16 %v621, %v620
  %v628 = vpack.c.b16 %v623, %v622
  %v629 = vpack.c.b16 %v625, %v624
  %v635 = vsel %vm270, %v606, 0
  %v638 = vsel %vm270, %v607, 0
  %v641 = vsel %vm270, %v608, 0
  %v644 = vsel %vm270, %v609, 0
  %646 = vmatprep.subr.bf16.mxu0 0
  %647 = vmatpush1.bf16.msra.mxu0 %v626
  %648 = vmatprep.subr.bf16.mxu0 0
  %649 = vmatpush1.bf16.msra.mxu0 %v627
  %650 = vmatprep.subr.bf16.mxu0 0
  %651 = vmatpush1.bf16.msra.mxu0 %v628
  %652 = vmatprep.subr.bf16.mxu0 0
  %653 = vmatpush1.bf16.msra.mxu0 %v629
  %654 = vmatprep.subr.bf16.mxu0 0
  %655 = vmatpush1.bf16.msra.mxu0 0
  %656 = vmatprep.subr.bf16.mxu0 0
  %657 = vmatpush1.bf16.msra.mxu0 0
  %658 = vmatprep.subr.bf16.mxu0 0
  %659 = vmatpush1.bf16.msra.mxu0 0
  %660 = vmatprep.subr.bf16.mxu0 0
  %661 = vmatpush1.bf16.msra.mxu0 0
  %662 = vmatprep.subr.bf16.mxu0 0
  %663 = vmatpush1.bf16.msra.mxu0 0
  %664 = vmatprep.subr.bf16.mxu0 0
  %665 = vmatpush1.bf16.msra.mxu0 0
  %666 = vmatprep.subr.bf16.mxu0 0
  %667 = vmatpush1.bf16.msra.mxu0 0
  %668 = vmatprep.subr.bf16.mxu0 0
  %669 = vmatpush1.bf16.msra.mxu0 0
  %670 = vmatprep.subr.bf16.mxu0 0
  %671 = vmatpush1.bf16.msra.mxu0 0
  %672 = vmatprep.subr.bf16.mxu0 0
  %673 = vmatpush1.bf16.msra.mxu0 0
  %674 = vmatprep.subr.bf16.mxu0 0
  %675 = vmatpush1.bf16.msra.mxu0 0
  %676 = vmatprep.subr.bf16.mxu0 0
  %677 = vmatpush1.bf16.msra.mxu0 0
  %678 = vmatprep.mubr.bf16.mxu0 0
  %679 = vmatmul.mubr.bf16.gmra.mrb[0].mxu0 %v635
  %v680 = vpop.f32.mrb[0].mxu0
  %v681 = vadd.f32 0.0, %v680
  %v682 = vpop.f32.mrb[0].mxu0
  %v683 = vpop.f32.mrb[0].mxu0
  %v684 = vadd.f32 0.0, %v683
  %v685 = vpop.f32.mrb[0].mxu0
  %686 = vmatprep.mubr.bf16.mxu0 0
  %687 = vmatmul.mubr.bf16.gmra.mrb[0].mxu0 %v638
  %v688 = vpop.f32.mrb[0].mxu0
  %v689 = vadd.f32 0.0, %v688
  %v690 = vpop.f32.mrb[0].mxu0
  %v691 = vpop.f32.mrb[0].mxu0
  %v692 = vadd.f32 0.0, %v691
  %v693 = vpop.f32.mrb[0].mxu0
  %694 = vmatprep.mubr.bf16.mxu0 0
  %695 = vmatmul.mubr.bf16.gmra.mrb[0].mxu0 %v641
  %v696 = vpop.f32.mrb[0].mxu0
  %v697 = vadd.f32 0.0, %v696
  %v698 = vpop.f32.mrb[0].mxu0
  %v699 = vpop.f32.mrb[0].mxu0
  %v700 = vadd.f32 0.0, %v699
  %v701 = vpop.f32.mrb[0].mxu0
  %702 = vmatprep.mubr.bf16.mxu0 0
  %703 = vmatmul.mubr.bf16.gmra.mrb[0].mxu0 %v644
  %v704 = vpop.f32.mrb[0].mxu0
  %v705 = vadd.f32 0.0, %v704
  %v706 = vpop.f32.mrb[0].mxu0
  %v707 = vpop.f32.mrb[0].mxu0
  %v708 = vadd.f32 0.0, %v707
  %v709 = vpop.f32.mrb[0].mxu0
  %710 = vdwg.mxu0
  %v719 = vunpack.c.l.b16 %v65
  %v720 = vunpack.c.l.b16 %v66
  %v721 = vunpack.c.l.b16 %v67
  %v722 = vunpack.c.l.b16 %v68
  %v723 = vunpack.c.l.b16 %v69
  %v724 = vunpack.c.l.b16 %v70
  %v725 = vunpack.c.l.b16 %v71
  %v726 = vunpack.c.l.b16 %v72
  %v727 = vpack.c.b16 %v720, %v719
  %v728 = vpack.c.b16 %v722, %v721
  %v729 = vpack.c.b16 %v724, %v723
  %v730 = vpack.c.b16 %v726, %v725
  %v739 = vunpack.c.l.b16 %v194
  %v740 = vunpack.c.l.b16 %v195
  %v741 = vunpack.c.l.b16 %v196
  %v742 = vunpack.c.l.b16 %v197
  %v743 = vunpack.c.l.b16 %v198
  %v744 = vunpack.c.l.b16 %v199
  %v745 = vunpack.c.l.b16 %v200
  %v746 = vunpack.c.l.b16 %v201
  %v747 = vpack.c.b16 %v740, %v739
  %v748 = vpack.c.b16 %v742, %v741
  %v749 = vpack.c.b16 %v744, %v743
  %v750 = vpack.c.b16 %v746, %v745
  %v756 = vsel %vm270, %v727, 0
  %v759 = vsel %vm270, %v728, 0
  %v762 = vsel %vm270, %v729, 0
  %v765 = vsel %vm270, %v730, 0
  %767 = vmatprep.subr.bf16.mxu0 0
  %768 = vmatpush1.bf16.msra.mxu0 %v747
  %769 = vmatprep.subr.bf16.mxu0 0
  %770 = vmatpush1.bf16.msra.mxu0 %v748
  %771 = vmatprep.subr.bf16.mxu0 0
  %772 = vmatpush1.bf16.msra.mxu0 %v749
  %773 = vmatprep.subr.bf16.mxu0 0
  %774 = vmatpush1.bf16.msra.mxu0 %v750
  %775 = vmatprep.subr.bf16.mxu0 0
  %776 = vmatpush1.bf16.msra.mxu0 0
  %777 = vmatprep.subr.bf16.mxu0 0
  %778 = vmatpush1.bf16.msra.mxu0 0
  %779 = vmatprep.subr.bf16.mxu0 0
  %780 = vmatpush1.bf16.msra.mxu0 0
  %781 = vmatprep.subr.bf16.mxu0 0
  %782 = vmatpush1.bf16.msra.mxu0 0
  %783 = vmatprep.subr.bf16.mxu0 0
  %784 = vmatpush1.bf16.msra.mxu0 0
  %785 = vmatprep.subr.bf16.mxu0 0
  %786 = vmatpush1.bf16.msra.mxu0 0
  %787 = vmatprep.subr.bf16.mxu0 0
  %788 = vmatpush1.bf16.msra.mxu0 0
  %789 = vmatprep.subr.bf16.mxu0 0
  %790 = vmatpush1.bf16.msra.mxu0 0
  %791 = vmatprep.subr.bf16.mxu0 0
  %792 = vmatpush1.bf16.msra.mxu0 0
  %793 = vmatprep.subr.bf16.mxu0 0
  %794 = vmatpush1.bf16.msra.mxu0 0
  %795 = vmatprep.subr.bf16.mxu0 0
  %796 = vmatpush1.bf16.msra.mxu0 0
  %797 = vmatprep.subr.bf16.mxu0 0
  %798 = vmatpush1.bf16.msra.mxu0 0
  %799 = vmatprep.mubr.bf16.mxu0 0
  %800 = vmatmul.mubr.bf16.gmra.mrb[0].mxu0 %v756
  %v801 = vpop.f32.mrb[0].mxu0
  %v802 = vadd.f32 0.0, %v801
  %v803 = vpop.f32.mrb[0].mxu0
  %v804 = vpop.f32.mrb[0].mxu0
  %v805 = vadd.f32 0.0, %v804
  %v806 = vpop.f32.mrb[0].mxu0
  %807 = vmatprep.mubr.bf16.mxu0 0
  %808 = vmatmul.mubr.bf16.gmra.mrb[0].mxu0 %v759
  %v809 = vpop.f32.mrb[0].mxu0
  %v810 = vadd.f32 0.0, %v809
  %v811 = vpop.f32.mrb[0].mxu0
  %v812 = vpop.f32.mrb[0].mxu0
  %v813 = vadd.f32 0.0, %v812
  %v814 = vpop.f32.mrb[0].mxu0
  %815 = vmatprep.mubr.bf16.mxu0 0
  %816 = vmatmul.mubr.bf16.gmra.mrb[0].mxu0 %v762
  %v817 = vpop.f32.mrb[0].mxu0
  %v818 = vadd.f32 0.0, %v817
  %v819 = vpop.f32.mrb[0].mxu0
  %v820 = vpop.f32.mrb[0].mxu0
  %v821 = vadd.f32 0.0, %v820
  %v822 = vpop.f32.mrb[0].mxu0
  %823 = vmatprep.mubr.bf16.mxu0 0
  %824 = vmatmul.mubr.bf16.gmra.mrb[0].mxu0 %v765
  %v825 = vpop.f32.mrb[0].mxu0
  %v826 = vadd.f32 0.0, %v825
  %v827 = vpop.f32.mrb[0].mxu0
  %v828 = vpop.f32.mrb[0].mxu0
  %v829 = vadd.f32 0.0, %v828
  %v830 = vpop.f32.mrb[0].mxu0
  %831 = vdwg.mxu0
  %v840 = vunpack.c.l.b16 %v73
  %v841 = vunpack.c.l.b16 %v74
  %v842 = vunpack.c.l.b16 %v75
  %v843 = vunpack.c.l.b16 %v76
  %v844 = vunpack.c.l.b16 %v77
  %v845 = vunpack.c.l.b16 %v78
  %v846 = vunpack.c.l.b16 %v79
  %v847 = vunpack.c.l.b16 %v80
  %v848 = vpack.c.b16 %v841, %v840
  %v849 = vpack.c.b16 %v843, %v842
  %v850 = vpack.c.b16 %v845, %v844
  %v851 = vpack.c.b16 %v847, %v846
  %v860 = vunpack.c.l.b16 %v202
  %v861 = vunpack.c.l.b16 %v203
  %v862 = vunpack.c.l.b16 %v204
  %v863 = vunpack.c.l.b16 %v205
  %v864 = vunpack.c.l.b16 %v206
  %v865 = vunpack.c.l.b16 %v207
  %v866 = vunpack.c.l.b16 %v208
  %v867 = vunpack.c.l.b16 %v209
  %v868 = vpack.c.b16 %v861, %v860
  %v869 = vpack.c.b16 %v863, %v862
  %v870 = vpack.c.b16 %v865, %v864
  %v871 = vpack.c.b16 %v867, %v866
  %v877 = vsel %vm270, %v848, 0
  %v880 = vsel %vm270, %v849, 0
  %v883 = vsel %vm270, %v850, 0
  %v886 = vsel %vm270, %v851, 0
  %888 = vmatprep.subr.bf16.mxu0 0
  %889 = vmatpush1.bf16.msra.mxu0 %v868
  %890 = vmatprep.subr.bf16.mxu0 0
  %891 = vmatpush1.bf16.msra.mxu0 %v869
  %892 = vmatprep.subr.bf16.mxu0 0
  %893 = vmatpush1.bf16.msra.mxu0 %v870
  %894 = vmatprep.subr.bf16.mxu0 0
  %895 = vmatpush1.bf16.msra.mxu0 %v871
  %896 = vmatprep.subr.bf16.mxu0 0
  %897 = vmatpush1.bf16.msra.mxu0 0
  %898 = vmatprep.subr.bf16.mxu0 0
  %899 = vmatpush1.bf16.msra.mxu0 0
  %900 = vmatprep.subr.bf16.mxu0 0
  %901 = vmatpush1.bf16.msra.mxu0 0
  %902 = vmatprep.subr.bf16.mxu0 0
  %903 = vmatpush1.bf16.msra.mxu0 0
  %904 = vmatprep.subr.bf16.mxu0 0
  %905 = vmatpush1.bf16.msra.mxu0 0
  %906 = vmatprep.subr.bf16.mxu0 0
  %907 = vmatpush1.bf16.msra.mxu0 0
  %908 = vmatprep.subr.bf16.mxu0 0
  %909 = vmatpush1.bf16.msra.mxu0 0
  %910 = vmatprep.subr.bf16.mxu0 0
  %911 = vmatpush1.bf16.msra.mxu0 0
  %912 = vmatprep.subr.bf16.mxu0 0
  %913 = vmatpush1.bf16.msra.mxu0 0
  %914 = vmatprep.subr.bf16.mxu0 0
  %915 = vmatpush1.bf16.msra.mxu0 0
  %916 = vmatprep.subr.bf16.mxu0 0
  %917 = vmatpush1.bf16.msra.mxu0 0
  %918 = vmatprep.subr.bf16.mxu0 0
  %919 = vmatpush1.bf16.msra.mxu0 0
  %920 = vmatprep.mubr.bf16.mxu0 0
  %921 = vmatmul.mubr.bf16.gmra.mrb[0].mxu0 %v877
  %v922 = vpop.f32.mrb[0].mxu0
  %v923 = vadd.f32 0.0, %v922
  %v924 = vpop.f32.mrb[0].mxu0
  %v925 = vpop.f32.mrb[0].mxu0
  %v926 = vadd.f32 0.0, %v925
  %v927 = vpop.f32.mrb[0].mxu0
  %928 = vmatprep.mubr.bf16.mxu0 0
  %929 = vmatmul.mubr.bf16.gmra.mrb[0].mxu0 %v880
  %v930 = vpop.f32.mrb[0].mxu0
  %v931 = vadd.f32 0.0, %v930
  %v932 = vpop.f32.mrb[0].mxu0
  %v933 = vpop.f32.mrb[0].mxu0
  %v934 = vadd.f32 0.0, %v933
  %v935 = vpop.f32.mrb[0].mxu0
  %936 = vmatprep.mubr.bf16.mxu0 0
  %937 = vmatmul.mubr.bf16.gmra.mrb[0].mxu0 %v883
  %v938 = vpop.f32.mrb[0].mxu0
  %v939 = vadd.f32 0.0, %v938
  %v940 = vpop.f32.mrb[0].mxu0
  %v941 = vpop.f32.mrb[0].mxu0
  %v942 = vadd.f32 0.0, %v941
  %v943 = vpop.f32.mrb[0].mxu0
  %944 = vmatprep.mubr.bf16.mxu0 0
  %945 = vmatmul.mubr.bf16.gmra.mrb[0].mxu0 %v886
  %v946 = vpop.f32.mrb[0].mxu0
  %v947 = vadd.f32 0.0, %v946
  %v948 = vpop.f32.mrb[0].mxu0
  %v949 = vpop.f32.mrb[0].mxu0
  %v950 = vadd.f32 0.0, %v949
  %v951 = vpop.f32.mrb[0].mxu0
  %952 = vdwg.mxu0
  %v961 = vunpack.c.l.b16 %v81
  %v962 = vunpack.c.l.b16 %v82
  %v963 = vunpack.c.l.b16 %v83
  %v964 = vunpack.c.l.b16 %v84
  %v965 = vunpack.c.l.b16 %v85
  %v966 = vunpack.c.l.b16 %v86
  %v967 = vunpack.c.l.b16 %v87
  %v968 = vunpack.c.l.b16 %v88
  %v969 = vpack.c.b16 %v962, %v961
  %v970 = vpack.c.b16 %v964, %v963
  %v971 = vpack.c.b16 %v966, %v965
  %v972 = vpack.c.b16 %v968, %v967
  %v981 = vunpack.c.l.b16 %v210
  %v982 = vunpack.c.l.b16 %v211
  %v983 = vunpack.c.l.b16 %v212
  %v984 = vunpack.c.l.b16 %v213
  %v985 = vunpack.c.l.b16 %v214
  %v986 = vunpack.c.l.b16 %v215
  %v987 = vunpack.c.l.b16 %v216
  %v988 = vunpack.c.l.b16 %v217
  %v989 = vpack.c.b16 %v982, %v981
  %v990 = vpack.c.b16 %v984, %v983
  %v991 = vpack.c.b16 %v986, %v985
  %v992 = vpack.c.b16 %v988, %v987
  %v998 = vsel %vm270, %v969, 0
  %v1001 = vsel %vm270, %v970, 0
  %v1004 = vsel %vm270, %v971, 0
  %v1007 = vsel %vm270, %v972, 0
  %1009 = vmatprep.subr.bf16.mxu0 0
  %1010 = vmatpush1.bf16.msra.mxu0 %v989
  %1011 = vmatprep.subr.bf16.mxu0 0
  %1012 = vmatpush1.bf16.msra.mxu0 %v990
  %1013 = vmatprep.subr.bf16.mxu0 0
  %1014 = vmatpush1.bf16.msra.mxu0 %v991
  %1015 = vmatprep.subr.bf16.mxu0 0
  %1016 = vmatpush1.bf16.msra.mxu0 %v992
  %1017 = vmatprep.subr.bf16.mxu0 0
  %1018 = vmatpush1.bf16.msra.mxu0 0
  %1019 = vmatprep.subr.bf16.mxu0 0
  %1020 = vmatpush1.bf16.msra.mxu0 0
  %1021 = vmatprep.subr.bf16.mxu0 0
  %1022 = vmatpush1.bf16.msra.mxu0 0
  %1023 = vmatprep.subr.bf16.mxu0 0
  %1024 = vmatpush1.bf16.msra.mxu0 0
  %1025 = vmatprep.subr.bf16.mxu0 0
  %1026 = vmatpush1.bf16.msra.mxu0 0
  %1027 = vmatprep.subr.bf16.mxu0 0
  %1028 = vmatpush1.bf16.msra.mxu0 0
  %1029 = vmatprep.subr.bf16.mxu0 0
  %1030 = vmatpush1.bf16.msra.mxu0 0
  %1031 = vmatprep.subr.bf16.mxu0 0
  %1032 = vmatpush1.bf16.msra.mxu0 0
  %1033 = vmatprep.subr.bf16.mxu0 0
  %1034 = vmatpush1.bf16.msra.mxu0 0
  %1035 = vmatprep.subr.bf16.mxu0 0
  %1036 = vmatpush1.bf16.msra.mxu0 0
  %1037 = vmatprep.subr.bf16.mxu0 0
  %1038 = vmatpush1.bf16.msra.mxu0 0
  %1039 = vmatprep.subr.bf16.mxu0 0
  %1040 = vmatpush1.bf16.msra.mxu0 0
  %1041 = vmatprep.mubr.bf16.mxu0 0
  %1042 = vmatmul.mubr.bf16.gmra.mrb[0].mxu0 %v998
  %v1043 = vpop.f32.mrb[0].mxu0
  %v1044 = vadd.f32 0.0, %v1043
  %v1045 = vpop.f32.mrb[0].mxu0
  %v1046 = vpop.f32.mrb[0].mxu0
  %v1047 = vadd.f32 0.0, %v1046
  %v1048 = vpop.f32.mrb[0].mxu0
  %1049 = vmatprep.mubr.bf16.mxu0 0
  %1050 = vmatmul.mubr.bf16.gmra.mrb[0].mxu0 %v1001
  %v1051 = vpop.f32.mrb[0].mxu0
  %v1052 = vadd.f32 0.0, %v1051
  %v1053 = vpop.f32.mrb[0].mxu0
  %v1054 = vpop.f32.mrb[0].mxu0
  %v1055 = vadd.f32 0.0, %v1054
  %v1056 = vpop.f32.mrb[0].mxu0
  %1057 = vmatprep.mubr.bf16.mxu0 0
  %1058 = vmatmul.mubr.bf16.gmra.mrb[0].mxu0 %v1004
  %v1059 = vpop.f32.mrb[0].mxu0
  %v1060 = vadd.f32 0.0, %v1059
  %v1061 = vpop.f32.mrb[0].mxu0
  %v1062 = vpop.f32.mrb[0].mxu0
  %v1063 = vadd.f32 0.0, %v1062
  %v1064 = vpop.f32.mrb[0].mxu0
  %1065 = vmatprep.mubr.bf16.mxu0 0
  %1066 = vmatmul.mubr.bf16.gmra.mrb[0].mxu0 %v1007
  %v1067 = vpop.f32.mrb[0].mxu0
  %v1068 = vadd.f32 0.0, %v1067
  %v1069 = vpop.f32.mrb[0].mxu0
  %v1070 = vpop.f32.mrb[0].mxu0
  %v1071 = vadd.f32 0.0, %v1070
  %v1072 = vpop.f32.mrb[0].mxu0
  %1073 = vdwg.mxu0
  %v1082 = vunpack.c.l.b16 %v89
  %v1083 = vunpack.c.l.b16 %v90
  %v1084 = vunpack.c.l.b16 %v91
  %v1085 = vunpack.c.l.b16 %v92
  %v1086 = vunpack.c.l.b16 %v93
  %v1087 = vunpack.c.l.b16 %v94
  %v1088 = vunpack.c.l.b16 %v95
  %v1089 = vunpack.c.l.b16 %v96
  %v1090 = vpack.c.b16 %v1083, %v1082
  %v1091 = vpack.c.b16 %v1085, %v1084
  %v1092 = vpack.c.b16 %v1087, %v1086
  %v1093 = vpack.c.b16 %v1089, %v1088
  %v1102 = vunpack.c.l.b16 %v218
  %v1103 = vunpack.c.l.b16 %v219
  %v1104 = vunpack.c.l.b16 %v220
  %v1105 = vunpack.c.l.b16 %v221
  %v1106 = vunpack.c.l.b16 %v222
  %v1107 = vunpack.c.l.b16 %v223
  %v1108 = vunpack.c.l.b16 %v224
  %v1109 = vunpack.c.l.b16 %v225
  %v1110 = vpack.c.b16 %v1103, %v1102
  %v1111 = vpack.c.b16 %v1105, %v1104
  %v1112 = vpack.c.b16 %v1107, %v1106
  %v1113 = vpack.c.b16 %v1109, %v1108
  %v1119 = vsel %vm270, %v1090, 0
  %v1122 = vsel %vm270, %v1091, 0
  %v1125 = vsel %vm270, %v1092, 0
  %v1128 = vsel %vm270, %v1093, 0
  %1130 = vmatprep.subr.bf16.mxu0 0
  %1131 = vmatpush1.bf16.msra.mxu0 %v1110
  %1132 = vmatprep.subr.bf16.mxu0 0
  %1133 = vmatpush1.bf16.msra.mxu0 %v1111
  %1134 = vmatprep.subr.bf16.mxu0 0
  %1135 = vmatpush1.bf16.msra.mxu0 %v1112
  %1136 = vmatprep.subr.bf16.mxu0 0
  %1137 = vmatpush1.bf16.msra.mxu0 %v1113
  %1138 = vmatprep.subr.bf16.mxu0 0
  %1139 = vmatpush1.bf16.msra.mxu0 0
  %1140 = vmatprep.subr.bf16.mxu0 0
  %1141 = vmatpush1.bf16.msra.mxu0 0
  %1142 = vmatprep.subr.bf16.mxu0 0
  %1143 = vmatpush1.bf16.msra.mxu0 0
  %1144 = vmatprep.subr.bf16.mxu0 0
  %1145 = vmatpush1.bf16.msra.mxu0 0
  %1146 = vmatprep.subr.bf16.mxu0 0
  %1147 = vmatpush1.bf16.msra.mxu0 0
  %1148 = vmatprep.subr.bf16.mxu0 0
  %1149 = vmatpush1.bf16.msra.mxu0 0
  %1150 = vmatprep.subr.bf16.mxu0 0
  %1151 = vmatpush1.bf16.msra.mxu0 0
  %1152 = vmatprep.subr.bf16.mxu0 0
  %1153 = vmatpush1.bf16.msra.mxu0 0
  %1154 = vmatprep.subr.bf16.mxu0 0
  %1155 = vmatpush1.bf16.msra.mxu0 0
  %1156 = vmatprep.subr.bf16.mxu0 0
  %1157 = vmatpush1.bf16.msra.mxu0 0
  %1158 = vmatprep.subr.bf16.mxu0 0
  %1159 = vmatpush1.bf16.msra.mxu0 0
  %1160 = vmatprep.subr.bf16.mxu0 0
  %1161 = vmatpush1.bf16.msra.mxu0 0
  %1162 = vmatprep.mubr.bf16.mxu0 0
  %1163 = vmatmul.mubr.bf16.gmra.mrb[0].mxu0 %v1119
  %v1164 = vpop.f32.mrb[0].mxu0
  %v1165 = vadd.f32 0.0, %v1164
  %v1166 = vpop.f32.mrb[0].mxu0
  %v1167 = vpop.f32.mrb[0].mxu0
  %v1168 = vadd.f32 0.0, %v1167
  %v1169 = vpop.f32.mrb[0].mxu0
  %1170 = vmatprep.mubr.bf16.mxu0 0
  %1171 = vmatmul.mubr.bf16.gmra.mrb[0].mxu0 %v1122
  %v1172 = vpop.f32.mrb[0].mxu0
  %v1173 = vadd.f32 0.0, %v1172
  %v1174 = vpop.f32.mrb[0].mxu0
  %v1175 = vpop.f32.mrb[0].mxu0
  %v1176 = vadd.f32 0.0, %v1175
  %v1177 = vpop.f32.mrb[0].mxu0
  %1178 = vmatprep.mubr.bf16.mxu0 0
  %1179 = vmatmul.mubr.bf16.gmra.mrb[0].mxu0 %v1125
  %v1180 = vpop.f32.mrb[0].mxu0
  %v1181 = vadd.f32 0.0, %v1180
  %v1182 = vpop.f32.mrb[0].mxu0
  %v1183 = vpop.f32.mrb[0].mxu0
  %v1184 = vadd.f32 0.0, %v1183
  %v1185 = vpop.f32.mrb[0].mxu0
  %1186 = vmatprep.mubr.bf16.mxu0 0
  %1187 = vmatmul.mubr.bf16.gmra.mrb[0].mxu0 %v1128
  %v1188 = vpop.f32.mrb[0].mxu0
  %v1189 = vadd.f32 0.0, %v1188
  %v1190 = vpop.f32.mrb[0].mxu0
  %v1191 = vpop.f32.mrb[0].mxu0
  %v1192 = vadd.f32 0.0, %v1191
  %v1193 = vpop.f32.mrb[0].mxu0
  %1194 = vdwg.mxu0
  %v1195 = vld [vmem:[%s2] sm:$0x1]
  %v1197 = vlaneseq
  %v1198 = vshrl.u32 %v1197, 7
  %v1199 = vsub.s32 0, %v1198
  %v1200 = vrot.slane %v1195, %v1199
  %v1202 = vadd.f32 %v318, %v1200
  %v1203 = vadd.f32 %v321, %v1200
  %v1204 = vadd.f32 %v326, %v1200
  %v1205 = vadd.f32 %v329, %v1200
  %v1206 = vadd.f32 %v334, %v1200
  %v1207 = vadd.f32 %v337, %v1200
  %v1208 = vadd.f32 %v342, %v1200
  %v1209 = vadd.f32 %v345, %v1200
  %v1210 = vadd.f32 %v439, %v1200
  %v1211 = vadd.f32 %v442, %v1200
  %v1212 = vadd.f32 %v447, %v1200
  %v1213 = vadd.f32 %v450, %v1200
  %v1214 = vadd.f32 %v455, %v1200
  %v1215 = vadd.f32 %v458, %v1200
  %v1216 = vadd.f32 %v463, %v1200
  %v1217 = vadd.f32 %v466, %v1200
  %v1218 = vadd.f32 %v560, %v1200
  %v1219 = vadd.f32 %v563, %v1200
  %v1220 = vadd.f32 %v568, %v1200
  %v1221 = vadd.f32 %v571, %v1200
  %v1222 = vadd.f32 %v576, %v1200
  %v1223 = vadd.f32 %v579, %v1200
  %v1224 = vadd.f32 %v584, %v1200
  %v1225 = vadd.f32 %v587, %v1200
  %v1226 = vadd.f32 %v681, %v1200
  %v1227 = vadd.f32 %v684, %v1200
  %v1228 = vadd.f32 %v689, %v1200
  %v1229 = vadd.f32 %v692, %v1200
  %v1230 = vadd.f32 %v697, %v1200
  %v1231 = vadd.f32 %v700, %v1200
  %v1232 = vadd.f32 %v705, %v1200
  %v1233 = vadd.f32 %v708, %v1200
  %v1234 = vadd.f32 %v802, %v1200
  %v1235 = vadd.f32 %v805, %v1200
  %v1236 = vadd.f32 %v810, %v1200
  %v1237 = vadd.f32 %v813, %v1200
  %v1238 = vadd.f32 %v818, %v1200
  %v1239 = vadd.f32 %v821, %v1200
  %v1240 = vadd.f32 %v826, %v1200
  %v1241 = vadd.f32 %v829, %v1200
  %v1242 = vadd.f32 %v923, %v1200
  %v1243 = vadd.f32 %v926, %v1200
  %v1244 = vadd.f32 %v931, %v1200
  %v1245 = vadd.f32 %v934, %v1200
  %v1246 = vadd.f32 %v939, %v1200
  %v1247 = vadd.f32 %v942, %v1200
  %v1248 = vadd.f32 %v947, %v1200
  %v1249 = vadd.f32 %v950, %v1200
  %v1250 = vadd.f32 %v1044, %v1200
  %v1251 = vadd.f32 %v1047, %v1200
  %v1252 = vadd.f32 %v1052, %v1200
  %v1253 = vadd.f32 %v1055, %v1200
  %v1254 = vadd.f32 %v1060, %v1200
  %v1255 = vadd.f32 %v1063, %v1200
  %v1256 = vadd.f32 %v1068, %v1200
  %v1257 = vadd.f32 %v1071, %v1200
  %v1258 = vadd.f32 %v1165, %v1200
  %v1259 = vadd.f32 %v1168, %v1200
  %v1260 = vadd.f32 %v1173, %v1200
  %v1261 = vadd.f32 %v1176, %v1200
  %v1262 = vadd.f32 %v1181, %v1200
  %v1263 = vadd.f32 %v1184, %v1200
  %v1264 = vadd.f32 %v1189, %v1200
  %v1265 = vadd.f32 %v1192, %v1200
  %v1266 = vmax.f32 %v1202, 0.0
  %v1267 = vmax.f32 %v1203, 0.0
  %v1268 = vmax.f32 %v1204, 0.0
  %v1269 = vmax.f32 %v1205, 0.0
  %v1270 = vmax.f32 %v1206, 0.0
  %v1271 = vmax.f32 %v1207, 0.0
  %v1272 = vmax.f32 %v1208, 0.0
  %v1273 = vmax.f32 %v1209, 0.0
  %v1274 = vmax.f32 %v1210, 0.0
  %v1275 = vmax.f32 %v1211, 0.0
  %v1276 = vmax.f32 %v1212, 0.0
  %v1277 = vmax.f32 %v1213, 0.0
  %v1278 = vmax.f32 %v1214, 0.0
  %v1279 = vmax.f32 %v1215, 0.0
  %v1280 = vmax.f32 %v1216, 0.0
  %v1281 = vmax.f32 %v1217, 0.0
  %v1282 = vmax.f32 %v1218, 0.0
  %v1283 = vmax.f32 %v1219, 0.0
  %v1284 = vmax.f32 %v1220, 0.0
  %v1285 = vmax.f32 %v1221, 0.0
  %v1286 = vmax.f32 %v1222, 0.0
  %v1287 = vmax.f32 %v1223, 0.0
  %v1288 = vmax.f32 %v1224, 0.0
  %v1289 = vmax.f32 %v1225, 0.0
  %v1290 = vmax.f32 %v1226, 0.0
  %v1291 = vmax.f32 %v1227, 0.0
  %v1292 = vmax.f32 %v1228, 0.0
  %v1293 = vmax.f32 %v1229, 0.0
  %v1294 = vmax.f32 %v1230, 0.0
  %v1295 = vmax.f32 %v1231, 0.0
  %v1296 = vmax.f32 %v1232, 0.0
  %v1297 = vmax.f32 %v1233, 0.0
  %v1298 = vmax.f32 %v1234, 0.0
  %v1299 = vmax.f32 %v1235, 0.0
  %v1300 = vmax.f32 %v1236, 0.0
  %v1301 = vmax.f32 %v1237, 0.0
  %v1302 = vmax.f32 %v1238, 0.0
  %v1303 = vmax.f32 %v1239, 0.0
  %v1304 = vmax.f32 %v1240, 0.0
  %v1305 = vmax.f32 %v1241, 0.0
  %v1306 = vmax.f32 %v1242, 0.0
  %v1307 = vmax.f32 %v1243, 0.0
  %v1308 = vmax.f32 %v1244, 0.0
  %v1309 = vmax.f32 %v1245, 0.0
  %v1310 = vmax.f32 %v1246, 0.0
  %v1311 = vmax.f32 %v1247, 0.0
  %v1312 = vmax.f32 %v1248, 0.0
  %v1313 = vmax.f32 %v1249, 0.0
  %v1314 = vmax.f32 %v1250, 0.0
  %v1315 = vmax.f32 %v1251, 0.0
  %v1316 = vmax.f32 %v1252, 0.0
  %v1317 = vmax.f32 %v1253, 0.0
  %v1318 = vmax.f32 %v1254, 0.0
  %v1319 = vmax.f32 %v1255, 0.0
  %v1320 = vmax.f32 %v1256, 0.0
  %v1321 = vmax.f32 %v1257, 0.0
  %v1322 = vmax.f32 %v1258, 0.0
  %v1323 = vmax.f32 %v1259, 0.0
  %v1324 = vmax.f32 %v1260, 0.0
  %v1325 = vmax.f32 %v1261, 0.0
  %v1326 = vmax.f32 %v1262, 0.0
  %v1327 = vmax.f32 %v1263, 0.0
  %v1328 = vmax.f32 %v1264, 0.0
  %v1329 = vmax.f32 %v1265, 0.0
  %v1330 = vpack.c.bf16 %v1267, %v1266
  %v1331 = vpack.c.bf16 %v1269, %v1268
  %v1332 = vpack.c.bf16 %v1271, %v1270
  %v1333 = vpack.c.bf16 %v1273, %v1272
  %v1334 = vpack.c.bf16 %v1275, %v1274
  %v1335 = vpack.c.bf16 %v1277, %v1276
  %v1336 = vpack.c.bf16 %v1279, %v1278
  %v1337 = vpack.c.bf16 %v1281, %v1280
  %v1338 = vpack.c.bf16 %v1283, %v1282
  %v1339 = vpack.c.bf16 %v1285, %v1284
  %v1340 = vpack.c.bf16 %v1287, %v1286
  %v1341 = vpack.c.bf16 %v1289, %v1288
  %v1342 = vpack.c.bf16 %v1291, %v1290
  %v1343 = vpack.c.bf16 %v1293, %v1292
  %v1344 = vpack.c.bf16 %v1295, %v1294
  %v1345 = vpack.c.bf16 %v1297, %v1296
  %v1346 = vpack.c.bf16 %v1299, %v1298
  %v1347 = vpack.c.bf16 %v1301, %v1300
  %v1348 = vpack.c.bf16 %v1303, %v1302
  %v1349 = vpack.c.bf16 %v1305, %v1304
  %v1350 = vpack.c.bf16 %v1307, %v1306
  %v1351 = vpack.c.bf16 %v1309, %v1308
  %v1352 = vpack.c.bf16 %v1311, %v1310
  %v1353 = vpack.c.bf16 %v1313, %v1312
  %v1354 = vpack.c.bf16 %v1315, %v1314
  %v1355 = vpack.c.bf16 %v1317, %v1316
  %v1356 = vpack.c.bf16 %v1319, %v1318
  %v1357 = vpack.c.bf16 %v1321, %v1320
  %v1358 = vpack.c.bf16 %v1323, %v1322
  %v1359 = vpack.c.bf16 %v1325, %v1324
  %v1360 = vpack.c.bf16 %v1327, %v1326
  %v1361 = vpack.c.bf16 %v1329, %v1328
  %v1370 = vunpack.c.l.b16 %v98
  %v1371 = vunpack.c.l.b16 %v99
  %v1372 = vunpack.c.l.b16 %v100
  %v1373 = vunpack.c.l.b16 %v101
  %v1374 = vunpack.c.l.b16 %v102
  %v1375 = vunpack.c.l.b16 %v103
  %v1376 = vunpack.c.l.b16 %v104
  %v1377 = vunpack.c.l.b16 %v105
  %v1378 = vpack.c.b16 %v1371, %v1370
  %v1379 = vpack.c.b16 %v1373, %v1372
  %v1380 = vpack.c.b16 %v1375, %v1374
  %v1381 = vpack.c.b16 %v1377, %v1376
  %v1383 = vsel %vm270, %v1378, 0
  %v1386 = vsel %vm270, %v1379, 0
  %v1389 = vsel %vm270, %v1380, 0
  %v1392 = vsel %vm270, %v1381, 0
  %1394 = vmatprep.subr.bf16.mxu0 0
  %1395 = vmatpush1.bf16.msra.mxu0 %v1330
  %1396 = vmatprep.subr.bf16.mxu0 0
  %1397 = vmatpush1.bf16.msra.mxu0 %v1331
  %1398 = vmatprep.subr.bf16.mxu0 0
  %1399 = vmatpush1.bf16.msra.mxu0 %v1332
  %1400 = vmatprep.subr.bf16.mxu0 0
  %1401 = vmatpush1.bf16.msra.mxu0 %v1333
  %1402 = vmatprep.subr.bf16.mxu0 0
  %1403 = vmatpush1.bf16.msra.mxu0 0
  %1404 = vmatprep.subr.bf16.mxu0 0
  %1405 = vmatpush1.bf16.msra.mxu0 0
  %1406 = vmatprep.subr.bf16.mxu0 0
  %1407 = vmatpush1.bf16.msra.mxu0 0
  %1408 = vmatprep.subr.bf16.mxu0 0
  %1409 = vmatpush1.bf16.msra.mxu0 0
  %1410 = vmatprep.subr.bf16.mxu0 0
  %1411 = vmatpush1.bf16.msra.mxu0 0
  %1412 = vmatprep.subr.bf16.mxu0 0
  %1413 = vmatpush1.bf16.msra.mxu0 0
  %1414 = vmatprep.subr.bf16.mxu0 0
  %1415 = vmatpush1.bf16.msra.mxu0 0
  %1416 = vmatprep.subr.bf16.mxu0 0
  %1417 = vmatpush1.bf16.msra.mxu0 0
  %1418 = vmatprep.subr.bf16.mxu0 0
  %1419 = vmatpush1.bf16.msra.mxu0 0
  %1420 = vmatprep.subr.bf16.mxu0 0
  %1421 = vmatpush1.bf16.msra.mxu0 0
  %1422 = vmatprep.subr.bf16.mxu0 0
  %1423 = vmatpush1.bf16.msra.mxu0 0
  %1424 = vmatprep.subr.bf16.mxu0 0
  %1425 = vmatpush1.bf16.msra.mxu0 0
  %1426 = vmatprep.mubr.bf16.mxu0 0
  %1427 = vmatmul.mubr.bf16.gmra.mrb[0].mxu0 %v1383
  %v1428 = vpop.f32.mrb[0].mxu0
  %v1429 = vadd.f32 0.0, %v1428
  %v1430 = vpop.f32.mrb[0].mxu0
  %v1431 = vpop.f32.mrb[0].mxu0
  %v1432 = vadd.f32 0.0, %v1431
  %v1433 = vpop.f32.mrb[0].mxu0
  %1434 = vmatprep.mubr.bf16.mxu0 0
  %1435 = vmatmul.mubr.bf16.gmra.mrb[0].mxu0 %v1386
  %v1436 = vpop.f32.mrb[0].mxu0
  %v1437 = vadd.f32 0.0, %v1436
  %v1438 = vpop.f32.mrb[0].mxu0
  %v1439 = vpop.f32.mrb[0].mxu0
  %v1440 = vadd.f32 0.0, %v1439
  %v1441 = vpop.f32.mrb[0].mxu0
  %1442 = vmatprep.mubr.bf16.mxu0 0
  %1443 = vmatmul.mubr.bf16.gmra.mrb[0].mxu0 %v1389
  %v1444 = vpop.f32.mrb[0].mxu0
  %v1445 = vadd.f32 0.0, %v1444
  %v1446 = vpop.f32.mrb[0].mxu0
  %v1447 = vpop.f32.mrb[0].mxu0
  %v1448 = vadd.f32 0.0, %v1447
  %v1449 = vpop.f32.mrb[0].mxu0
  %1450 = vmatprep.mubr.bf16.mxu0 0
  %1451 = vmatmul.mubr.bf16.gmra.mrb[0].mxu0 %v1392
  %v1452 = vpop.f32.mrb[0].mxu0
  %v1453 = vadd.f32 0.0, %v1452
  %v1454 = vpop.f32.mrb[0].mxu0
  %v1455 = vpop.f32.mrb[0].mxu0
  %v1456 = vadd.f32 0.0, %v1455
  %v1457 = vpop.f32.mrb[0].mxu0
  %1458 = vdwg.mxu0
  %v1467 = vunpack.c.l.b16 %v106
  %v1468 = vunpack.c.l.b16 %v107
  %v1469 = vunpack.c.l.b16 %v108
  %v1470 = vunpack.c.l.b16 %v109
  %v1471 = vunpack.c.l.b16 %v110
  %v1472 = vunpack.c.l.b16 %v111
  %v1473 = vunpack.c.l.b16 %v112
  %v1474 = vunpack.c.l.b16 %v113
  %v1475 = vpack.c.b16 %v1468, %v1467
  %v1476 = vpack.c.b16 %v1470, %v1469
  %v1477 = vpack.c.b16 %v1472, %v1471
  %v1478 = vpack.c.b16 %v1474, %v1473
  %v1480 = vsel %vm270, %v1475, 0
  %v1483 = vsel %vm270, %v1476, 0
  %v1486 = vsel %vm270, %v1477, 0
  %v1489 = vsel %vm270, %v1478, 0
  %1491 = vmatprep.subr.bf16.mxu0 0
  %1492 = vmatpush1.bf16.msra.mxu0 %v1334
  %1493 = vmatprep.subr.bf16.mxu0 0
  %1494 = vmatpush1.bf16.msra.mxu0 %v1335
  %1495 = vmatprep.subr.bf16.mxu0 0
  %1496 = vmatpush1.bf16.msra.mxu0 %v1336
  %1497 = vmatprep.subr.bf16.mxu0 0
  %1498 = vmatpush1.bf16.msra.mxu0 %v1337
  %1499 = vmatprep.subr.bf16.mxu0 0
  %1500 = vmatpush1.bf16.msra.mxu0 0
  %1501 = vmatprep.subr.bf16.mxu0 0
  %1502 = vmatpush1.bf16.msra.mxu0 0
  %1503 = vmatprep.subr.bf16.mxu0 0
  %1504 = vmatpush1.bf16.msra.mxu0 0
  %1505 = vmatprep.subr.bf16.mxu0 0
  %1506 = vmatpush1.bf16.msra.mxu0 0
  %1507 = vmatprep.subr.bf16.mxu0 0
  %1508 = vmatpush1.bf16.msra.mxu0 0
  %1509 = vmatprep.subr.bf16.mxu0 0
  %1510 = vmatpush1.bf16.msra.mxu0 0
  %1511 = vmatprep.subr.bf16.mxu0 0
  %1512 = vmatpush1.bf16.msra.mxu0 0
  %1513 = vmatprep.subr.bf16.mxu0 0
  %1514 = vmatpush1.bf16.msra.mxu0 0
  %1515 = vmatprep.subr.bf16.mxu0 0
  %1516 = vmatpush1.bf16.msra.mxu0 0
  %1517 = vmatprep.subr.bf16.mxu0 0
  %1518 = vmatpush1.bf16.msra.mxu0 0
  %1519 = vmatprep.subr.bf16.mxu0 0
  %1520 = vmatpush1.bf16.msra.mxu0 0
  %1521 = vmatprep.subr.bf16.mxu0 0
  %1522 = vmatpush1.bf16.msra.mxu0 0
  %1523 = vmatprep.mubr.bf16.mxu0 0
  %1524 = vmatmul.mubr.bf16.gmra.mrb[0].mxu0 %v1480
  %v1525 = vpop.f32.mrb[0].mxu0
  %v1526 = vadd.f32 0.0, %v1525
  %v1527 = vpop.f32.mrb[0].mxu0
  %v1528 = vpop.f32.mrb[0].mxu0
  %v1529 = vadd.f32 0.0, %v1528
  %v1530 = vpop.f32.mrb[0].mxu0
  %1531 = vmatprep.mubr.bf16.mxu0 0
  %1532 = vmatmul.mubr.bf16.gmra.mrb[0].mxu0 %v1483
  %v1533 = vpop.f32.mrb[0].mxu0
  %v1534 = vadd.f32 0.0, %v1533
  %v1535 = vpop.f32.mrb[0].mxu0
  %v1536 = vpop.f32.mrb[0].mxu0
  %v1537 = vadd.f32 0.0, %v1536
  %v1538 = vpop.f32.mrb[0].mxu0
  %1539 = vmatprep.mubr.bf16.mxu0 0
  %1540 = vmatmul.mubr.bf16.gmra.mrb[0].mxu0 %v1486
  %v1541 = vpop.f32.mrb[0].mxu0
  %v1542 = vadd.f32 0.0, %v1541
  %v1543 = vpop.f32.mrb[0].mxu0
  %v1544 = vpop.f32.mrb[0].mxu0
  %v1545 = vadd.f32 0.0, %v1544
  %v1546 = vpop.f32.mrb[0].mxu0
  %1547 = vmatprep.mubr.bf16.mxu0 0
  %1548 = vmatmul.mubr.bf16.gmra.mrb[0].mxu0 %v1489
  %v1549 = vpop.f32.mrb[0].mxu0
  %v1550 = vadd.f32 0.0, %v1549
  %v1551 = vpop.f32.mrb[0].mxu0
  %v1552 = vpop.f32.mrb[0].mxu0
  %v1553 = vadd.f32 0.0, %v1552
  %v1554 = vpop.f32.mrb[0].mxu0
  %1555 = vdwg.mxu0
  %v1564 = vunpack.c.l.b16 %v114
  %v1565 = vunpack.c.l.b16 %v115
  %v1566 = vunpack.c.l.b16 %v116
  %v1567 = vunpack.c.l.b16 %v117
  %v1568 = vunpack.c.l.b16 %v118
  %v1569 = vunpack.c.l.b16 %v119
  %v1570 = vunpack.c.l.b16 %v120
  %v1571 = vunpack.c.l.b16 %v121
  %v1572 = vpack.c.b16 %v1565, %v1564
  %v1573 = vpack.c.b16 %v1567, %v1566
  %v1574 = vpack.c.b16 %v1569, %v1568
  %v1575 = vpack.c.b16 %v1571, %v1570
  %v1577 = vsel %vm270, %v1572, 0
  %v1580 = vsel %vm270, %v1573, 0
  %v1583 = vsel %vm270, %v1574, 0
  %v1586 = vsel %vm270, %v1575, 0
  %1588 = vmatprep.subr.bf16.mxu0 0
  %1589 = vmatpush1.bf16.msra.mxu0 %v1338
  %1590 = vmatprep.subr.bf16.mxu0 0
  %1591 = vmatpush1.bf16.msra.mxu0 %v1339
  %1592 = vmatprep.subr.bf16.mxu0 0
  %1593 = vmatpush1.bf16.msra.mxu0 %v1340
  %1594 = vmatprep.subr.bf16.mxu0 0
  %1595 = vmatpush1.bf16.msra.mxu0 %v1341
  %1596 = vmatprep.subr.bf16.mxu0 0
  %1597 = vmatpush1.bf16.msra.mxu0 0
  %1598 = vmatprep.subr.bf16.mxu0 0
  %1599 = vmatpush1.bf16.msra.mxu0 0
  %1600 = vmatprep.subr.bf16.mxu0 0
  %1601 = vmatpush1.bf16.msra.mxu0 0
  %1602 = vmatprep.subr.bf16.mxu0 0
  %1603 = vmatpush1.bf16.msra.mxu0 0
  %1604 = vmatprep.subr.bf16.mxu0 0
  %1605 = vmatpush1.bf16.msra.mxu0 0
  %1606 = vmatprep.subr.bf16.mxu0 0
  %1607 = vmatpush1.bf16.msra.mxu0 0
  %1608 = vmatprep.subr.bf16.mxu0 0
  %1609 = vmatpush1.bf16.msra.mxu0 0
  %1610 = vmatprep.subr.bf16.mxu0 0
  %1611 = vmatpush1.bf16.msra.mxu0 0
  %1612 = vmatprep.subr.bf16.mxu0 0
  %1613 = vmatpush1.bf16.msra.mxu0 0
  %1614 = vmatprep.subr.bf16.mxu0 0
  %1615 = vmatpush1.bf16.msra.mxu0 0
  %1616 = vmatprep.subr.bf16.mxu0 0
  %1617 = vmatpush1.bf16.msra.mxu0 0
  %1618 = vmatprep.subr.bf16.mxu0 0
  %1619 = vmatpush1.bf16.msra.mxu0 0
  %1620 = vmatprep.mubr.bf16.mxu0 0
  %1621 = vmatmul.mubr.bf16.gmra.mrb[0].mxu0 %v1577
  %v1622 = vpop.f32.mrb[0].mxu0
  %v1623 = vadd.f32 0.0, %v1622
  %v1624 = vpop.f32.mrb[0].mxu0
  %v1625 = vpop.f32.mrb[0].mxu0
  %v1626 = vadd.f32 0.0, %v1625
  %v1627 = vpop.f32.mrb[0].mxu0
  %1628 = vmatprep.mubr.bf16.mxu0 0
  %1629 = vmatmul.mubr.bf16.gmra.mrb[0].mxu0 %v1580
  %v1630 = vpop.f32.mrb[0].mxu0
  %v1631 = vadd.f32 0.0, %v1630
  %v1632 = vpop.f32.mrb[0].mxu0
  %v1633 = vpop.f32.mrb[0].mxu0
  %v1634 = vadd.f32 0.0, %v1633
  %v1635 = vpop.f32.mrb[0].mxu0
  %1636 = vmatprep.mubr.bf16.mxu0 0
  %1637 = vmatmul.mubr.bf16.gmra.mrb[0].mxu0 %v1583
  %v1638 = vpop.f32.mrb[0].mxu0
  %v1639 = vadd.f32 0.0, %v1638
  %v1640 = vpop.f32.mrb[0].mxu0
  %v1641 = vpop.f32.mrb[0].mxu0
  %v1642 = vadd.f32 0.0, %v1641
  %v1643 = vpop.f32.mrb[0].mxu0
  %1644 = vmatprep.mubr.bf16.mxu0 0
  %1645 = vmatmul.mubr.bf16.gmra.mrb[0].mxu0 %v1586
  %v1646 = vpop.f32.mrb[0].mxu0
  %v1647 = vadd.f32 0.0, %v1646
  %v1648 = vpop.f32.mrb[0].mxu0
  %v1649 = vpop.f32.mrb[0].mxu0
  %v1650 = vadd.f32 0.0, %v1649
  %v1651 = vpop.f32.mrb[0].mxu0
  %1652 = vdwg.mxu0
  %v1661 = vunpack.c.l.b16 %v122
  %v1662 = vunpack.c.l.b16 %v123
  %v1663 = vunpack.c.l.b16 %v124
  %v1664 = vunpack.c.l.b16 %v125
  %v1665 = vunpack.c.l.b16 %v126
  %v1666 = vunpack.c.l.b16 %v127
  %v1667 = vunpack.c.l.b16 %v128
  %v1668 = vunpack.c.l.b16 %v129
  %v1669 = vpack.c.b16 %v1662, %v1661
  %v1670 = vpack.c.b16 %v1664, %v1663
  %v1671 = vpack.c.b16 %v1666, %v1665
  %v1672 = vpack.c.b16 %v1668, %v1667
  %v1674 = vsel %vm270, %v1669, 0
  %v1677 = vsel %vm270, %v1670, 0
  %v1680 = vsel %vm270, %v1671, 0
  %v1683 = vsel %vm270, %v1672, 0
  %1685 = vmatprep.subr.bf16.mxu0 0
  %1686 = vmatpush1.bf16.msra.mxu0 %v1342
  %1687 = vmatprep.subr.bf16.mxu0 0
  %1688 = vmatpush1.bf16.msra.mxu0 %v1343
  %1689 = vmatprep.subr.bf16.mxu0 0
  %1690 = vmatpush1.bf16.msra.mxu0 %v1344
  %1691 = vmatprep.subr.bf16.mxu0 0
  %1692 = vmatpush1.bf16.msra.mxu0 %v1345
  %1693 = vmatprep.subr.bf16.mxu0 0
  %1694 = vmatpush1.bf16.msra.mxu0 0
  %1695 = vmatprep.subr.bf16.mxu0 0
  %1696 = vmatpush1.bf16.msra.mxu0 0
  %1697 = vmatprep.subr.bf16.mxu0 0
  %1698 = vmatpush1.bf16.msra.mxu0 0
  %1699 = vmatprep.subr.bf16.mxu0 0
  %1700 = vmatpush1.bf16.msra.mxu0 0
  %1701 = vmatprep.subr.bf16.mxu0 0
  %1702 = vmatpush1.bf16.msra.mxu0 0
  %1703 = vmatprep.subr.bf16.mxu0 0
  %1704 = vmatpush1.bf16.msra.mxu0 0
  %1705 = vmatprep.subr.bf16.mxu0 0
  %1706 = vmatpush1.bf16.msra.mxu0 0
  %1707 = vmatprep.subr.bf16.mxu0 0
  %1708 = vmatpush1.bf16.msra.mxu0 0
  %1709 = vmatprep.subr.bf16.mxu0 0
  %1710 = vmatpush1.bf16.msra.mxu0 0
  %1711 = vmatprep.subr.bf16.mxu0 0
  %1712 = vmatpush1.bf16.msra.mxu0 0
  %1713 = vmatprep.subr.bf16.mxu0 0
  %1714 = vmatpush1.bf16.msra.mxu0 0
  %1715 = vmatprep.subr.bf16.mxu0 0
  %1716 = vmatpush1.bf16.msra.mxu0 0
  %1717 = vmatprep.mubr.bf16.mxu0 0
  %1718 = vmatmul.mubr.bf16.gmra.mrb[0].mxu0 %v1674
  %v1719 = vpop.f32.mrb[0].mxu0
  %v1720 = vadd.f32 0.0, %v1719
  %v1721 = vpop.f32.mrb[0].mxu0
  %v1722 = vpop.f32.mrb[0].mxu0
  %v1723 = vadd.f32 0.0, %v1722
  %v1724 = vpop.f32.mrb[0].mxu0
  %1725 = vmatprep.mubr.bf16.mxu0 0
  %1726 = vmatmul.mubr.bf16.gmra.mrb[0].mxu0 %v1677
  %v1727 = vpop.f32.mrb[0].mxu0
  %v1728 = vadd.f32 0.0, %v1727
  %v1729 = vpop.f32.mrb[0].mxu0
  %v1730 = vpop.f32.mrb[0].mxu0
  %v1731 = vadd.f32 0.0, %v1730
  %v1732 = vpop.f32.mrb[0].mxu0
  %1733 = vmatprep.mubr.bf16.mxu0 0
  %1734 = vmatmul.mubr.bf16.gmra.mrb[0].mxu0 %v1680
  %v1735 = vpop.f32.mrb[0].mxu0
  %v1736 = vadd.f32 0.0, %v1735
  %v1737 = vpop.f32.mrb[0].mxu0
  %v1738 = vpop.f32.mrb[0].mxu0
  %v1739 = vadd.f32 0.0, %v1738
  %v1740 = vpop.f32.mrb[0].mxu0
  %1741 = vmatprep.mubr.bf16.mxu0 0
  %1742 = vmatmul.mubr.bf16.gmra.mrb[0].mxu0 %v1683
  %v1743 = vpop.f32.mrb[0].mxu0
  %v1744 = vadd.f32 0.0, %v1743
  %v1745 = vpop.f32.mrb[0].mxu0
  %v1746 = vpop.f32.mrb[0].mxu0
  %v1747 = vadd.f32 0.0, %v1746
  %v1748 = vpop.f32.mrb[0].mxu0
  %1749 = vdwg.mxu0
  %v1758 = vunpack.c.l.b16 %v130
  %v1759 = vunpack.c.l.b16 %v131
  %v1760 = vunpack.c.l.b16 %v132
  %v1761 = vunpack.c.l.b16 %v133
  %v1762 = vunpack.c.l.b16 %v134
  %v1763 = vunpack.c.l.b16 %v135
  %v1764 = vunpack.c.l.b16 %v136
  %v1765 = vunpack.c.l.b16 %v137
  %v1766 = vpack.c.b16 %v1759, %v1758
  %v1767 = vpack.c.b16 %v1761, %v1760
  %v1768 = vpack.c.b16 %v1763, %v1762
  %v1769 = vpack.c.b16 %v1765, %v1764
  %v1771 = vsel %vm270, %v1766, 0
  %v1774 = vsel %vm270, %v1767, 0
  %v1777 = vsel %vm270, %v1768, 0
  %v1780 = vsel %vm270, %v1769, 0
  %1782 = vmatprep.subr.bf16.mxu0 0
  %1783 = vmatpush1.bf16.msra.mxu0 %v1346
  %1784 = vmatprep.subr.bf16.mxu0 0
  %1785 = vmatpush1.bf16.msra.mxu0 %v1347
  %1786 = vmatprep.subr.bf16.mxu0 0
  %1787 = vmatpush1.bf16.msra.mxu0 %v1348
  %1788 = vmatprep.subr.bf16.mxu0 0
  %1789 = vmatpush1.bf16.msra.mxu0 %v1349
  %1790 = vmatprep.subr.bf16.mxu0 0
  %1791 = vmatpush1.bf16.msra.mxu0 0
  %1792 = vmatprep.subr.bf16.mxu0 0
  %1793 = vmatpush1.bf16.msra.mxu0 0
  %1794 = vmatprep.subr.bf16.mxu0 0
  %1795 = vmatpush1.bf16.msra.mxu0 0
  %1796 = vmatprep.subr.bf16.mxu0 0
  %1797 = vmatpush1.bf16.msra.mxu0 0
  %1798 = vmatprep.subr.bf16.mxu0 0
  %1799 = vmatpush1.bf16.msra.mxu0 0
  %1800 = vmatprep.subr.bf16.mxu0 0
  %1801 = vmatpush1.bf16.msra.mxu0 0
  %1802 = vmatprep.subr.bf16.mxu0 0
  %1803 = vmatpush1.bf16.msra.mxu0 0
  %1804 = vmatprep.subr.bf16.mxu0 0
  %1805 = vmatpush1.bf16.msra.mxu0 0
  %1806 = vmatprep.subr.bf16.mxu0 0
  %1807 = vmatpush1.bf16.msra.mxu0 0
  %1808 = vmatprep.subr.bf16.mxu0 0
  %1809 = vmatpush1.bf16.msra.mxu0 0
  %1810 = vmatprep.subr.bf16.mxu0 0
  %1811 = vmatpush1.bf16.msra.mxu0 0
  %1812 = vmatprep.subr.bf16.mxu0 0
  %1813 = vmatpush1.bf16.msra.mxu0 0
  %1814 = vmatprep.mubr.bf16.mxu0 0
  %1815 = vmatmul.mubr.bf16.gmra.mrb[0].mxu0 %v1771
  %v1816 = vpop.f32.mrb[0].mxu0
  %v1817 = vadd.f32 0.0, %v1816
  %v1818 = vpop.f32.mrb[0].mxu0
  %v1819 = vpop.f32.mrb[0].mxu0
  %v1820 = vadd.f32 0.0, %v1819
  %v1821 = vpop.f32.mrb[0].mxu0
  %1822 = vmatprep.mubr.bf16.mxu0 0
  %1823 = vmatmul.mubr.bf16.gmra.mrb[0].mxu0 %v1774
  %v1824 = vpop.f32.mrb[0].mxu0
  %v1825 = vadd.f32 0.0, %v1824
  %v1826 = vpop.f32.mrb[0].mxu0
  %v1827 = vpop.f32.mrb[0].mxu0
  %v1828 = vadd.f32 0.0, %v1827
  %v1829 = vpop.f32.mrb[0].mxu0
  %1830 = vmatprep.mubr.bf16.mxu0 0
  %1831 = vmatmul.mubr.bf16.gmra.mrb[0].mxu0 %v1777
  %v1832 = vpop.f32.mrb[0].mxu0
  %v1833 = vadd.f32 0.0, %v1832
  %v1834 = vpop.f32.mrb[0].mxu0
  %v1835 = vpop.f32.mrb[0].mxu0
  %v1836 = vadd.f32 0.0, %v1835
  %v1837 = vpop.f32.mrb[0].mxu0
  %1838 = vmatprep.mubr.bf16.mxu0 0
  %1839 = vmatmul.mubr.bf16.gmra.mrb[0].mxu0 %v1780
  %v1840 = vpop.f32.mrb[0].mxu0
  %v1841 = vadd.f32 0.0, %v1840
  %v1842 = vpop.f32.mrb[0].mxu0
  %v1843 = vpop.f32.mrb[0].mxu0
  %v1844 = vadd.f32 0.0, %v1843
  %v1845 = vpop.f32.mrb[0].mxu0
  %1846 = vdwg.mxu0
  %v1855 = vunpack.c.l.b16 %v138
  %v1856 = vunpack.c.l.b16 %v139
  %v1857 = vunpack.c.l.b16 %v140
  %v1858 = vunpack.c.l.b16 %v141
  %v1859 = vunpack.c.l.b16 %v142
  %v1860 = vunpack.c.l.b16 %v143
  %v1861 = vunpack.c.l.b16 %v144
  %v1862 = vunpack.c.l.b16 %v145
  %v1863 = vpack.c.b16 %v1856, %v1855
  %v1864 = vpack.c.b16 %v1858, %v1857
  %v1865 = vpack.c.b16 %v1860, %v1859
  %v1866 = vpack.c.b16 %v1862, %v1861
  %v1868 = vsel %vm270, %v1863, 0
  %v1871 = vsel %vm270, %v1864, 0
  %v1874 = vsel %vm270, %v1865, 0
  %v1877 = vsel %vm270, %v1866, 0
  %1879 = vmatprep.subr.bf16.mxu0 0
  %1880 = vmatpush1.bf16.msra.mxu0 %v1350
  %1881 = vmatprep.subr.bf16.mxu0 0
  %1882 = vmatpush1.bf16.msra.mxu0 %v1351
  %1883 = vmatprep.subr.bf16.mxu0 0
  %1884 = vmatpush1.bf16.msra.mxu0 %v1352
  %1885 = vmatprep.subr.bf16.mxu0 0
  %1886 = vmatpush1.bf16.msra.mxu0 %v1353
  %1887 = vmatprep.subr.bf16.mxu0 0
  %1888 = vmatpush1.bf16.msra.mxu0 0
  %1889 = vmatprep.subr.bf16.mxu0 0
  %1890 = vmatpush1.bf16.msra.mxu0 0
  %1891 = vmatprep.subr.bf16.mxu0 0
  %1892 = vmatpush1.bf16.msra.mxu0 0
  %1893 = vmatprep.subr.bf16.mxu0 0
  %1894 = vmatpush1.bf16.msra.mxu0 0
  %1895 = vmatprep.subr.bf16.mxu0 0
  %1896 = vmatpush1.bf16.msra.mxu0 0
  %1897 = vmatprep.subr.bf16.mxu0 0
  %1898 = vmatpush1.bf16.msra.mxu0 0
  %1899 = vmatprep.subr.bf16.mxu0 0
  %1900 = vmatpush1.bf16.msra.mxu0 0
  %1901 = vmatprep.subr.bf16.mxu0 0
  %1902 = vmatpush1.bf16.msra.mxu0 0
  %1903 = vmatprep.subr.bf16.mxu0 0
  %1904 = vmatpush1.bf16.msra.mxu0 0
  %1905 = vmatprep.subr.bf16.mxu0 0
  %1906 = vmatpush1.bf16.msra.mxu0 0
  %1907 = vmatprep.subr.bf16.mxu0 0
  %1908 = vmatpush1.bf16.msra.mxu0 0
  %1909 = vmatprep.subr.bf16.mxu0 0
  %1910 = vmatpush1.bf16.msra.mxu0 0
  %1911 = vmatprep.mubr.bf16.mxu0 0
  %1912 = vmatmul.mubr.bf16.gmra.mrb[0].mxu0 %v1868
  %v1913 = vpop.f32.mrb[0].mxu0
  %v1914 = vadd.f32 0.0, %v1913
  %v1915 = vpop.f32.mrb[0].mxu0
  %v1916 = vpop.f32.mrb[0].mxu0
  %v1917 = vadd.f32 0.0, %v1916
  %v1918 = vpop.f32.mrb[0].mxu0
  %1919 = vmatprep.mubr.bf16.mxu0 0
  %1920 = vmatmul.mubr.bf16.gmra.mrb[0].mxu0 %v1871
  %v1921 = vpop.f32.mrb[0].mxu0
  %v1922 = vadd.f32 0.0, %v1921
  %v1923 = vpop.f32.mrb[0].mxu0
  %v1924 = vpop.f32.mrb[0].mxu0
  %v1925 = vadd.f32 0.0, %v1924
  %v1926 = vpop.f32.mrb[0].mxu0
  %1927 = vmatprep.mubr.bf16.mxu0 0
  %1928 = vmatmul.mubr.bf16.gmra.mrb[0].mxu0 %v1874
  %v1929 = vpop.f32.mrb[0].mxu0
  %v1930 = vadd.f32 0.0, %v1929
  %v1931 = vpop.f32.mrb[0].mxu0
  %v1932 = vpop.f32.mrb[0].mxu0
  %v1933 = vadd.f32 0.0, %v1932
  %v1934 = vpop.f32.mrb[0].mxu0
  %1935 = vmatprep.mubr.bf16.mxu0 0
  %1936 = vmatmul.mubr.bf16.gmra.mrb[0].mxu0 %v1877
  %v1937 = vpop.f32.mrb[0].mxu0
  %v1938 = vadd.f32 0.0, %v1937
  %v1939 = vpop.f32.mrb[0].mxu0
  %v1940 = vpop.f32.mrb[0].mxu0
  %v1941 = vadd.f32 0.0, %v1940
  %v1942 = vpop.f32.mrb[0].mxu0
  %1943 = vdwg.mxu0
  %v1952 = vunpack.c.l.b16 %v146
  %v1953 = vunpack.c.l.b16 %v147
  %v1954 = vunpack.c.l.b16 %v148
  %v1955 = vunpack.c.l.b16 %v149
  %v1956 = vunpack.c.l.b16 %v150
  %v1957 = vunpack.c.l.b16 %v151
  %v1958 = vunpack.c.l.b16 %v152
  %v1959 = vunpack.c.l.b16 %v153
  %v1960 = vpack.c.b16 %v1953, %v1952
  %v1961 = vpack.c.b16 %v1955, %v1954
  %v1962 = vpack.c.b16 %v1957, %v1956
  %v1963 = vpack.c.b16 %v1959, %v1958
  %v1965 = vsel %vm270, %v1960, 0
  %v1968 = vsel %vm270, %v1961, 0
  %v1971 = vsel %vm270, %v1962, 0
  %v1974 = vsel %vm270, %v1963, 0
  %1976 = vmatprep.subr.bf16.mxu0 0
  %1977 = vmatpush1.bf16.msra.mxu0 %v1354
  %1978 = vmatprep.subr.bf16.mxu0 0
  %1979 = vmatpush1.bf16.msra.mxu0 %v1355
  %1980 = vmatprep.subr.bf16.mxu0 0
  %1981 = vmatpush1.bf16.msra.mxu0 %v1356
  %1982 = vmatprep.subr.bf16.mxu0 0
  %1983 = vmatpush1.bf16.msra.mxu0 %v1357
  %1984 = vmatprep.subr.bf16.mxu0 0
  %1985 = vmatpush1.bf16.msra.mxu0 0
  %1986 = vmatprep.subr.bf16.mxu0 0
  %1987 = vmatpush1.bf16.msra.mxu0 0
  %1988 = vmatprep.subr.bf16.mxu0 0
  %1989 = vmatpush1.bf16.msra.mxu0 0
  %1990 = vmatprep.subr.bf16.mxu0 0
  %1991 = vmatpush1.bf16.msra.mxu0 0
  %1992 = vmatprep.subr.bf16.mxu0 0
  %1993 = vmatpush1.bf16.msra.mxu0 0
  %1994 = vmatprep.subr.bf16.mxu0 0
  %1995 = vmatpush1.bf16.msra.mxu0 0
  %1996 = vmatprep.subr.bf16.mxu0 0
  %1997 = vmatpush1.bf16.msra.mxu0 0
  %1998 = vmatprep.subr.bf16.mxu0 0
  %1999 = vmatpush1.bf16.msra.mxu0 0
  %2000 = vmatprep.subr.bf16.mxu0 0
  %2001 = vmatpush1.bf16.msra.mxu0 0
  %2002 = vmatprep.subr.bf16.mxu0 0
  %2003 = vmatpush1.bf16.msra.mxu0 0
  %2004 = vmatprep.subr.bf16.mxu0 0
  %2005 = vmatpush1.bf16.msra.mxu0 0
  %2006 = vmatprep.subr.bf16.mxu0 0
  %2007 = vmatpush1.bf16.msra.mxu0 0
  %2008 = vmatprep.mubr.bf16.mxu0 0
  %2009 = vmatmul.mubr.bf16.gmra.mrb[0].mxu0 %v1965
  %v2010 = vpop.f32.mrb[0].mxu0
  %v2011 = vadd.f32 0.0, %v2010
  %v2012 = vpop.f32.mrb[0].mxu0
  %v2013 = vpop.f32.mrb[0].mxu0
  %v2014 = vadd.f32 0.0, %v2013
  %v2015 = vpop.f32.mrb[0].mxu0
  %2016 = vmatprep.mubr.bf16.mxu0 0
  %2017 = vmatmul.mubr.bf16.gmra.mrb[0].mxu0 %v1968
  %v2018 = vpop.f32.mrb[0].mxu0
  %v2019 = vadd.f32 0.0, %v2018
  %v2020 = vpop.f32.mrb[0].mxu0
  %v2021 = vpop.f32.mrb[0].mxu0
  %v2022 = vadd.f32 0.0, %v2021
  %v2023 = vpop.f32.mrb[0].mxu0
  %2024 = vmatprep.mubr.bf16.mxu0 0
  %2025 = vmatmul.mubr.bf16.gmra.mrb[0].mxu0 %v1971
  %v2026 = vpop.f32.mrb[0].mxu0
  %v2027 = vadd.f32 0.0, %v2026
  %v2028 = vpop.f32.mrb[0].mxu0
  %v2029 = vpop.f32.mrb[0].mxu0
  %v2030 = vadd.f32 0.0, %v2029
  %v2031 = vpop.f32.mrb[0].mxu0
  %2032 = vmatprep.mubr.bf16.mxu0 0
  %2033 = vmatmul.mubr.bf16.gmra.mrb[0].mxu0 %v1974
  %v2034 = vpop.f32.mrb[0].mxu0
  %v2035 = vadd.f32 0.0, %v2034
  %v2036 = vpop.f32.mrb[0].mxu0
  %v2037 = vpop.f32.mrb[0].mxu0
  %v2038 = vadd.f32 0.0, %v2037
  %v2039 = vpop.f32.mrb[0].mxu0
  %2040 = vdwg.mxu0
  %v2049 = vunpack.c.l.b16 %v154
  %v2050 = vunpack.c.l.b16 %v155
  %v2051 = vunpack.c.l.b16 %v156
  %v2052 = vunpack.c.l.b16 %v157
  %v2053 = vunpack.c.l.b16 %v158
  %v2054 = vunpack.c.l.b16 %v159
  %v2055 = vunpack.c.l.b16 %v160
  %v2056 = vunpack.c.l.b16 %v161
  %v2057 = vpack.c.b16 %v2050, %v2049
  %v2058 = vpack.c.b16 %v2052, %v2051
  %v2059 = vpack.c.b16 %v2054, %v2053
  %v2060 = vpack.c.b16 %v2056, %v2055
  %v2062 = vsel %vm270, %v2057, 0
  %v2065 = vsel %vm270, %v2058, 0
  %v2068 = vsel %vm270, %v2059, 0
  %v2071 = vsel %vm270, %v2060, 0
  %2073 = vmatprep.subr.bf16.mxu0 0
  %2074 = vmatpush1.bf16.msra.mxu0 %v1358
  %2075 = vmatprep.subr.bf16.mxu0 0
  %2076 = vmatpush1.bf16.msra.mxu0 %v1359
  %2077 = vmatprep.subr.bf16.mxu0 0
  %2078 = vmatpush1.bf16.msra.mxu0 %v1360
  %2079 = vmatprep.subr.bf16.mxu0 0
  %2080 = vmatpush1.bf16.msra.mxu0 %v1361
  %2081 = vmatprep.subr.bf16.mxu0 0
  %2082 = vmatpush1.bf16.msra.mxu0 0
  %2083 = vmatprep.subr.bf16.mxu0 0
  %2084 = vmatpush1.bf16.msra.mxu0 0
  %2085 = vmatprep.subr.bf16.mxu0 0
  %2086 = vmatpush1.bf16.msra.mxu0 0
  %2087 = vmatprep.subr.bf16.mxu0 0
  %2088 = vmatpush1.bf16.msra.mxu0 0
  %2089 = vmatprep.subr.bf16.mxu0 0
  %2090 = vmatpush1.bf16.msra.mxu0 0
  %2091 = vmatprep.subr.bf16.mxu0 0
  %2092 = vmatpush1.bf16.msra.mxu0 0
  %2093 = vmatprep.subr.bf16.mxu0 0
  %2094 = vmatpush1.bf16.msra.mxu0 0
  %2095 = vmatprep.subr.bf16.mxu0 0
  %2096 = vmatpush1.bf16.msra.mxu0 0
  %2097 = vmatprep.subr.bf16.mxu0 0
  %2098 = vmatpush1.bf16.msra.mxu0 0
  %2099 = vmatprep.subr.bf16.mxu0 0
  %2100 = vmatpush1.bf16.msra.mxu0 0
  %2101 = vmatprep.subr.bf16.mxu0 0
  %2102 = vmatpush1.bf16.msra.mxu0 0
  %2103 = vmatprep.subr.bf16.mxu0 0
  %2104 = vmatpush1.bf16.msra.mxu0 0
  %2105 = vmatprep.mubr.bf16.mxu0 0
  %2106 = vmatmul.mubr.bf16.gmra.mrb[0].mxu0 %v2062
  %v2107 = vpop.f32.mrb[0].mxu0
  %v2108 = vadd.f32 0.0, %v2107
  %v2109 = vpop.f32.mrb[0].mxu0
  %v2110 = vpop.f32.mrb[0].mxu0
  %v2111 = vadd.f32 0.0, %v2110
  %v2112 = vpop.f32.mrb[0].mxu0
  %2113 = vmatprep.mubr.bf16.mxu0 0
  %2114 = vmatmul.mubr.bf16.gmra.mrb[0].mxu0 %v2065
  %v2115 = vpop.f32.mrb[0].mxu0
  %v2116 = vadd.f32 0.0, %v2115
  %v2117 = vpop.f32.mrb[0].mxu0
  %v2118 = vpop.f32.mrb[0].mxu0
  %v2119 = vadd.f32 0.0, %v2118
  %v2120 = vpop.f32.mrb[0].mxu0
  %2121 = vmatprep.mubr.bf16.mxu0 0
  %2122 = vmatmul.mubr.bf16.gmra.mrb[0].mxu0 %v2068
  %v2123 = vpop.f32.mrb[0].mxu0
  %v2124 = vadd.f32 0.0, %v2123
  %v2125 = vpop.f32.mrb[0].mxu0
  %v2126 = vpop.f32.mrb[0].mxu0
  %v2127 = vadd.f32 0.0, %v2126
  %v2128 = vpop.f32.mrb[0].mxu0
  %2129 = vmatprep.mubr.bf16.mxu0 0
  %2130 = vmatmul.mubr.bf16.gmra.mrb[0].mxu0 %v2071
  %v2131 = vpop.f32.mrb[0].mxu0
  %v2132 = vadd.f32 0.0, %v2131
  %v2133 = vpop.f32.mrb[0].mxu0
  %v2134 = vpop.f32.mrb[0].mxu0
  %v2135 = vadd.f32 0.0, %v2134
  %v2136 = vpop.f32.mrb[0].mxu0
  %2137 = vdwg.mxu0
  %v2138 = vpack.c.bf16 %v1432, %v1429
  %v2139 = vpack.c.bf16 %v1440, %v1437
  %v2140 = vpack.c.bf16 %v1448, %v1445
  %v2141 = vpack.c.bf16 %v1456, %v1453
  %v2142 = vpack.c.bf16 %v1529, %v1526
  %v2143 = vpack.c.bf16 %v1537, %v1534
  %v2144 = vpack.c.bf16 %v1545, %v1542
  %v2145 = vpack.c.bf16 %v1553, %v1550
  %v2146 = vpack.c.bf16 %v1626, %v1623
  %v2147 = vpack.c.bf16 %v1634, %v1631
  %v2148 = vpack.c.bf16 %v1642, %v1639
  %v2149 = vpack.c.bf16 %v1650, %v1647
  %v2150 = vpack.c.bf16 %v1723, %v1720
  %v2151 = vpack.c.bf16 %v1731, %v1728
  %v2152 = vpack.c.bf16 %v1739, %v1736
  %v2153 = vpack.c.bf16 %v1747, %v1744
  %v2154 = vpack.c.bf16 %v1820, %v1817
  %v2155 = vpack.c.bf16 %v1828, %v1825
  %v2156 = vpack.c.bf16 %v1836, %v1833
  %v2157 = vpack.c.bf16 %v1844, %v1841
  %v2158 = vpack.c.bf16 %v1917, %v1914
  %v2159 = vpack.c.bf16 %v1925, %v1922
  %v2160 = vpack.c.bf16 %v1933, %v1930
  %v2161 = vpack.c.bf16 %v1941, %v1938
  %v2162 = vpack.c.bf16 %v2014, %v2011
  %v2163 = vpack.c.bf16 %v2022, %v2019
  %v2164 = vpack.c.bf16 %v2030, %v2027
  %v2165 = vpack.c.bf16 %v2038, %v2035
  %v2166 = vpack.c.bf16 %v2111, %v2108
  %v2167 = vpack.c.bf16 %v2119, %v2116
  %v2168 = vpack.c.bf16 %v2127, %v2124
  %v2169 = vpack.c.bf16 %v2135, %v2132
  %v2170 = vld [vmem:[%s3] sm:$0xf]
  %v2171 = vld [vmem:[%s3 + $0x4] sm:$0xf]
  %v2172 = vld [vmem:[%s4] sm:$0x1]
  %v2174 = vlaneseq
  %v2175 = vshrl.u32 %v2174, 7
  %v2176 = vsub.s32 0, %v2175
  %v2177 = vrot.slane %v2172, %v2176
  %v2181 = vunpack.c.l.b16 %v2170
  %v2182 = vunpack.c.l.b16 %v2171
  %v2183 = vpack.c.b16 %v2182, %v2181
  %vm2185 = vcmask 130048
  %v2187 = vsel %vm2185, %v2138, 0
  %v2190 = vsel %vm2185, %v2139, 0
  %v2193 = vsel %vm2185, %v2140, 0
  %v2196 = vsel %vm2185, %v2141, 0
  %v2199 = vsel %vm2185, %v2142, 0
  %v2202 = vsel %vm2185, %v2143, 0
  %v2205 = vsel %vm2185, %v2144, 0
  %v2208 = vsel %vm2185, %v2145, 0
  %v2211 = vsel %vm2185, %v2146, 0
  %v2214 = vsel %vm2185, %v2147, 0
  %v2217 = vsel %vm2185, %v2148, 0
  %v2220 = vsel %vm2185, %v2149, 0
  %v2223 = vsel %vm2185, %v2150, 0
  %v2226 = vsel %vm2185, %v2151, 0
  %v2229 = vsel %vm2185, %v2152, 0
  %v2232 = vsel %vm2185, %v2153, 0
  %v2235 = vsel %vm2185, %v2154, 0
  %v2238 = vsel %vm2185, %v2155, 0
  %v2241 = vsel %vm2185, %v2156, 0
  %v2244 = vsel %vm2185, %v2157, 0
  %v2247 = vsel %vm2185, %v2158, 0
  %v2250 = vsel %vm2185, %v2159, 0
  %v2253 = vsel %vm2185, %v2160, 0
  %v2256 = vsel %vm2185, %v2161, 0
  %v2259 = vsel %vm2185, %v2162, 0
  %v2262 = vsel %vm2185, %v2163, 0
  %v2265 = vsel %vm2185, %v2164, 0
  %v2268 = vsel %vm2185, %v2165, 0
  %v2271 = vsel %vm2185, %v2166, 0
  %v2274 = vsel %vm2185, %v2167, 0
  %v2277 = vsel %vm2185, %v2168, 0
  %v2280 = vsel %vm2185, %v2169, 0
  %2282 = vmatprep.subr.bf16.mxu0 0
  %2283 = vmatpush1.bf16.msra.mxu0 %v2183
  %2284 = vmatprep.subr.bf16.mxu0 0
  %2285 = vmatpush1.bf16.msra.mxu0 0
  %2286 = vmatprep.subr.bf16.mxu0 0
  %2287 = vmatpush1.bf16.msra.mxu0 0
  %2288 = vmatprep.subr.bf16.mxu0 0
  %2289 = vmatpush1.bf16.msra.mxu0 0
  %2290 = vmatprep.subr.bf16.mxu0 0
  %2291 = vmatpush1.bf16.msra.mxu0 0
  %2292 = vmatprep.subr.bf16.mxu0 0
  %2293 = vmatpush1.bf16.msra.mxu0 0
  %2294 = vmatprep.subr.bf16.mxu0 0
  %2295 = vmatpush1.bf16.msra.mxu0 0
  %2296 = vmatprep.subr.bf16.mxu0 0
  %2297 = vmatpush1.bf16.msra.mxu0 0
  %2298 = vmatprep.subr.bf16.mxu0 0
  %2299 = vmatpush1.bf16.msra.mxu0 0
  %2300 = vmatprep.subr.bf16.mxu0 0
  %2301 = vmatpush1.bf16.msra.mxu0 0
  %2302 = vmatprep.subr.bf16.mxu0 0
  %2303 = vmatpush1.bf16.msra.mxu0 0
  %2304 = vmatprep.subr.bf16.mxu0 0
  %2305 = vmatpush1.bf16.msra.mxu0 0
  %2306 = vmatprep.subr.bf16.mxu0 0
  %2307 = vmatpush1.bf16.msra.mxu0 0
  %2308 = vmatprep.subr.bf16.mxu0 0
  %2309 = vmatpush1.bf16.msra.mxu0 0
  %2310 = vmatprep.subr.bf16.mxu0 0
  %2311 = vmatpush1.bf16.msra.mxu0 0
  %2312 = vmatprep.subr.bf16.mxu0 0
  %2313 = vmatpush1.bf16.msra.mxu0 0
  %2314 = vmatprep.mubr.bf16.mxu0 0
  %2315 = vmatmul.mubr.bf16.gmra.mrb[0].mxu0 %v2187
  %v2316 = vpop.f32.mrb[0].mxu0
  %v2317 = vadd.f32 %v2177, %v2316
  %v2318 = vpop.f32.mrb[0].mxu0
  %v2319 = vpop.f32.mrb[0].mxu0
  %v2320 = vadd.f32 %v2177, %v2319
  %v2321 = vpop.f32.mrb[0].mxu0
  %2322 = vmatprep.mubr.bf16.mxu0 0
  %2323 = vmatmul.mubr.bf16.gmra.mrb[0].mxu0 %v2190
  %v2324 = vpop.f32.mrb[0].mxu0
  %v2325 = vadd.f32 %v2177, %v2324
  %v2326 = vpop.f32.mrb[0].mxu0
  %v2327 = vpop.f32.mrb[0].mxu0
  %v2328 = vadd.f32 %v2177, %v2327
  %v2329 = vpop.f32.mrb[0].mxu0
  %2330 = vmatprep.mubr.bf16.mxu0 0
  %2331 = vmatmul.mubr.bf16.gmra.mrb[0].mxu0 %v2193
  %v2332 = vpop.f32.mrb[0].mxu0
  %v2333 = vadd.f32 %v2177, %v2332
  %v2334 = vpop.f32.mrb[0].mxu0
  %v2335 = vpop.f32.mrb[0].mxu0
  %v2336 = vadd.f32 %v2177, %v2335
  %v2337 = vpop.f32.mrb[0].mxu0
  %2338 = vmatprep.mubr.bf16.mxu0 0
  %2339 = vmatmul.mubr.bf16.gmra.mrb[0].mxu0 %v2196
  %v2340 = vpop.f32.mrb[0].mxu0
  %v2341 = vadd.f32 %v2177, %v2340
  %v2342 = vpop.f32.mrb[0].mxu0
  %v2343 = vpop.f32.mrb[0].mxu0
  %v2344 = vadd.f32 %v2177, %v2343
  %v2345 = vpop.f32.mrb[0].mxu0
  %2346 = vmatprep.mubr.bf16.mxu0 0
  %2347 = vmatmul.mubr.bf16.gmra.mrb[0].mxu0 %v2199
  %v2348 = vpop.f32.mrb[0].mxu0
  %v2349 = vadd.f32 %v2177, %v2348
  %v2350 = vpop.f32.mrb[0].mxu0
  %v2351 = vpop.f32.mrb[0].mxu0
  %v2352 = vadd.f32 %v2177, %v2351
  %v2353 = vpop.f32.mrb[0].mxu0
  %2354 = vmatprep.mubr.bf16.mxu0 0
  %2355 = vmatmul.mubr.bf16.gmra.mrb[0].mxu0 %v2202
  %v2356 = vpop.f32.mrb[0].mxu0
  %v2357 = vadd.f32 %v2177, %v2356
  %v2358 = vpop.f32.mrb[0].mxu0
  %v2359 = vpop.f32.mrb[0].mxu0
  %v2360 = vadd.f32 %v2177, %v2359
  %v2361 = vpop.f32.mrb[0].mxu0
  %2362 = vmatprep.mubr.bf16.mxu0 0
  %2363 = vmatmul.mubr.bf16.gmra.mrb[0].mxu0 %v2205
  %v2364 = vpop.f32.mrb[0].mxu0
  %v2365 = vadd.f32 %v2177, %v2364
  %v2366 = vpop.f32.mrb[0].mxu0
  %v2367 = vpop.f32.mrb[0].mxu0
  %v2368 = vadd.f32 %v2177, %v2367
  %v2369 = vpop.f32.mrb[0].mxu0
  %2370 = vmatprep.mubr.bf16.mxu0 0
  %2371 = vmatmul.mubr.bf16.gmra.mrb[0].mxu0 %v2208
  %v2372 = vpop.f32.mrb[0].mxu0
  %v2373 = vadd.f32 %v2177, %v2372
  %v2374 = vpop.f32.mrb[0].mxu0
  %v2375 = vpop.f32.mrb[0].mxu0
  %v2376 = vadd.f32 %v2177, %v2375
  %v2377 = vpop.f32.mrb[0].mxu0
  %2378 = vmatprep.mubr.bf16.mxu0 0
  %2379 = vmatmul.mubr.bf16.gmra.mrb[0].mxu0 %v2211
  %v2380 = vpop.f32.mrb[0].mxu0
  %v2381 = vadd.f32 %v2177, %v2380
  %v2382 = vpop.f32.mrb[0].mxu0
  %v2383 = vpop.f32.mrb[0].mxu0
  %v2384 = vadd.f32 %v2177, %v2383
  %v2385 = vpop.f32.mrb[0].mxu0
  %2386 = vmatprep.mubr.bf16.mxu0 0
  %2387 = vmatmul.mubr.bf16.gmra.mrb[0].mxu0 %v2214
  %v2388 = vpop.f32.mrb[0].mxu0
  %v2389 = vadd.f32 %v2177, %v2388
  %v2390 = vpop.f32.mrb[0].mxu0
  %v2391 = vpop.f32.mrb[0].mxu0
  %v2392 = vadd.f32 %v2177, %v2391
  %v2393 = vpop.f32.mrb[0].mxu0
  %2394 = vmatprep.mubr.bf16.mxu0 0
  %2395 = vmatmul.mubr.bf16.gmra.mrb[0].mxu0 %v2217
  %v2396 = vpop.f32.mrb[0].mxu0
  %v2397 = vadd.f32 %v2177, %v2396
  %v2398 = vpop.f32.mrb[0].mxu0
  %v2399 = vpop.f32.mrb[0].mxu0
  %v2400 = vadd.f32 %v2177, %v2399
  %v2401 = vpop.f32.mrb[0].mxu0
  %2402 = vmatprep.mubr.bf16.mxu0 0
  %2403 = vmatmul.mubr.bf16.gmra.mrb[0].mxu0 %v2220
  %v2404 = vpop.f32.mrb[0].mxu0
  %v2405 = vadd.f32 %v2177, %v2404
  %v2406 = vpop.f32.mrb[0].mxu0
  %v2407 = vpop.f32.mrb[0].mxu0
  %v2408 = vadd.f32 %v2177, %v2407
  %v2409 = vpop.f32.mrb[0].mxu0
  %2410 = vmatprep.mubr.bf16.mxu0 0
  %2411 = vmatmul.mubr.bf16.gmra.mrb[0].mxu0 %v2223
  %v2412 = vpop.f32.mrb[0].mxu0
  %v2413 = vadd.f32 %v2177, %v2412
  %v2414 = vpop.f32.mrb[0].mxu0
  %v2415 = vpop.f32.mrb[0].mxu0
  %v2416 = vadd.f32 %v2177, %v2415
  %v2417 = vpop.f32.mrb[0].mxu0
  %2418 = vmatprep.mubr.bf16.mxu0 0
  %2419 = vmatmul.mubr.bf16.gmra.mrb[0].mxu0 %v2226
  %v2420 = vpop.f32.mrb[0].mxu0
  %v2421 = vadd.f32 %v2177, %v2420
  %v2422 = vpop.f32.mrb[0].mxu0
  %v2423 = vpop.f32.mrb[0].mxu0
  %v2424 = vadd.f32 %v2177, %v2423
  %v2425 = vpop.f32.mrb[0].mxu0
  %2426 = vmatprep.mubr.bf16.mxu0 0
  %2427 = vmatmul.mubr.bf16.gmra.mrb[0].mxu0 %v2229
  %v2428 = vpop.f32.mrb[0].mxu0
  %v2429 = vadd.f32 %v2177, %v2428
  %v2430 = vpop.f32.mrb[0].mxu0
  %v2431 = vpop.f32.mrb[0].mxu0
  %v2432 = vadd.f32 %v2177, %v2431
  %v2433 = vpop.f32.mrb[0].mxu0
  %2434 = vmatprep.mubr.bf16.mxu0 0
  %2435 = vmatmul.mubr.bf16.gmra.mrb[0].mxu0 %v2232
  %v2436 = vpop.f32.mrb[0].mxu0
  %v2437 = vadd.f32 %v2177, %v2436
  %v2438 = vpop.f32.mrb[0].mxu0
  %v2439 = vpop.f32.mrb[0].mxu0
  %v2440 = vadd.f32 %v2177, %v2439
  %v2441 = vpop.f32.mrb[0].mxu0
  %2442 = vmatprep.mubr.bf16.mxu0 0
  %2443 = vmatmul.mubr.bf16.gmra.mrb[0].mxu0 %v2235
  %v2444 = vpop.f32.mrb[0].mxu0
  %v2445 = vadd.f32 %v2177, %v2444
  %v2446 = vpop.f32.mrb[0].mxu0
  %v2447 = vpop.f32.mrb[0].mxu0
  %v2448 = vadd.f32 %v2177, %v2447
  %v2449 = vpop.f32.mrb[0].mxu0
  %2450 = vmatprep.mubr.bf16.mxu0 0
  %2451 = vmatmul.mubr.bf16.gmra.mrb[0].mxu0 %v2238
  %v2452 = vpop.f32.mrb[0].mxu0
  %v2453 = vadd.f32 %v2177, %v2452
  %v2454 = vpop.f32.mrb[0].mxu0
  %v2455 = vpop.f32.mrb[0].mxu0
  %v2456 = vadd.f32 %v2177, %v2455
  %v2457 = vpop.f32.mrb[0].mxu0
  %2458 = vmatprep.mubr.bf16.mxu0 0
  %2459 = vmatmul.mubr.bf16.gmra.mrb[0].mxu0 %v2241
  %v2460 = vpop.f32.mrb[0].mxu0
  %v2461 = vadd.f32 %v2177, %v2460
  %v2462 = vpop.f32.mrb[0].mxu0
  %v2463 = vpop.f32.mrb[0].mxu0
  %v2464 = vadd.f32 %v2177, %v2463
  %v2465 = vpop.f32.mrb[0].mxu0
  %2466 = vmatprep.mubr.bf16.mxu0 0
  %2467 = vmatmul.mubr.bf16.gmra.mrb[0].mxu0 %v2244
  %v2468 = vpop.f32.mrb[0].mxu0
  %v2469 = vadd.f32 %v2177, %v2468
  %v2470 = vpop.f32.mrb[0].mxu0
  %v2471 = vpop.f32.mrb[0].mxu0
  %v2472 = vadd.f32 %v2177, %v2471
  %v2473 = vpop.f32.mrb[0].mxu0
  %2474 = vmatprep.mubr.bf16.mxu0 0
  %2475 = vmatmul.mubr.bf16.gmra.mrb[0].mxu0 %v2247
  %v2476 = vpop.f32.mrb[0].mxu0
  %v2477 = vadd.f32 %v2177, %v2476
  %v2478 = vpop.f32.mrb[0].mxu0
  %v2479 = vpop.f32.mrb[0].mxu0
  %v2480 = vadd.f32 %v2177, %v2479
  %v2481 = vpop.f32.mrb[0].mxu0
  %2482 = vmatprep.mubr.bf16.mxu0 0
  %2483 = vmatmul.mubr.bf16.gmra.mrb[0].mxu0 %v2250
  %v2484 = vpop.f32.mrb[0].mxu0
  %v2485 = vadd.f32 %v2177, %v2484
  %v2486 = vpop.f32.mrb[0].mxu0
  %v2487 = vpop.f32.mrb[0].mxu0
  %v2488 = vadd.f32 %v2177, %v2487
  %v2489 = vpop.f32.mrb[0].mxu0
  %2490 = vmatprep.mubr.bf16.mxu0 0
  %2491 = vmatmul.mubr.bf16.gmra.mrb[0].mxu0 %v2253
  %v2492 = vpop.f32.mrb[0].mxu0
  %v2493 = vadd.f32 %v2177, %v2492
  %v2494 = vpop.f32.mrb[0].mxu0
  %v2495 = vpop.f32.mrb[0].mxu0
  %v2496 = vadd.f32 %v2177, %v2495
  %v2497 = vpop.f32.mrb[0].mxu0
  %2498 = vmatprep.mubr.bf16.mxu0 0
  %2499 = vmatmul.mubr.bf16.gmra.mrb[0].mxu0 %v2256
  %v2500 = vpop.f32.mrb[0].mxu0
  %v2501 = vadd.f32 %v2177, %v2500
  %v2502 = vpop.f32.mrb[0].mxu0
  %v2503 = vpop.f32.mrb[0].mxu0
  %v2504 = vadd.f32 %v2177, %v2503
  %v2505 = vpop.f32.mrb[0].mxu0
  %2506 = vmatprep.mubr.bf16.mxu0 0
  %2507 = vmatmul.mubr.bf16.gmra.mrb[0].mxu0 %v2259
  %v2508 = vpop.f32.mrb[0].mxu0
  %v2509 = vadd.f32 %v2177, %v2508
  %v2510 = vpop.f32.mrb[0].mxu0
  %v2511 = vpop.f32.mrb[0].mxu0
  %v2512 = vadd.f32 %v2177, %v2511
  %v2513 = vpop.f32.mrb[0].mxu0
  %2514 = vmatprep.mubr.bf16.mxu0 0
  %2515 = vmatmul.mubr.bf16.gmra.mrb[0].mxu0 %v2262
  %v2516 = vpop.f32.mrb[0].mxu0
  %v2517 = vadd.f32 %v2177, %v2516
  %v2518 = vpop.f32.mrb[0].mxu0
  %v2519 = vpop.f32.mrb[0].mxu0
  %v2520 = vadd.f32 %v2177, %v2519
  %v2521 = vpop.f32.mrb[0].mxu0
  %2522 = vmatprep.mubr.bf16.mxu0 0
  %2523 = vmatmul.mubr.bf16.gmra.mrb[0].mxu0 %v2265
  %v2524 = vpop.f32.mrb[0].mxu0
  %v2525 = vadd.f32 %v2177, %v2524
  %v2526 = vpop.f32.mrb[0].mxu0
  %v2527 = vpop.f32.mrb[0].mxu0
  %v2528 = vadd.f32 %v2177, %v2527
  %v2529 = vpop.f32.mrb[0].mxu0
  %2530 = vmatprep.mubr.bf16.mxu0 0
  %2531 = vmatmul.mubr.bf16.gmra.mrb[0].mxu0 %v2268
  %v2532 = vpop.f32.mrb[0].mxu0
  %v2533 = vadd.f32 %v2177, %v2532
  %v2534 = vpop.f32.mrb[0].mxu0
  %v2535 = vpop.f32.mrb[0].mxu0
  %v2536 = vadd.f32 %v2177, %v2535
  %v2537 = vpop.f32.mrb[0].mxu0
  %2538 = vmatprep.mubr.bf16.mxu0 0
  %2539 = vmatmul.mubr.bf16.gmra.mrb[0].mxu0 %v2271
  %v2540 = vpop.f32.mrb[0].mxu0
  %v2541 = vadd.f32 %v2177, %v2540
  %v2542 = vpop.f32.mrb[0].mxu0
  %v2543 = vpop.f32.mrb[0].mxu0
  %v2544 = vadd.f32 %v2177, %v2543
  %v2545 = vpop.f32.mrb[0].mxu0
  %2546 = vmatprep.mubr.bf16.mxu0 0
  %2547 = vmatmul.mubr.bf16.gmra.mrb[0].mxu0 %v2274
  %v2548 = vpop.f32.mrb[0].mxu0
  %v2549 = vadd.f32 %v2177, %v2548
  %v2550 = vpop.f32.mrb[0].mxu0
  %v2551 = vpop.f32.mrb[0].mxu0
  %v2552 = vadd.f32 %v2177, %v2551
  %v2553 = vpop.f32.mrb[0].mxu0
  %2554 = vmatprep.mubr.bf16.mxu0 0
  %2555 = vmatmul.mubr.bf16.gmra.mrb[0].mxu0 %v2277
  %v2556 = vpop.f32.mrb[0].mxu0
  %v2557 = vadd.f32 %v2177, %v2556
  %v2558 = vpop.f32.mrb[0].mxu0
  %v2559 = vpop.f32.mrb[0].mxu0
  %v2560 = vadd.f32 %v2177, %v2559
  %v2561 = vpop.f32.mrb[0].mxu0
  %2562 = vmatprep.mubr.bf16.mxu0 0
  %2563 = vmatmul.mubr.bf16.gmra.mrb[0].mxu0 %v2280
  %v2564 = vpop.f32.mrb[0].mxu0
  %v2565 = vadd.f32 %v2177, %v2564
  %v2566 = vpop.f32.mrb[0].mxu0
  %v2567 = vpop.f32.mrb[0].mxu0
  %v2568 = vadd.f32 %v2177, %v2567
  %v2569 = vpop.f32.mrb[0].mxu0
  %2570 = vdwg.mxu0
  %v2571 = vpack.c.bf16 %v2320, %v2317
  %v2572 = vpack.c.bf16 %v2328, %v2325
  %v2573 = vpack.c.bf16 %v2336, %v2333
  %v2574 = vpack.c.bf16 %v2344, %v2341
  %v2575 = vpack.c.bf16 %v2352, %v2349
  %v2576 = vpack.c.bf16 %v2360, %v2357
  %v2577 = vpack.c.bf16 %v2368, %v2365
  %v2578 = vpack.c.bf16 %v2376, %v2373
  %v2579 = vpack.c.bf16 %v2384, %v2381
  %v2580 = vpack.c.bf16 %v2392, %v2389
  %v2581 = vpack.c.bf16 %v2400, %v2397
  %v2582 = vpack.c.bf16 %v2408, %v2405
  %v2583 = vpack.c.bf16 %v2416, %v2413
  %v2584 = vpack.c.bf16 %v2424, %v2421
  %v2585 = vpack.c.bf16 %v2432, %v2429
  %v2586 = vpack.c.bf16 %v2440, %v2437
  %v2587 = vpack.c.bf16 %v2448, %v2445
  %v2588 = vpack.c.bf16 %v2456, %v2453
  %v2589 = vpack.c.bf16 %v2464, %v2461
  %v2590 = vpack.c.bf16 %v2472, %v2469
  %v2591 = vpack.c.bf16 %v2480, %v2477
  %v2592 = vpack.c.bf16 %v2488, %v2485
  %v2593 = vpack.c.bf16 %v2496, %v2493
  %v2594 = vpack.c.bf16 %v2504, %v2501
  %v2595 = vpack.c.bf16 %v2512, %v2509
  %v2596 = vpack.c.bf16 %v2520, %v2517
  %v2597 = vpack.c.bf16 %v2528, %v2525
  %v2598 = vpack.c.bf16 %v2536, %v2533
  %v2599 = vpack.c.bf16 %v2544, %v2541
  %v2600 = vpack.c.bf16 %v2552, %v2549
  %v2601 = vpack.c.bf16 %v2560, %v2557
  %v2602 = vpack.c.bf16 %v2568, %v2565
  %2603 = vmatprep.subr.bf16.mxu0 0
  %2604 = vmatpush1.bf16.msra.mxu0 %v2571
  %2605 = vmatprep.subr.bf16.mxu0 0
  %2606 = vmatpush1.bf16.msra.mxu0 %v2572
  %2607 = vmatprep.subr.bf16.mxu0 0
  %2608 = vmatpush1.bf16.msra.mxu0 %v2573
  %2609 = vmatprep.subr.bf16.mxu0 0
  %2610 = vmatpush1.bf16.msra.mxu0 %v2574
  %2611 = vmatprep.subr.bf16.mxu0 0
  %2612 = vmatpush1.bf16.msra.mxu0 0
  %2613 = vmatprep.subr.bf16.mxu0 0
  %2614 = vmatpush1.bf16.msra.mxu0 0
  %2615 = vmatprep.subr.bf16.mxu0 0
  %2616 = vmatpush1.bf16.msra.mxu0 0
  %2617 = vmatprep.subr.bf16.mxu0 0
  %2618 = vmatpush1.bf16.msra.mxu0 0
  %2619 = vmatprep.subr.bf16.mxu0 0
  %2620 = vmatpush1.bf16.msra.mxu0 0
  %2621 = vmatprep.subr.bf16.mxu0 0
  %2622 = vmatpush1.bf16.msra.mxu0 0
  %2623 = vmatprep.subr.bf16.mxu0 0
  %2624 = vmatpush1.bf16.msra.mxu0 0
  %2625 = vmatprep.subr.bf16.mxu0 0
  %2626 = vmatpush1.bf16.msra.mxu0 0
  %2627 = vmatprep.subr.bf16.mxu0 0
  %2628 = vmatpush1.bf16.msra.mxu0 0
  %2629 = vmatprep.subr.bf16.mxu0 0
  %2630 = vmatpush1.bf16.msra.mxu0 0
  %2631 = vmatprep.subr.bf16.mxu0 0
  %2632 = vmatpush1.bf16.msra.mxu0 0
  %2633 = vmatprep.subr.bf16.mxu0 0
  %2634 = vmatpush1.bf16.msra.mxu0 0
  %2635 = vmatprep.mubr.bf16.mxu0 0
  %2636 = vmatmul.mubr.bf16.gmra.mrb[0].mxu0 %v272
  %v2637 = vpop.f32.mrb[0].mxu0
  %v2638 = vadd.f32 0.0, %v2637
  %v2639 = vpop.f32.mrb[0].mxu0
  %v2640 = vpop.f32.mrb[0].mxu0
  %v2641 = vadd.f32 0.0, %v2640
  %v2642 = vpop.f32.mrb[0].mxu0
  %2643 = vmatprep.mubr.bf16.mxu0 0
  %2644 = vmatmul.mubr.bf16.gmra.mrb[0].mxu0 %v275
  %v2645 = vpop.f32.mrb[0].mxu0
  %v2646 = vadd.f32 0.0, %v2645
  %v2647 = vpop.f32.mrb[0].mxu0
  %v2648 = vpop.f32.mrb[0].mxu0
  %v2649 = vadd.f32 0.0, %v2648
  %v2650 = vpop.f32.mrb[0].mxu0
  %2651 = vmatprep.mubr.bf16.mxu0 0
  %2652 = vmatmul.mubr.bf16.gmra.mrb[0].mxu0 %v278
  %v2653 = vpop.f32.mrb[0].mxu0
  %v2654 = vadd.f32 0.0, %v2653
  %v2655 = vpop.f32.mrb[0].mxu0
  %v2656 = vpop.f32.mrb[0].mxu0
  %v2657 = vadd.f32 0.0, %v2656
  %v2658 = vpop.f32.mrb[0].mxu0
  %2659 = vmatprep.mubr.bf16.mxu0 0
  %2660 = vmatmul.mubr.bf16.gmra.mrb[0].mxu0 %v281
  %v2661 = vpop.f32.mrb[0].mxu0
  %v2662 = vadd.f32 0.0, %v2661
  %v2663 = vpop.f32.mrb[0].mxu0
  %v2664 = vpop.f32.mrb[0].mxu0
  %v2665 = vadd.f32 0.0, %v2664
  %v2666 = vpop.f32.mrb[0].mxu0
  %2667 = vdwg.mxu0
  %2668 = vmatprep.subr.bf16.mxu0 0
  %2669 = vmatpush1.bf16.msra.mxu0 %v2575
  %2670 = vmatprep.subr.bf16.mxu0 0
  %2671 = vmatpush1.bf16.msra.mxu0 %v2576
  %2672 = vmatprep.subr.bf16.mxu0 0
  %2673 = vmatpush1.bf16.msra.mxu0 %v2577
  %2674 = vmatprep.subr.bf16.mxu0 0
  %2675 = vmatpush1.bf16.msra.mxu0 %v2578
  %2676 = vmatprep.subr.bf16.mxu0 0
  %2677 = vmatpush1.bf16.msra.mxu0 0
  %2678 = vmatprep.subr.bf16.mxu0 0
  %2679 = vmatpush1.bf16.msra.mxu0 0
  %2680 = vmatprep.subr.bf16.mxu0 0
  %2681 = vmatpush1.bf16.msra.mxu0 0
  %2682 = vmatprep.subr.bf16.mxu0 0
  %2683 = vmatpush1.bf16.msra.mxu0 0
  %2684 = vmatprep.subr.bf16.mxu0 0
  %2685 = vmatpush1.bf16.msra.mxu0 0
  %2686 = vmatprep.subr.bf16.mxu0 0
  %2687 = vmatpush1.bf16.msra.mxu0 0
  %2688 = vmatprep.subr.bf16.mxu0 0
  %2689 = vmatpush1.bf16.msra.mxu0 0
  %2690 = vmatprep.subr.bf16.mxu0 0
  %2691 = vmatpush1.bf16.msra.mxu0 0
  %2692 = vmatprep.subr.bf16.mxu0 0
  %2693 = vmatpush1.bf16.msra.mxu0 0
  %2694 = vmatprep.subr.bf16.mxu0 0
  %2695 = vmatpush1.bf16.msra.mxu0 0
  %2696 = vmatprep.subr.bf16.mxu0 0
  %2697 = vmatpush1.bf16.msra.mxu0 0
  %2698 = vmatprep.subr.bf16.mxu0 0
  %2699 = vmatpush1.bf16.msra.mxu0 0
  %2700 = vmatprep.mubr.bf16.mxu0 0
  %2701 = vmatmul.mubr.bf16.gmra.mrb[0].mxu0 %v393
  %v2702 = vpop.f32.mrb[0].mxu0
  %v2703 = vadd.f32 0.0, %v2702
  %v2704 = vpop.f32.mrb[0].mxu0
  %v2705 = vpop.f32.mrb[0].mxu0
  %v2706 = vadd.f32 0.0, %v2705
  %v2707 = vpop.f32.mrb[0].mxu0
  %2708 = vmatprep.mubr.bf16.mxu0 0
  %2709 = vmatmul.mubr.bf16.gmra.mrb[0].mxu0 %v396
  %v2710 = vpop.f32.mrb[0].mxu0
  %v2711 = vadd.f32 0.0, %v2710
  %v2712 = vpop.f32.mrb[0].mxu0
  %v2713 = vpop.f32.mrb[0].mxu0
  %v2714 = vadd.f32 0.0, %v2713
  %v2715 = vpop.f32.mrb[0].mxu0
  %2716 = vmatprep.mubr.bf16.mxu0 0
  %2717 = vmatmul.mubr.bf16.gmra.mrb[0].mxu0 %v399
  %v2718 = vpop.f32.mrb[0].mxu0
  %v2719 = vadd.f32 0.0, %v2718
  %v2720 = vpop.f32.mrb[0].mxu0
  %v2721 = vpop.f32.mrb[0].mxu0
  %v2722 = vadd.f32 0.0, %v2721
  %v2723 = vpop.f32.mrb[0].mxu0
  %2724 = vmatprep.mubr.bf16.mxu0 0
  %2725 = vmatmul.mubr.bf16.gmra.mrb[0].mxu0 %v402
  %v2726 = vpop.f32.mrb[0].mxu0
  %v2727 = vadd.f32 0.0, %v2726
  %v2728 = vpop.f32.mrb[0].mxu0
  %v2729 = vpop.f32.mrb[0].mxu0
  %v2730 = vadd.f32 0.0, %v2729
  %v2731 = vpop.f32.mrb[0].mxu0
  %2732 = vdwg.mxu0
  %2733 = vmatprep.subr.bf16.mxu0 0
  %2734 = vmatpush1.bf16.msra.mxu0 %v2579
  %2735 = vmatprep.subr.bf16.mxu0 0
  %2736 = vmatpush1.bf16.msra.mxu0 %v2580
  %2737 = vmatprep.subr.bf16.mxu0 0
  %2738 = vmatpush1.bf16.msra.mxu0 %v2581
  %2739 = vmatprep.subr.bf16.mxu0 0
  %2740 = vmatpush1.bf16.msra.mxu0 %v2582
  %2741 = vmatprep.subr.bf16.mxu0 0
  %2742 = vmatpush1.bf16.msra.mxu0 0
  %2743 = vmatprep.subr.bf16.mxu0 0
  %2744 = vmatpush1.bf16.msra.mxu0 0
  %2745 = vmatprep.subr.bf16.mxu0 0
  %2746 = vmatpush1.bf16.msra.mxu0 0
  %2747 = vmatprep.subr.bf16.mxu0 0
  %2748 = vmatpush1.bf16.msra.mxu0 0
  %2749 = vmatprep.subr.bf16.mxu0 0
  %2750 = vmatpush1.bf16.msra.mxu0 0
  %2751 = vmatprep.subr.bf16.mxu0 0
  %2752 = vmatpush1.bf16.msra.mxu0 0
  %2753 = vmatprep.subr.bf16.mxu0 0
  %2754 = vmatpush1.bf16.msra.mxu0 0
  %2755 = vmatprep.subr.bf16.mxu0 0
  %2756 = vmatpush1.bf16.msra.mxu0 0
  %2757 = vmatprep.subr.bf16.mxu0 0
  %2758 = vmatpush1.bf16.msra.mxu0 0
  %2759 = vmatprep.subr.bf16.mxu0 0
  %2760 = vmatpush1.bf16.msra.mxu0 0
  %2761 = vmatprep.subr.bf16.mxu0 0
  %2762 = vmatpush1.bf16.msra.mxu0 0
  %2763 = vmatprep.subr.bf16.mxu0 0
  %2764 = vmatpush1.bf16.msra.mxu0 0
  %2765 = vmatprep.mubr.bf16.mxu0 0
  %2766 = vmatmul.mubr.bf16.gmra.mrb[0].mxu0 %v514
  %v2767 = vpop.f32.mrb[0].mxu0
  %v2768 = vadd.f32 0.0, %v2767
  %v2769 = vpop.f32.mrb[0].mxu0
  %v2770 = vpop.f32.mrb[0].mxu0
  %v2771 = vadd.f32 0.0, %v2770
  %v2772 = vpop.f32.mrb[0].mxu0
  %2773 = vmatprep.mubr.bf16.mxu0 0
  %2774 = vmatmul.mubr.bf16.gmra.mrb[0].mxu0 %v517
  %v2775 = vpop.f32.mrb[0].mxu0
  %v2776 = vadd.f32 0.0, %v2775
  %v2777 = vpop.f32.mrb[0].mxu0
  %v2778 = vpop.f32.mrb[0].mxu0
  %v2779 = vadd.f32 0.0, %v2778
  %v2780 = vpop.f32.mrb[0].mxu0
  %2781 = vmatprep.mubr.bf16.mxu0 0
  %2782 = vmatmul.mubr.bf16.gmra.mrb[0].mxu0 %v520
  %v2783 = vpop.f32.mrb[0].mxu0
  %v2784 = vadd.f32 0.0, %v2783
  %v2785 = vpop.f32.mrb[0].mxu0
  %v2786 = vpop.f32.mrb[0].mxu0
  %v2787 = vadd.f32 0.0, %v2786
  %v2788 = vpop.f32.mrb[0].mxu0
  %2789 = vmatprep.mubr.bf16.mxu0 0
  %2790 = vmatmul.mubr.bf16.gmra.mrb[0].mxu0 %v523
  %v2791 = vpop.f32.mrb[0].mxu0
  %v2792 = vadd.f32 0.0, %v2791
  %v2793 = vpop.f32.mrb[0].mxu0
  %v2794 = vpop.f32.mrb[0].mxu0
  %v2795 = vadd.f32 0.0, %v2794
  %v2796 = vpop.f32.mrb[0].mxu0
  %2797 = vdwg.mxu0
  %2798 = vmatprep.subr.bf16.mxu0 0
  %2799 = vmatpush1.bf16.msra.mxu0 %v2583
  %2800 = vmatprep.subr.bf16.mxu0 0
  %2801 = vmatpush1.bf16.msra.mxu0 %v2584
  %2802 = vmatprep.subr.bf16.mxu0 0
  %2803 = vmatpush1.bf16.msra.mxu0 %v2585
  %2804 = vmatprep.subr.bf16.mxu0 0
  %2805 = vmatpush1.bf16.msra.mxu0 %v2586
  %2806 = vmatprep.subr.bf16.mxu0 0
  %2807 = vmatpush1.bf16.msra.mxu0 0
  %2808 = vmatprep.subr.bf16.mxu0 0
  %2809 = vmatpush1.bf16.msra.mxu0 0
  %2810 = vmatprep.subr.bf16.mxu0 0
  %2811 = vmatpush1.bf16.msra.mxu0 0
  %2812 = vmatprep.subr.bf16.mxu0 0
  %2813 = vmatpush1.bf16.msra.mxu0 0
  %2814 = vmatprep.subr.bf16.mxu0 0
  %2815 = vmatpush1.bf16.msra.mxu0 0
  %2816 = vmatprep.subr.bf16.mxu0 0
  %2817 = vmatpush1.bf16.msra.mxu0 0
  %2818 = vmatprep.subr.bf16.mxu0 0
  %2819 = vmatpush1.bf16.msra.mxu0 0
  %2820 = vmatprep.subr.bf16.mxu0 0
  %2821 = vmatpush1.bf16.msra.mxu0 0
  %2822 = vmatprep.subr.bf16.mxu0 0
  %2823 = vmatpush1.bf16.msra.mxu0 0
  %2824 = vmatprep.subr.bf16.mxu0 0
  %2825 = vmatpush1.bf16.msra.mxu0 0
  %2826 = vmatprep.subr.bf16.mxu0 0
  %2827 = vmatpush1.bf16.msra.mxu0 0
  %2828 = vmatprep.subr.bf16.mxu0 0
  %2829 = vmatpush1.bf16.msra.mxu0 0
  %2830 = vmatprep.mubr.bf16.mxu0 0
  %2831 = vmatmul.mubr.bf16.gmra.mrb[0].mxu0 %v635
  %v2832 = vpop.f32.mrb[0].mxu0
  %v2833 = vadd.f32 0.0, %v2832
  %v2834 = vpop.f32.mrb[0].mxu0
  %v2835 = vpop.f32.mrb[0].mxu0
  %v2836 = vadd.f32 0.0, %v2835
  %v2837 = vpop.f32.mrb[0].mxu0
  %2838 = vmatprep.mubr.bf16.mxu0 0
  %2839 = vmatmul.mubr.bf16.gmra.mrb[0].mxu0 %v638
  %v2840 = vpop.f32.mrb[0].mxu0
  %v2841 = vadd.f32 0.0, %v2840
  %v2842 = vpop.f32.mrb[0].mxu0
  %v2843 = vpop.f32.mrb[0].mxu0
  %v2844 = vadd.f32 0.0, %v2843
  %v2845 = vpop.f32.mrb[0].mxu0
  %2846 = vmatprep.mubr.bf16.mxu0 0
  %2847 = vmatmul.mubr.bf16.gmra.mrb[0].mxu0 %v641
  %v2848 = vpop.f32.mrb[0].mxu0
  %v2849 = vadd.f32 0.0, %v2848
  %v2850 = vpop.f32.mrb[0].mxu0
  %v2851 = vpop.f32.mrb[0].mxu0
  %v2852 = vadd.f32 0.0, %v2851
  %v2853 = vpop.f32.mrb[0].mxu0
  %2854 = vmatprep.mubr.bf16.mxu0 0
  %2855 = vmatmul.mubr.bf16.gmra.mrb[0].mxu0 %v644
  %v2856 = vpop.f32.mrb[0].mxu0
  %v2857 = vadd.f32 0.0, %v2856
  %v2858 = vpop.f32.mrb[0].mxu0
  %v2859 = vpop.f32.mrb[0].mxu0
  %v2860 = vadd.f32 0.0, %v2859
  %v2861 = vpop.f32.mrb[0].mxu0
  %2862 = vdwg.mxu0
  %2863 = vmatprep.subr.bf16.mxu0 0
  %2864 = vmatpush1.bf16.msra.mxu0 %v2587
  %2865 = vmatprep.subr.bf16.mxu0 0
  %2866 = vmatpush1.bf16.msra.mxu0 %v2588
  %2867 = vmatprep.subr.bf16.mxu0 0
  %2868 = vmatpush1.bf16.msra.mxu0 %v2589
  %2869 = vmatprep.subr.bf16.mxu0 0
  %2870 = vmatpush1.bf16.msra.mxu0 %v2590
  %2871 = vmatprep.subr.bf16.mxu0 0
  %2872 = vmatpush1.bf16.msra.mxu0 0
  %2873 = vmatprep.subr.bf16.mxu0 0
  %2874 = vmatpush1.bf16.msra.mxu0 0
  %2875 = vmatprep.subr.bf16.mxu0 0
  %2876 = vmatpush1.bf16.msra.mxu0 0
  %2877 = vmatprep.subr.bf16.mxu0 0
  %2878 = vmatpush1.bf16.msra.mxu0 0
  %2879 = vmatprep.subr.bf16.mxu0 0
  %2880 = vmatpush1.bf16.msra.mxu0 0
  %2881 = vmatprep.subr.bf16.mxu0 0
  %2882 = vmatpush1.bf16.msra.mxu0 0
  %2883 = vmatprep.subr.bf16.mxu0 0
  %2884 = vmatpush1.bf16.msra.mxu0 0
  %2885 = vmatprep.subr.bf16.mxu0 0
  %2886 = vmatpush1.bf16.msra.mxu0 0
  %2887 = vmatprep.subr.bf16.mxu0 0
  %2888 = vmatpush1.bf16.msra.mxu0 0
  %2889 = vmatprep.subr.bf16.mxu0 0
  %2890 = vmatpush1.bf16.msra.mxu0 0
  %2891 = vmatprep.subr.bf16.mxu0 0
  %2892 = vmatpush1.bf16.msra.mxu0 0
  %2893 = vmatprep.subr.bf16.mxu0 0
  %2894 = vmatpush1.bf16.msra.mxu0 0
  %2895 = vmatprep.mubr.bf16.mxu0 0
  %2896 = vmatmul.mubr.bf16.gmra.mrb[0].mxu0 %v756
  %v2897 = vpop.f32.mrb[0].mxu0
  %v2898 = vadd.f32 0.0, %v2897
  %v2899 = vpop.f32.mrb[0].mxu0
  %v2900 = vpop.f32.mrb[0].mxu0
  %v2901 = vadd.f32 0.0, %v2900
  %v2902 = vpop.f32.mrb[0].mxu0
  %2903 = vmatprep.mubr.bf16.mxu0 0
  %2904 = vmatmul.mubr.bf16.gmra.mrb[0].mxu0 %v759
  %v2905 = vpop.f32.mrb[0].mxu0
  %v2906 = vadd.f32 0.0, %v2905
  %v2907 = vpop.f32.mrb[0].mxu0
  %v2908 = vpop.f32.mrb[0].mxu0
  %v2909 = vadd.f32 0.0, %v2908
  %v2910 = vpop.f32.mrb[0].mxu0
  %2911 = vmatprep.mubr.bf16.mxu0 0
  %2912 = vmatmul.mubr.bf16.gmra.mrb[0].mxu0 %v762
  %v2913 = vpop.f32.mrb[0].mxu0
  %v2914 = vadd.f32 0.0, %v2913
  %v2915 = vpop.f32.mrb[0].mxu0
  %v2916 = vpop.f32.mrb[0].mxu0
  %v2917 = vadd.f32 0.0, %v2916
  %v2918 = vpop.f32.mrb[0].mxu0
  %2919 = vmatprep.mubr.bf16.mxu0 0
  %2920 = vmatmul.mubr.bf16.gmra.mrb[0].mxu0 %v765
  %v2921 = vpop.f32.mrb[0].mxu0
  %v2922 = vadd.f32 0.0, %v2921
  %v2923 = vpop.f32.mrb[0].mxu0
  %v2924 = vpop.f32.mrb[0].mxu0
  %v2925 = vadd.f32 0.0, %v2924
  %v2926 = vpop.f32.mrb[0].mxu0
  %2927 = vdwg.mxu0
  %2928 = vmatprep.subr.bf16.mxu0 0
  %2929 = vmatpush1.bf16.msra.mxu0 %v2591
  %2930 = vmatprep.subr.bf16.mxu0 0
  %2931 = vmatpush1.bf16.msra.mxu0 %v2592
  %2932 = vmatprep.subr.bf16.mxu0 0
  %2933 = vmatpush1.bf16.msra.mxu0 %v2593
  %2934 = vmatprep.subr.bf16.mxu0 0
  %2935 = vmatpush1.bf16.msra.mxu0 %v2594
  %2936 = vmatprep.subr.bf16.mxu0 0
  %2937 = vmatpush1.bf16.msra.mxu0 0
  %2938 = vmatprep.subr.bf16.mxu0 0
  %2939 = vmatpush1.bf16.msra.mxu0 0
  %2940 = vmatprep.subr.bf16.mxu0 0
  %2941 = vmatpush1.bf16.msra.mxu0 0
  %2942 = vmatprep.subr.bf16.mxu0 0
  %2943 = vmatpush1.bf16.msra.mxu0 0
  %2944 = vmatprep.subr.bf16.mxu0 0
  %2945 = vmatpush1.bf16.msra.mxu0 0
  %2946 = vmatprep.subr.bf16.mxu0 0
  %2947 = vmatpush1.bf16.msra.mxu0 0
  %2948 = vmatprep.subr.bf16.mxu0 0
  %2949 = vmatpush1.bf16.msra.mxu0 0
  %2950 = vmatprep.subr.bf16.mxu0 0
  %2951 = vmatpush1.bf16.msra.mxu0 0
  %2952 = vmatprep.subr.bf16.mxu0 0
  %2953 = vmatpush1.bf16.msra.mxu0 0
  %2954 = vmatprep.subr.bf16.mxu0 0
  %2955 = vmatpush1.bf16.msra.mxu0 0
  %2956 = vmatprep.subr.bf16.mxu0 0
  %2957 = vmatpush1.bf16.msra.mxu0 0
  %2958 = vmatprep.subr.bf16.mxu0 0
  %2959 = vmatpush1.bf16.msra.mxu0 0
  %2960 = vmatprep.mubr.bf16.mxu0 0
  %2961 = vmatmul.mubr.bf16.gmra.mrb[0].mxu0 %v877
  %v2962 = vpop.f32.mrb[0].mxu0
  %v2963 = vadd.f32 0.0, %v2962
  %v2964 = vpop.f32.mrb[0].mxu0
  %v2965 = vpop.f32.mrb[0].mxu0
  %v2966 = vadd.f32 0.0, %v2965
  %v2967 = vpop.f32.mrb[0].mxu0
  %2968 = vmatprep.mubr.bf16.mxu0 0
  %2969 = vmatmul.mubr.bf16.gmra.mrb[0].mxu0 %v880
  %v2970 = vpop.f32.mrb[0].mxu0
  %v2971 = vadd.f32 0.0, %v2970
  %v2972 = vpop.f32.mrb[0].mxu0
  %v2973 = vpop.f32.mrb[0].mxu0
  %v2974 = vadd.f32 0.0, %v2973
  %v2975 = vpop.f32.mrb[0].mxu0
  %2976 = vmatprep.mubr.bf16.mxu0 0
  %2977 = vmatmul.mubr.bf16.gmra.mrb[0].mxu0 %v883
  %v2978 = vpop.f32.mrb[0].mxu0
  %v2979 = vadd.f32 0.0, %v2978
  %v2980 = vpop.f32.mrb[0].mxu0
  %v2981 = vpop.f32.mrb[0].mxu0
  %v2982 = vadd.f32 0.0, %v2981
  %v2983 = vpop.f32.mrb[0].mxu0
  %2984 = vmatprep.mubr.bf16.mxu0 0
  %2985 = vmatmul.mubr.bf16.gmra.mrb[0].mxu0 %v886
  %v2986 = vpop.f32.mrb[0].mxu0
  %v2987 = vadd.f32 0.0, %v2986
  %v2988 = vpop.f32.mrb[0].mxu0
  %v2989 = vpop.f32.mrb[0].mxu0
  %v2990 = vadd.f32 0.0, %v2989
  %v2991 = vpop.f32.mrb[0].mxu0
  %2992 = vdwg.mxu0
  %2993 = vmatprep.subr.bf16.mxu0 0
  %2994 = vmatpush1.bf16.msra.mxu0 %v2595
  %2995 = vmatprep.subr.bf16.mxu0 0
  %2996 = vmatpush1.bf16.msra.mxu0 %v2596
  %2997 = vmatprep.subr.bf16.mxu0 0
  %2998 = vmatpush1.bf16.msra.mxu0 %v2597
  %2999 = vmatprep.subr.bf16.mxu0 0
  %3000 = vmatpush1.bf16.msra.mxu0 %v2598
  %3001 = vmatprep.subr.bf16.mxu0 0
  %3002 = vmatpush1.bf16.msra.mxu0 0
  %3003 = vmatprep.subr.bf16.mxu0 0
  %3004 = vmatpush1.bf16.msra.mxu0 0
  %3005 = vmatprep.subr.bf16.mxu0 0
  %3006 = vmatpush1.bf16.msra.mxu0 0
  %3007 = vmatprep.subr.bf16.mxu0 0
  %3008 = vmatpush1.bf16.msra.mxu0 0
  %3009 = vmatprep.subr.bf16.mxu0 0
  %3010 = vmatpush1.bf16.msra.mxu0 0
  %3011 = vmatprep.subr.bf16.mxu0 0
  %3012 = vmatpush1.bf16.msra.mxu0 0
  %3013 = vmatprep.subr.bf16.mxu0 0
  %3014 = vmatpush1.bf16.msra.mxu0 0
  %3015 = vmatprep.subr.bf16.mxu0 0
  %3016 = vmatpush1.bf16.msra.mxu0 0
  %3017 = vmatprep.subr.bf16.mxu0 0
  %3018 = vmatpush1.bf16.msra.mxu0 0
  %3019 = vmatprep.subr.bf16.mxu0 0
  %3020 = vmatpush1.bf16.msra.mxu0 0
  %3021 = vmatprep.subr.bf16.mxu0 0
  %3022 = vmatpush1.bf16.msra.mxu0 0
  %3023 = vmatprep.subr.bf16.mxu0 0
  %3024 = vmatpush1.bf16.msra.mxu0 0
  %3025 = vmatprep.mubr.bf16.mxu0 0
  %3026 = vmatmul.mubr.bf16.gmra.mrb[0].mxu0 %v998
  %v3027 = vpop.f32.mrb[0].mxu0
  %v3028 = vadd.f32 0.0, %v3027
  %v3029 = vpop.f32.mrb[0].mxu0
  %v3030 = vpop.f32.mrb[0].mxu0
  %v3031 = vadd.f32 0.0, %v3030
  %v3032 = vpop.f32.mrb[0].mxu0
  %3033 = vmatprep.mubr.bf16.mxu0 0
  %3034 = vmatmul.mubr.bf16.gmra.mrb[0].mxu0 %v1001
  %v3035 = vpop.f32.mrb[0].mxu0
  %v3036 = vadd.f32 0.0, %v3035
  %v3037 = vpop.f32.mrb[0].mxu0
  %v3038 = vpop.f32.mrb[0].mxu0
  %v3039 = vadd.f32 0.0, %v3038
  %v3040 = vpop.f32.mrb[0].mxu0
  %3041 = vmatprep.mubr.bf16.mxu0 0
  %3042 = vmatmul.mubr.bf16.gmra.mrb[0].mxu0 %v1004
  %v3043 = vpop.f32.mrb[0].mxu0
  %v3044 = vadd.f32 0.0, %v3043
  %v3045 = vpop.f32.mrb[0].mxu0
  %v3046 = vpop.f32.mrb[0].mxu0
  %v3047 = vadd.f32 0.0, %v3046
  %v3048 = vpop.f32.mrb[0].mxu0
  %3049 = vmatprep.mubr.bf16.mxu0 0
  %3050 = vmatmul.mubr.bf16.gmra.mrb[0].mxu0 %v1007
  %v3051 = vpop.f32.mrb[0].mxu0
  %v3052 = vadd.f32 0.0, %v3051
  %v3053 = vpop.f32.mrb[0].mxu0
  %v3054 = vpop.f32.mrb[0].mxu0
  %v3055 = vadd.f32 0.0, %v3054
  %v3056 = vpop.f32.mrb[0].mxu0
  %3057 = vdwg.mxu0
  %3058 = vmatprep.subr.bf16.mxu0 0
  %3059 = vmatpush1.bf16.msra.mxu0 %v2599
  %3060 = vmatprep.subr.bf16.mxu0 0
  %3061 = vmatpush1.bf16.msra.mxu0 %v2600
  %3062 = vmatprep.subr.bf16.mxu0 0
  %3063 = vmatpush1.bf16.msra.mxu0 %v2601
  %3064 = vmatprep.subr.bf16.mxu0 0
  %3065 = vmatpush1.bf16.msra.mxu0 %v2602
  %3066 = vmatprep.subr.bf16.mxu0 0
  %3067 = vmatpush1.bf16.msra.mxu0 0
  %3068 = vmatprep.subr.bf16.mxu0 0
  %3069 = vmatpush1.bf16.msra.mxu0 0
  %3070 = vmatprep.subr.bf16.mxu0 0
  %3071 = vmatpush1.bf16.msra.mxu0 0
  %3072 = vmatprep.subr.bf16.mxu0 0
  %3073 = vmatpush1.bf16.msra.mxu0 0
  %3074 = vmatprep.subr.bf16.mxu0 0
  %3075 = vmatpush1.bf16.msra.mxu0 0
  %3076 = vmatprep.subr.bf16.mxu0 0
  %3077 = vmatpush1.bf16.msra.mxu0 0
  %3078 = vmatprep.subr.bf16.mxu0 0
  %3079 = vmatpush1.bf16.msra.mxu0 0
  %3080 = vmatprep.subr.bf16.mxu0 0
  %3081 = vmatpush1.bf16.msra.mxu0 0
  %3082 = vmatprep.subr.bf16.mxu0 0
  %3083 = vmatpush1.bf16.msra.mxu0 0
  %3084 = vmatprep.subr.bf16.mxu0 0
  %3085 = vmatpush1.bf16.msra.mxu0 0
  %3086 = vmatprep.subr.bf16.mxu0 0
  %3087 = vmatpush1.bf16.msra.mxu0 0
  %3088 = vmatprep.subr.bf16.mxu0 0
  %3089 = vmatpush1.bf16.msra.mxu0 0
  %3090 = vmatprep.mubr.bf16.mxu0 0
  %3091 = vmatmul.mubr.bf16.gmra.mrb[0].mxu0 %v1119
  %v3092 = vpop.f32.mrb[0].mxu0
  %v3093 = vadd.f32 0.0, %v3092
  %v3094 = vpop.f32.mrb[0].mxu0
  %v3095 = vpop.f32.mrb[0].mxu0
  %v3096 = vadd.f32 0.0, %v3095
  %v3097 = vpop.f32.mrb[0].mxu0
  %3098 = vmatprep.mubr.bf16.mxu0 0
  %3099 = vmatmul.mubr.bf16.gmra.mrb[0].mxu0 %v1122
  %v3100 = vpop.f32.mrb[0].mxu0
  %v3101 = vadd.f32 0.0, %v3100
  %v3102 = vpop.f32.mrb[0].mxu0
  %v3103 = vpop.f32.mrb[0].mxu0
  %v3104 = vadd.f32 0.0, %v3103
  %v3105 = vpop.f32.mrb[0].mxu0
  %3106 = vmatprep.mubr.bf16.mxu0 0
  %3107 = vmatmul.mubr.bf16.gmra.mrb[0].mxu0 %v1125
  %v3108 = vpop.f32.mrb[0].mxu0
  %v3109 = vadd.f32 0.0, %v3108
  %v3110 = vpop.f32.mrb[0].mxu0
  %v3111 = vpop.f32.mrb[0].mxu0
  %v3112 = vadd.f32 0.0, %v3111
  %v3113 = vpop.f32.mrb[0].mxu0
  %3114 = vmatprep.mubr.bf16.mxu0 0
  %3115 = vmatmul.mubr.bf16.gmra.mrb[0].mxu0 %v1128
  %v3116 = vpop.f32.mrb[0].mxu0
  %v3117 = vadd.f32 0.0, %v3116
  %v3118 = vpop.f32.mrb[0].mxu0
  %v3119 = vpop.f32.mrb[0].mxu0
  %v3120 = vadd.f32 0.0, %v3119
  %v3121 = vpop.f32.mrb[0].mxu0
  %3122 = vdwg.mxu0
  %v3123 = vpack.c.bf16 %v2641, %v2638
  %v3124 = vpack.c.bf16 %v2649, %v2646
  %v3125 = vpack.c.bf16 %v2657, %v2654
  %v3126 = vpack.c.bf16 %v2665, %v2662
  %v3127 = vpack.c.bf16 %v2706, %v2703
  %v3128 = vpack.c.bf16 %v2714, %v2711
  %v3129 = vpack.c.bf16 %v2722, %v2719
  %v3130 = vpack.c.bf16 %v2730, %v2727
  %v3131 = vpack.c.bf16 %v2771, %v2768
  %v3132 = vpack.c.bf16 %v2779, %v2776
  %v3133 = vpack.c.bf16 %v2787, %v2784
  %v3134 = vpack.c.bf16 %v2795, %v2792
  %v3135 = vpack.c.bf16 %v2836, %v2833
  %v3136 = vpack.c.bf16 %v2844, %v2841
  %v3137 = vpack.c.bf16 %v2852, %v2849
  %v3138 = vpack.c.bf16 %v2860, %v2857
  %v3139 = vpack.c.bf16 %v2901, %v2898
  %v3140 = vpack.c.bf16 %v2909, %v2906
  %v3141 = vpack.c.bf16 %v2917, %v2914
  %v3142 = vpack.c.bf16 %v2925, %v2922
  %v3143 = vpack.c.bf16 %v2966, %v2963
  %v3144 = vpack.c.bf16 %v2974, %v2971
  %v3145 = vpack.c.bf16 %v2982, %v2979
  %v3146 = vpack.c.bf16 %v2990, %v2987
  %v3147 = vpack.c.bf16 %v3031, %v3028
  %v3148 = vpack.c.bf16 %v3039, %v3036
  %v3149 = vpack.c.bf16 %v3047, %v3044
  %v3150 = vpack.c.bf16 %v3055, %v3052
  %v3151 = vpack.c.bf16 %v3096, %v3093
  %v3152 = vpack.c.bf16 %v3104, %v3101
  %v3153 = vpack.c.bf16 %v3112, %v3109
  %v3154 = vpack.c.bf16 %v3120, %v3117
  %v3155 = vld [vmem:[%s5] sm:$0xf]
  %v3156 = vld [vmem:[%s5 + $0x4] sm:$0xf]
  %v3157 = vld [vmem:[%s5 + $0x8] sm:$0xf]
  %v3158 = vld [vmem:[%s5 + $0xc] sm:$0xf]
  %v3159 = vld [vmem:[%s6] sm:$0x1]
  %v3161 = vlaneseq
  %v3162 = vshrl.u32 %v3161, 7
  %v3163 = vsub.s32 0, %v3162
  %v3164 = vrot.slane %v3159, %v3163
  %v3170 = vunpack.c.l.b16 %v3155
  %v3171 = vunpack.c.l.b16 %v3156
  %v3172 = vunpack.c.l.b16 %v3157
  %v3173 = vunpack.c.l.b16 %v3158
  %v3174 = vpack.c.b16 %v3171, %v3170
  %v3175 = vpack.c.b16 %v3173, %v3172
  %vm3178 = vcmask 261120
  %v3180 = vsel %vm3178, %v3123, 0
  %v3183 = vsel %vm3178, %v3124, 0
  %v3186 = vsel %vm3178, %v3125, 0
  %v3189 = vsel %vm3178, %v3126, 0
  %v3192 = vsel %vm3178, %v3127, 0
  %v3195 = vsel %vm3178, %v3128, 0
  %v3198 = vsel %vm3178, %v3129, 0
  %v3201 = vsel %vm3178, %v3130, 0
  %v3204 = vsel %vm3178, %v3131, 0
  %v3207 = vsel %vm3178, %v3132, 0
  %v3210 = vsel %vm3178, %v3133, 0
  %v3213 = vsel %vm3178, %v3134, 0
  %v3216 = vsel %vm3178, %v3135, 0
  %v3219 = vsel %vm3178, %v3136, 0
  %v3222 = vsel %vm3178, %v3137, 0
  %v3225 = vsel %vm3178, %v3138, 0
  %v3228 = vsel %vm3178, %v3139, 0
  %v3231 = vsel %vm3178, %v3140, 0
  %v3234 = vsel %vm3178, %v3141, 0
  %v3237 = vsel %vm3178, %v3142, 0
  %v3240 = vsel %vm3178, %v3143, 0
  %v3243 = vsel %vm3178, %v3144, 0
  %v3246 = vsel %vm3178, %v3145, 0
  %v3249 = vsel %vm3178, %v3146, 0
  %v3252 = vsel %vm3178, %v3147, 0
  %v3255 = vsel %vm3178, %v3148, 0
  %v3258 = vsel %vm3178, %v3149, 0
  %v3261 = vsel %vm3178, %v3150, 0
  %v3264 = vsel %vm3178, %v3151, 0
  %v3267 = vsel %vm3178, %v3152, 0
  %v3270 = vsel %vm3178, %v3153, 0
  %v3273 = vsel %vm3178, %v3154, 0
  %3275 = vmatprep.subr.bf16.mxu0 0
  %3276 = vmatpush1.bf16.msra.mxu0 %v3174
  %3277 = vmatprep.subr.bf16.mxu0 0
  %3278 = vmatpush1.bf16.msra.mxu0 %v3175
  %3279 = vmatprep.subr.bf16.mxu0 0
  %3280 = vmatpush1.bf16.msra.mxu0 0
  %3281 = vmatprep.subr.bf16.mxu0 0
  %3282 = vmatpush1.bf16.msra.mxu0 0
  %3283 = vmatprep.subr.bf16.mxu0 0
  %3284 = vmatpush1.bf16.msra.mxu0 0
  %3285 = vmatprep.subr.bf16.mxu0 0
  %3286 = vmatpush1.bf16.msra.mxu0 0
  %3287 = vmatprep.subr.bf16.mxu0 0
  %3288 = vmatpush1.bf16.msra.mxu0 0
  %3289 = vmatprep.subr.bf16.mxu0 0
  %3290 = vmatpush1.bf16.msra.mxu0 0
  %3291 = vmatprep.subr.bf16.mxu0 0
  %3292 = vmatpush1.bf16.msra.mxu0 0
  %3293 = vmatprep.subr.bf16.mxu0 0
  %3294 = vmatpush1.bf16.msra.mxu0 0
  %3295 = vmatprep.subr.bf16.mxu0 0
  %3296 = vmatpush1.bf16.msra.mxu0 0
  %3297 = vmatprep.subr.bf16.mxu0 0
  %3298 = vmatpush1.bf16.msra.mxu0 0
  %3299 = vmatprep.subr.bf16.mxu0 0
  %3300 = vmatpush1.bf16.msra.mxu0 0
  %3301 = vmatprep.subr.bf16.mxu0 0
  %3302 = vmatpush1.bf16.msra.mxu0 0
  %3303 = vmatprep.subr.bf16.mxu0 0
  %3304 = vmatpush1.bf16.msra.mxu0 0
  %3305 = vmatprep.subr.bf16.mxu0 0
  %3306 = vmatpush1.bf16.msra.mxu0 0
  %3307 = vmatprep.mubr.bf16.mxu0 0
  %3308 = vmatmul.mubr.bf16.gmra.mrb[0].mxu0 %v3180
  %v3309 = vpop.f32.mrb[0].mxu0
  %v3310 = vadd.f32 %v3164, %v3309
  %v3311 = vpop.f32.mrb[0].mxu0
  %v3312 = vpop.f32.mrb[0].mxu0
  %v3313 = vadd.f32 %v3164, %v3312
  %v3314 = vpop.f32.mrb[0].mxu0
  %3315 = vmatprep.mubr.bf16.mxu0 0
  %3316 = vmatmul.mubr.bf16.gmra.mrb[0].mxu0 %v3183
  %v3317 = vpop.f32.mrb[0].mxu0
  %v3318 = vadd.f32 %v3164, %v3317
  %v3319 = vpop.f32.mrb[0].mxu0
  %v3320 = vpop.f32.mrb[0].mxu0
  %v3321 = vadd.f32 %v3164, %v3320
  %v3322 = vpop.f32.mrb[0].mxu0
  %3323 = vmatprep.mubr.bf16.mxu0 0
  %3324 = vmatmul.mubr.bf16.gmra.mrb[0].mxu0 %v3186
  %v3325 = vpop.f32.mrb[0].mxu0
  %v3326 = vadd.f32 %v3164, %v3325
  %v3327 = vpop.f32.mrb[0].mxu0
  %v3328 = vpop.f32.mrb[0].mxu0
  %v3329 = vadd.f32 %v3164, %v3328
  %v3330 = vpop.f32.mrb[0].mxu0
  %3331 = vmatprep.mubr.bf16.mxu0 0
  %3332 = vmatmul.mubr.bf16.gmra.mrb[0].mxu0 %v3189
  %v3333 = vpop.f32.mrb[0].mxu0
  %v3334 = vadd.f32 %v3164, %v3333
  %v3335 = vpop.f32.mrb[0].mxu0
  %v3336 = vpop.f32.mrb[0].mxu0
  %v3337 = vadd.f32 %v3164, %v3336
  %v3338 = vpop.f32.mrb[0].mxu0
  %3339 = vmatprep.mubr.bf16.mxu0 0
  %3340 = vmatmul.mubr.bf16.gmra.mrb[0].mxu0 %v3192
  %v3341 = vpop.f32.mrb[0].mxu0
  %v3342 = vadd.f32 %v3164, %v3341
  %v3343 = vpop.f32.mrb[0].mxu0
  %v3344 = vpop.f32.mrb[0].mxu0
  %v3345 = vadd.f32 %v3164, %v3344
  %v3346 = vpop.f32.mrb[0].mxu0
  %3347 = vmatprep.mubr.bf16.mxu0 0
  %3348 = vmatmul.mubr.bf16.gmra.mrb[0].mxu0 %v3195
  %v3349 = vpop.f32.mrb[0].mxu0
  %v3350 = vadd.f32 %v3164, %v3349
  %v3351 = vpop.f32.mrb[0].mxu0
  %v3352 = vpop.f32.mrb[0].mxu0
  %v3353 = vadd.f32 %v3164, %v3352
  %v3354 = vpop.f32.mrb[0].mxu0
  %3355 = vmatprep.mubr.bf16.mxu0 0
  %3356 = vmatmul.mubr.bf16.gmra.mrb[0].mxu0 %v3198
  %v3357 = vpop.f32.mrb[0].mxu0
  %v3358 = vadd.f32 %v3164, %v3357
  %v3359 = vpop.f32.mrb[0].mxu0
  %v3360 = vpop.f32.mrb[0].mxu0
  %v3361 = vadd.f32 %v3164, %v3360
  %v3362 = vpop.f32.mrb[0].mxu0
  %3363 = vmatprep.mubr.bf16.mxu0 0
  %3364 = vmatmul.mubr.bf16.gmra.mrb[0].mxu0 %v3201
  %v3365 = vpop.f32.mrb[0].mxu0
  %v3366 = vadd.f32 %v3164, %v3365
  %v3367 = vpop.f32.mrb[0].mxu0
  %v3368 = vpop.f32.mrb[0].mxu0
  %v3369 = vadd.f32 %v3164, %v3368
  %v3370 = vpop.f32.mrb[0].mxu0
  %3371 = vmatprep.mubr.bf16.mxu0 0
  %3372 = vmatmul.mubr.bf16.gmra.mrb[0].mxu0 %v3204
  %v3373 = vpop.f32.mrb[0].mxu0
  %v3374 = vadd.f32 %v3164, %v3373
  %v3375 = vpop.f32.mrb[0].mxu0
  %v3376 = vpop.f32.mrb[0].mxu0
  %v3377 = vadd.f32 %v3164, %v3376
  %v3378 = vpop.f32.mrb[0].mxu0
  %3379 = vmatprep.mubr.bf16.mxu0 0
  %3380 = vmatmul.mubr.bf16.gmra.mrb[0].mxu0 %v3207
  %v3381 = vpop.f32.mrb[0].mxu0
  %v3382 = vadd.f32 %v3164, %v3381
  %v3383 = vpop.f32.mrb[0].mxu0
  %v3384 = vpop.f32.mrb[0].mxu0
  %v3385 = vadd.f32 %v3164, %v3384
  %v3386 = vpop.f32.mrb[0].mxu0
  %3387 = vmatprep.mubr.bf16.mxu0 0
  %3388 = vmatmul.mubr.bf16.gmra.mrb[0].mxu0 %v3210
  %v3389 = vpop.f32.mrb[0].mxu0
  %v3390 = vadd.f32 %v3164, %v3389
  %v3391 = vpop.f32.mrb[0].mxu0
  %v3392 = vpop.f32.mrb[0].mxu0
  %v3393 = vadd.f32 %v3164, %v3392
  %v3394 = vpop.f32.mrb[0].mxu0
  %3395 = vmatprep.mubr.bf16.mxu0 0
  %3396 = vmatmul.mubr.bf16.gmra.mrb[0].mxu0 %v3213
  %v3397 = vpop.f32.mrb[0].mxu0
  %v3398 = vadd.f32 %v3164, %v3397
  %v3399 = vpop.f32.mrb[0].mxu0
  %v3400 = vpop.f32.mrb[0].mxu0
  %v3401 = vadd.f32 %v3164, %v3400
  %v3402 = vpop.f32.mrb[0].mxu0
  %3403 = vmatprep.mubr.bf16.mxu0 0
  %3404 = vmatmul.mubr.bf16.gmra.mrb[0].mxu0 %v3216
  %v3405 = vpop.f32.mrb[0].mxu0
  %v3406 = vadd.f32 %v3164, %v3405
  %v3407 = vpop.f32.mrb[0].mxu0
  %v3408 = vpop.f32.mrb[0].mxu0
  %v3409 = vadd.f32 %v3164, %v3408
  %v3410 = vpop.f32.mrb[0].mxu0
  %3411 = vmatprep.mubr.bf16.mxu0 0
  %3412 = vmatmul.mubr.bf16.gmra.mrb[0].mxu0 %v3219
  %v3413 = vpop.f32.mrb[0].mxu0
  %v3414 = vadd.f32 %v3164, %v3413
  %v3415 = vpop.f32.mrb[0].mxu0
  %v3416 = vpop.f32.mrb[0].mxu0
  %v3417 = vadd.f32 %v3164, %v3416
  %v3418 = vpop.f32.mrb[0].mxu0
  %3419 = vmatprep.mubr.bf16.mxu0 0
  %3420 = vmatmul.mubr.bf16.gmra.mrb[0].mxu0 %v3222
  %v3421 = vpop.f32.mrb[0].mxu0
  %v3422 = vadd.f32 %v3164, %v3421
  %v3423 = vpop.f32.mrb[0].mxu0
  %v3424 = vpop.f32.mrb[0].mxu0
  %v3425 = vadd.f32 %v3164, %v3424
  %v3426 = vpop.f32.mrb[0].mxu0
  %3427 = vmatprep.mubr.bf16.mxu0 0
  %3428 = vmatmul.mubr.bf16.gmra.mrb[0].mxu0 %v3225
  %v3429 = vpop.f32.mrb[0].mxu0
  %v3430 = vadd.f32 %v3164, %v3429
  %v3431 = vpop.f32.mrb[0].mxu0
  %v3432 = vpop.f32.mrb[0].mxu0
  %v3433 = vadd.f32 %v3164, %v3432
  %v3434 = vpop.f32.mrb[0].mxu0
  %3435 = vmatprep.mubr.bf16.mxu0 0
  %3436 = vmatmul.mubr.bf16.gmra.mrb[0].mxu0 %v3228
  %v3437 = vpop.f32.mrb[0].mxu0
  %v3438 = vadd.f32 %v3164, %v3437
  %v3439 = vpop.f32.mrb[0].mxu0
  %v3440 = vpop.f32.mrb[0].mxu0
  %v3441 = vadd.f32 %v3164, %v3440
  %v3442 = vpop.f32.mrb[0].mxu0
  %3443 = vmatprep.mubr.bf16.mxu0 0
  %3444 = vmatmul.mubr.bf16.gmra.mrb[0].mxu0 %v3231
  %v3445 = vpop.f32.mrb[0].mxu0
  %v3446 = vadd.f32 %v3164, %v3445
  %v3447 = vpop.f32.mrb[0].mxu0
  %v3448 = vpop.f32.mrb[0].mxu0
  %v3449 = vadd.f32 %v3164, %v3448
  %v3450 = vpop.f32.mrb[0].mxu0
  %3451 = vmatprep.mubr.bf16.mxu0 0
  %3452 = vmatmul.mubr.bf16.gmra.mrb[0].mxu0 %v3234
  %v3453 = vpop.f32.mrb[0].mxu0
  %v3454 = vadd.f32 %v3164, %v3453
  %v3455 = vpop.f32.mrb[0].mxu0
  %v3456 = vpop.f32.mrb[0].mxu0
  %v3457 = vadd.f32 %v3164, %v3456
  %v3458 = vpop.f32.mrb[0].mxu0
  %3459 = vmatprep.mubr.bf16.mxu0 0
  %3460 = vmatmul.mubr.bf16.gmra.mrb[0].mxu0 %v3237
  %v3461 = vpop.f32.mrb[0].mxu0
  %v3462 = vadd.f32 %v3164, %v3461
  %v3463 = vpop.f32.mrb[0].mxu0
  %v3464 = vpop.f32.mrb[0].mxu0
  %v3465 = vadd.f32 %v3164, %v3464
  %v3466 = vpop.f32.mrb[0].mxu0
  %3467 = vmatprep.mubr.bf16.mxu0 0
  %3468 = vmatmul.mubr.bf16.gmra.mrb[0].mxu0 %v3240
  %v3469 = vpop.f32.mrb[0].mxu0
  %v3470 = vadd.f32 %v3164, %v3469
  %v3471 = vpop.f32.mrb[0].mxu0
  %v3472 = vpop.f32.mrb[0].mxu0
  %v3473 = vadd.f32 %v3164, %v3472
  %v3474 = vpop.f32.mrb[0].mxu0
  %3475 = vmatprep.mubr.bf16.mxu0 0
  %3476 = vmatmul.mubr.bf16.gmra.mrb[0].mxu0 %v3243
  %v3477 = vpop.f32.mrb[0].mxu0
  %v3478 = vadd.f32 %v3164, %v3477
  %v3479 = vpop.f32.mrb[0].mxu0
  %v3480 = vpop.f32.mrb[0].mxu0
  %v3481 = vadd.f32 %v3164, %v3480
  %v3482 = vpop.f32.mrb[0].mxu0
  %3483 = vmatprep.mubr.bf16.mxu0 0
  %3484 = vmatmul.mubr.bf16.gmra.mrb[0].mxu0 %v3246
  %v3485 = vpop.f32.mrb[0].mxu0
  %v3486 = vadd.f32 %v3164, %v3485
  %v3487 = vpop.f32.mrb[0].mxu0
  %v3488 = vpop.f32.mrb[0].mxu0
  %v3489 = vadd.f32 %v3164, %v3488
  %v3490 = vpop.f32.mrb[0].mxu0
  %3491 = vmatprep.mubr.bf16.mxu0 0
  %3492 = vmatmul.mubr.bf16.gmra.mrb[0].mxu0 %v3249
  %v3493 = vpop.f32.mrb[0].mxu0
  %v3494 = vadd.f32 %v3164, %v3493
  %v3495 = vpop.f32.mrb[0].mxu0
  %v3496 = vpop.f32.mrb[0].mxu0
  %v3497 = vadd.f32 %v3164, %v3496
  %v3498 = vpop.f32.mrb[0].mxu0
  %3499 = vmatprep.mubr.bf16.mxu0 0
  %3500 = vmatmul.mubr.bf16.gmra.mrb[0].mxu0 %v3252
  %v3501 = vpop.f32.mrb[0].mxu0
  %v3502 = vadd.f32 %v3164, %v3501
  %v3503 = vpop.f32.mrb[0].mxu0
  %v3504 = vpop.f32.mrb[0].mxu0
  %v3505 = vadd.f32 %v3164, %v3504
  %v3506 = vpop.f32.mrb[0].mxu0
  %3507 = vmatprep.mubr.bf16.mxu0 0
  %3508 = vmatmul.mubr.bf16.gmra.mrb[0].mxu0 %v3255
  %v3509 = vpop.f32.mrb[0].mxu0
  %v3510 = vadd.f32 %v3164, %v3509
  %v3511 = vpop.f32.mrb[0].mxu0
  %v3512 = vpop.f32.mrb[0].mxu0
  %v3513 = vadd.f32 %v3164, %v3512
  %v3514 = vpop.f32.mrb[0].mxu0
  %3515 = vmatprep.mubr.bf16.mxu0 0
  %3516 = vmatmul.mubr.bf16.gmra.mrb[0].mxu0 %v3258
  %v3517 = vpop.f32.mrb[0].mxu0
  %v3518 = vadd.f32 %v3164, %v3517
  %v3519 = vpop.f32.mrb[0].mxu0
  %v3520 = vpop.f32.mrb[0].mxu0
  %v3521 = vadd.f32 %v3164, %v3520
  %v3522 = vpop.f32.mrb[0].mxu0
  %3523 = vmatprep.mubr.bf16.mxu0 0
  %3524 = vmatmul.mubr.bf16.gmra.mrb[0].mxu0 %v3261
  %v3525 = vpop.f32.mrb[0].mxu0
  %v3526 = vadd.f32 %v3164, %v3525
  %v3527 = vpop.f32.mrb[0].mxu0
  %v3528 = vpop.f32.mrb[0].mxu0
  %v3529 = vadd.f32 %v3164, %v3528
  %v3530 = vpop.f32.mrb[0].mxu0
  %3531 = vmatprep.mubr.bf16.mxu0 0
  %3532 = vmatmul.mubr.bf16.gmra.mrb[0].mxu0 %v3264
  %v3533 = vpop.f32.mrb[0].mxu0
  %v3534 = vadd.f32 %v3164, %v3533
  %v3535 = vpop.f32.mrb[0].mxu0
  %v3536 = vpop.f32.mrb[0].mxu0
  %v3537 = vadd.f32 %v3164, %v3536
  %v3538 = vpop.f32.mrb[0].mxu0
  %3539 = vmatprep.mubr.bf16.mxu0 0
  %3540 = vmatmul.mubr.bf16.gmra.mrb[0].mxu0 %v3267
  %v3541 = vpop.f32.mrb[0].mxu0
  %v3542 = vadd.f32 %v3164, %v3541
  %v3543 = vpop.f32.mrb[0].mxu0
  %v3544 = vpop.f32.mrb[0].mxu0
  %v3545 = vadd.f32 %v3164, %v3544
  %v3546 = vpop.f32.mrb[0].mxu0
  %3547 = vmatprep.mubr.bf16.mxu0 0
  %3548 = vmatmul.mubr.bf16.gmra.mrb[0].mxu0 %v3270
  %v3549 = vpop.f32.mrb[0].mxu0
  %v3550 = vadd.f32 %v3164, %v3549
  %v3551 = vpop.f32.mrb[0].mxu0
  %v3552 = vpop.f32.mrb[0].mxu0
  %v3553 = vadd.f32 %v3164, %v3552
  %v3554 = vpop.f32.mrb[0].mxu0
  %3555 = vmatprep.mubr.bf16.mxu0 0
  %3556 = vmatmul.mubr.bf16.gmra.mrb[0].mxu0 %v3273
  %v3557 = vpop.f32.mrb[0].mxu0
  %v3558 = vadd.f32 %v3164, %v3557
  %v3559 = vpop.f32.mrb[0].mxu0
  %v3560 = vpop.f32.mrb[0].mxu0
  %v3561 = vadd.f32 %v3164, %v3560
  %v3562 = vpop.f32.mrb[0].mxu0
  %3563 = vdwg.mxu0
  %v3564 = vmax.f32 %v3310, 0.0
  %v3565 = vmax.f32 %v3313, 0.0
  %v3566 = vmax.f32 %v3318, 0.0
  %v3567 = vmax.f32 %v3321, 0.0
  %v3568 = vmax.f32 %v3326, 0.0
  %v3569 = vmax.f32 %v3329, 0.0
  %v3570 = vmax.f32 %v3334, 0.0
  %v3571 = vmax.f32 %v3337, 0.0
  %v3572 = vmax.f32 %v3342, 0.0
  %v3573 = vmax.f32 %v3345, 0.0
  %v3574 = vmax.f32 %v3350, 0.0
  %v3575 = vmax.f32 %v3353, 0.0
  %v3576 = vmax.f32 %v3358, 0.0
  %v3577 = vmax.f32 %v3361, 0.0
  %v3578 = vmax.f32 %v3366, 0.0
  %v3579 = vmax.f32 %v3369, 0.0
  %v3580 = vmax.f32 %v3374, 0.0
  %v3581 = vmax.f32 %v3377, 0.0
  %v3582 = vmax.f32 %v3382, 0.0
  %v3583 = vmax.f32 %v3385, 0.0
  %v3584 = vmax.f32 %v3390, 0.0
  %v3585 = vmax.f32 %v3393, 0.0
  %v3586 = vmax.f32 %v3398, 0.0
  %v3587 = vmax.f32 %v3401, 0.0
  %v3588 = vmax.f32 %v3406, 0.0
  %v3589 = vmax.f32 %v3409, 0.0
  %v3590 = vmax.f32 %v3414, 0.0
  %v3591 = vmax.f32 %v3417, 0.0
  %v3592 = vmax.f32 %v3422, 0.0
  %v3593 = vmax.f32 %v3425, 0.0
  %v3594 = vmax.f32 %v3430, 0.0
  %v3595 = vmax.f32 %v3433, 0.0
  %v3596 = vmax.f32 %v3438, 0.0
  %v3597 = vmax.f32 %v3441, 0.0
  %v3598 = vmax.f32 %v3446, 0.0
  %v3599 = vmax.f32 %v3449, 0.0
  %v3600 = vmax.f32 %v3454, 0.0
  %v3601 = vmax.f32 %v3457, 0.0
  %v3602 = vmax.f32 %v3462, 0.0
  %v3603 = vmax.f32 %v3465, 0.0
  %v3604 = vmax.f32 %v3470, 0.0
  %v3605 = vmax.f32 %v3473, 0.0
  %v3606 = vmax.f32 %v3478, 0.0
  %v3607 = vmax.f32 %v3481, 0.0
  %v3608 = vmax.f32 %v3486, 0.0
  %v3609 = vmax.f32 %v3489, 0.0
  %v3610 = vmax.f32 %v3494, 0.0
  %v3611 = vmax.f32 %v3497, 0.0
  %v3612 = vmax.f32 %v3502, 0.0
  %v3613 = vmax.f32 %v3505, 0.0
  %v3614 = vmax.f32 %v3510, 0.0
  %v3615 = vmax.f32 %v3513, 0.0
  %v3616 = vmax.f32 %v3518, 0.0
  %v3617 = vmax.f32 %v3521, 0.0
  %v3618 = vmax.f32 %v3526, 0.0
  %v3619 = vmax.f32 %v3529, 0.0
  %v3620 = vmax.f32 %v3534, 0.0
  %v3621 = vmax.f32 %v3537, 0.0
  %v3622 = vmax.f32 %v3542, 0.0
  %v3623 = vmax.f32 %v3545, 0.0
  %v3624 = vmax.f32 %v3550, 0.0
  %v3625 = vmax.f32 %v3553, 0.0
  %v3626 = vmax.f32 %v3558, 0.0
  %v3627 = vmax.f32 %v3561, 0.0
  %v3628 = vpack.c.bf16 %v3565, %v3564
  %v3629 = vpack.c.bf16 %v3567, %v3566
  %v3630 = vpack.c.bf16 %v3569, %v3568
  %v3631 = vpack.c.bf16 %v3571, %v3570
  %v3632 = vpack.c.bf16 %v3573, %v3572
  %v3633 = vpack.c.bf16 %v3575, %v3574
  %v3634 = vpack.c.bf16 %v3577, %v3576
  %v3635 = vpack.c.bf16 %v3579, %v3578
  %v3636 = vpack.c.bf16 %v3581, %v3580
  %v3637 = vpack.c.bf16 %v3583, %v3582
  %v3638 = vpack.c.bf16 %v3585, %v3584
  %v3639 = vpack.c.bf16 %v3587, %v3586
  %v3640 = vpack.c.bf16 %v3589, %v3588
  %v3641 = vpack.c.bf16 %v3591, %v3590
  %v3642 = vpack.c.bf16 %v3593, %v3592
  %v3643 = vpack.c.bf16 %v3595, %v3594
  %v3644 = vpack.c.bf16 %v3597, %v3596
  %v3645 = vpack.c.bf16 %v3599, %v3598
  %v3646 = vpack.c.bf16 %v3601, %v3600
  %v3647 = vpack.c.bf16 %v3603, %v3602
  %v3648 = vpack.c.bf16 %v3605, %v3604
  %v3649 = vpack.c.bf16 %v3607, %v3606
  %v3650 = vpack.c.bf16 %v3609, %v3608
  %v3651 = vpack.c.bf16 %v3611, %v3610
  %v3652 = vpack.c.bf16 %v3613, %v3612
  %v3653 = vpack.c.bf16 %v3615, %v3614
  %v3654 = vpack.c.bf16 %v3617, %v3616
  %v3655 = vpack.c.bf16 %v3619, %v3618
  %v3656 = vpack.c.bf16 %v3621, %v3620
  %v3657 = vpack.c.bf16 %v3623, %v3622
  %v3658 = vpack.c.bf16 %v3625, %v3624
  %v3659 = vpack.c.bf16 %v3627, %v3626
  %v3660 = vld [vmem:[%s7] sm:$0xf]
  %v3661 = vld [vmem:[%s7 + $0x4] sm:$0xf]
  %v3662 = vld [vmem:[%s7 + $0x8] sm:$0xf]
  %v3663 = vld [vmem:[%s7 + $0xc] sm:$0xf]
  %v3668 = vunpack.c.l.b16 %v3660
  %v3669 = vunpack.c.l.b16 %v3661
  %v3670 = vunpack.c.l.b16 %v3662
  %v3671 = vunpack.c.l.b16 %v3663
  %v3672 = vpack.c.b16 %v3669, %v3668
  %v3673 = vpack.c.b16 %v3671, %v3670
  %v3677 = vsel %vm3178, %v3628, 0
  %v3680 = vsel %vm3178, %v3629, 0
  %v3683 = vsel %vm3178, %v3630, 0
  %v3686 = vsel %vm3178, %v3631, 0
  %v3689 = vsel %vm3178, %v3632, 0
  %v3692 = vsel %vm3178, %v3633, 0
  %v3695 = vsel %vm3178, %v3634, 0
  %v3698 = vsel %vm3178, %v3635, 0
  %v3701 = vsel %vm3178, %v3636, 0
  %v3704 = vsel %vm3178, %v3637, 0
  %v3707 = vsel %vm3178, %v3638, 0
  %v3710 = vsel %vm3178, %v3639, 0
  %v3713 = vsel %vm3178, %v3640, 0
  %v3716 = vsel %vm3178, %v3641, 0
  %v3719 = vsel %vm3178, %v3642, 0
  %v3722 = vsel %vm3178, %v3643, 0
  %v3725 = vsel %vm3178, %v3644, 0
  %v3728 = vsel %vm3178, %v3645, 0
  %v3731 = vsel %vm3178, %v3646, 0
  %v3734 = vsel %vm3178, %v3647, 0
  %v3737 = vsel %vm3178, %v3648, 0
  %v3740 = vsel %vm3178, %v3649, 0
  %v3743 = vsel %vm3178, %v3650, 0
  %v3746 = vsel %vm3178, %v3651, 0
  %v3749 = vsel %vm3178, %v3652, 0
  %v3752 = vsel %vm3178, %v3653, 0
  %v3755 = vsel %vm3178, %v3654, 0
  %v3758 = vsel %vm3178, %v3655, 0
  %v3761 = vsel %vm3178, %v3656, 0
  %v3764 = vsel %vm3178, %v3657, 0
  %v3767 = vsel %vm3178, %v3658, 0
  %v3770 = vsel %vm3178, %v3659, 0
  %3772 = vmatprep.subr.bf16.mxu0 0
  %3773 = vmatpush1.bf16.msra.mxu0 %v3672
  %3774 = vmatprep.subr.bf16.mxu0 0
  %3775 = vmatpush1.bf16.msra.mxu0 %v3673
  %3776 = vmatprep.subr.bf16.mxu0 0
  %3777 = vmatpush1.bf16.msra.mxu0 0
  %3778 = vmatprep.subr.bf16.mxu0 0
  %3779 = vmatpush1.bf16.msra.mxu0 0
  %3780 = vmatprep.subr.bf16.mxu0 0
  %3781 = vmatpush1.bf16.msra.mxu0 0
  %3782 = vmatprep.subr.bf16.mxu0 0
  %3783 = vmatpush1.bf16.msra.mxu0 0
  %3784 = vmatprep.subr.bf16.mxu0 0
  %3785 = vmatpush1.bf16.msra.mxu0 0
  %3786 = vmatprep.subr.bf16.mxu0 0
  %3787 = vmatpush1.bf16.msra.mxu0 0
  %3788 = vmatprep.subr.bf16.mxu0 0
  %3789 = vmatpush1.bf16.msra.mxu0 0
  %3790 = vmatprep.subr.bf16.mxu0 0
  %3791 = vmatpush1.bf16.msra.mxu0 0
  %3792 = vmatprep.subr.bf16.mxu0 0
  %3793 = vmatpush1.bf16.msra.mxu0 0
  %3794 = vmatprep.subr.bf16.mxu0 0
  %3795 = vmatpush1.bf16.msra.mxu0 0
  %3796 = vmatprep.subr.bf16.mxu0 0
  %3797 = vmatpush1.bf16.msra.mxu0 0
  %3798 = vmatprep.subr.bf16.mxu0 0
  %3799 = vmatpush1.bf16.msra.mxu0 0
  %3800 = vmatprep.subr.bf16.mxu0 0
  %3801 = vmatpush1.bf16.msra.mxu0 0
  %3802 = vmatprep.subr.bf16.mxu0 0
  %3803 = vmatpush1.bf16.msra.mxu0 0
  %3804 = vmatprep.mubr.bf16.mxu0 0
  %3805 = vmatmul.mubr.bf16.gmra.mrb[0].mxu0 %v3677
  %v3806 = vpop.f32.mrb[0].mxu0
  %v3807 = vadd.f32 0.0, %v3806
  %v3808 = vpop.f32.mrb[0].mxu0
  %v3809 = vpop.f32.mrb[0].mxu0
  %v3810 = vadd.f32 0.0, %v3809
  %v3811 = vpop.f32.mrb[0].mxu0
  %3812 = vmatprep.mubr.bf16.mxu0 0
  %3813 = vmatmul.mubr.bf16.gmra.mrb[0].mxu0 %v3680
  %v3814 = vpop.f32.mrb[0].mxu0
  %v3815 = vadd.f32 0.0, %v3814
  %v3816 = vpop.f32.mrb[0].mxu0
  %v3817 = vpop.f32.mrb[0].mxu0
  %v3818 = vadd.f32 0.0, %v3817
  %v3819 = vpop.f32.mrb[0].mxu0
  %3820 = vmatprep.mubr.bf16.mxu0 0
  %3821 = vmatmul.mubr.bf16.gmra.mrb[0].mxu0 %v3683
  %v3822 = vpop.f32.mrb[0].mxu0
  %v3823 = vadd.f32 0.0, %v3822
  %v3824 = vpop.f32.mrb[0].mxu0
  %v3825 = vpop.f32.mrb[0].mxu0
  %v3826 = vadd.f32 0.0, %v3825
  %v3827 = vpop.f32.mrb[0].mxu0
  %3828 = vmatprep.mubr.bf16.mxu0 0
  %3829 = vmatmul.mubr.bf16.gmra.mrb[0].mxu0 %v3686
  %v3830 = vpop.f32.mrb[0].mxu0
  %v3831 = vadd.f32 0.0, %v3830
  %v3832 = vpop.f32.mrb[0].mxu0
  %v3833 = vpop.f32.mrb[0].mxu0
  %v3834 = vadd.f32 0.0, %v3833
  %v3835 = vpop.f32.mrb[0].mxu0
  %3836 = vmatprep.mubr.bf16.mxu0 0
  %3837 = vmatmul.mubr.bf16.gmra.mrb[0].mxu0 %v3689
  %v3838 = vpop.f32.mrb[0].mxu0
  %v3839 = vadd.f32 0.0, %v3838
  %v3840 = vpop.f32.mrb[0].mxu0
  %v3841 = vpop.f32.mrb[0].mxu0
  %v3842 = vadd.f32 0.0, %v3841
  %v3843 = vpop.f32.mrb[0].mxu0
  %3844 = vmatprep.mubr.bf16.mxu0 0
  %3845 = vmatmul.mubr.bf16.gmra.mrb[0].mxu0 %v3692
  %v3846 = vpop.f32.mrb[0].mxu0
  %v3847 = vadd.f32 0.0, %v3846
  %v3848 = vpop.f32.mrb[0].mxu0
  %v3849 = vpop.f32.mrb[0].mxu0
  %v3850 = vadd.f32 0.0, %v3849
  %v3851 = vpop.f32.mrb[0].mxu0
  %3852 = vmatprep.mubr.bf16.mxu0 0
  %3853 = vmatmul.mubr.bf16.gmra.mrb[0].mxu0 %v3695
  %v3854 = vpop.f32.mrb[0].mxu0
  %v3855 = vadd.f32 0.0, %v3854
  %v3856 = vpop.f32.mrb[0].mxu0
  %v3857 = vpop.f32.mrb[0].mxu0
  %v3858 = vadd.f32 0.0, %v3857
  %v3859 = vpop.f32.mrb[0].mxu0
  %3860 = vmatprep.mubr.bf16.mxu0 0
  %3861 = vmatmul.mubr.bf16.gmra.mrb[0].mxu0 %v3698
  %v3862 = vpop.f32.mrb[0].mxu0
  %v3863 = vadd.f32 0.0, %v3862
  %v3864 = vpop.f32.mrb[0].mxu0
  %v3865 = vpop.f32.mrb[0].mxu0
  %v3866 = vadd.f32 0.0, %v3865
  %v3867 = vpop.f32.mrb[0].mxu0
  %3868 = vmatprep.mubr.bf16.mxu0 0
  %3869 = vmatmul.mubr.bf16.gmra.mrb[0].mxu0 %v3701
  %v3870 = vpop.f32.mrb[0].mxu0
  %v3871 = vadd.f32 0.0, %v3870
  %v3872 = vpop.f32.mrb[0].mxu0
  %v3873 = vpop.f32.mrb[0].mxu0
  %v3874 = vadd.f32 0.0, %v3873
  %v3875 = vpop.f32.mrb[0].mxu0
  %3876 = vmatprep.mubr.bf16.mxu0 0
  %3877 = vmatmul.mubr.bf16.gmra.mrb[0].mxu0 %v3704
  %v3878 = vpop.f32.mrb[0].mxu0
  %v3879 = vadd.f32 0.0, %v3878
  %v3880 = vpop.f32.mrb[0].mxu0
  %v3881 = vpop.f32.mrb[0].mxu0
  %v3882 = vadd.f32 0.0, %v3881
  %v3883 = vpop.f32.mrb[0].mxu0
  %3884 = vmatprep.mubr.bf16.mxu0 0
  %3885 = vmatmul.mubr.bf16.gmra.mrb[0].mxu0 %v3707
  %v3886 = vpop.f32.mrb[0].mxu0
  %v3887 = vadd.f32 0.0, %v3886
  %v3888 = vpop.f32.mrb[0].mxu0
  %v3889 = vpop.f32.mrb[0].mxu0
  %v3890 = vadd.f32 0.0, %v3889
  %v3891 = vpop.f32.mrb[0].mxu0
  %3892 = vmatprep.mubr.bf16.mxu0 0
  %3893 = vmatmul.mubr.bf16.gmra.mrb[0].mxu0 %v3710
  %v3894 = vpop.f32.mrb[0].mxu0
  %v3895 = vadd.f32 0.0, %v3894
  %v3896 = vpop.f32.mrb[0].mxu0
  %v3897 = vpop.f32.mrb[0].mxu0
  %v3898 = vadd.f32 0.0, %v3897
  %v3899 = vpop.f32.mrb[0].mxu0
  %3900 = vmatprep.mubr.bf16.mxu0 0
  %3901 = vmatmul.mubr.bf16.gmra.mrb[0].mxu0 %v3713
  %v3902 = vpop.f32.mrb[0].mxu0
  %v3903 = vadd.f32 0.0, %v3902
  %v3904 = vpop.f32.mrb[0].mxu0
  %v3905 = vpop.f32.mrb[0].mxu0
  %v3906 = vadd.f32 0.0, %v3905
  %v3907 = vpop.f32.mrb[0].mxu0
  %3908 = vmatprep.mubr.bf16.mxu0 0
  %3909 = vmatmul.mubr.bf16.gmra.mrb[0].mxu0 %v3716
  %v3910 = vpop.f32.mrb[0].mxu0
  %v3911 = vadd.f32 0.0, %v3910
  %v3912 = vpop.f32.mrb[0].mxu0
  %v3913 = vpop.f32.mrb[0].mxu0
  %v3914 = vadd.f32 0.0, %v3913
  %v3915 = vpop.f32.mrb[0].mxu0
  %3916 = vmatprep.mubr.bf16.mxu0 0
  %3917 = vmatmul.mubr.bf16.gmra.mrb[0].mxu0 %v3719
  %v3918 = vpop.f32.mrb[0].mxu0
  %v3919 = vadd.f32 0.0, %v3918
  %v3920 = vpop.f32.mrb[0].mxu0
  %v3921 = vpop.f32.mrb[0].mxu0
  %v3922 = vadd.f32 0.0, %v3921
  %v3923 = vpop.f32.mrb[0].mxu0
  %3924 = vmatprep.mubr.bf16.mxu0 0
  %3925 = vmatmul.mubr.bf16.gmra.mrb[0].mxu0 %v3722
  %v3926 = vpop.f32.mrb[0].mxu0
  %v3927 = vadd.f32 0.0, %v3926
  %v3928 = vpop.f32.mrb[0].mxu0
  %v3929 = vpop.f32.mrb[0].mxu0
  %v3930 = vadd.f32 0.0, %v3929
  %v3931 = vpop.f32.mrb[0].mxu0
  %3932 = vmatprep.mubr.bf16.mxu0 0
  %3933 = vmatmul.mubr.bf16.gmra.mrb[0].mxu0 %v3725
  %v3934 = vpop.f32.mrb[0].mxu0
  %v3935 = vadd.f32 0.0, %v3934
  %v3936 = vpop.f32.mrb[0].mxu0
  %v3937 = vpop.f32.mrb[0].mxu0
  %v3938 = vadd.f32 0.0, %v3937
  %v3939 = vpop.f32.mrb[0].mxu0
  %3940 = vmatprep.mubr.bf16.mxu0 0
  %3941 = vmatmul.mubr.bf16.gmra.mrb[0].mxu0 %v3728
  %v3942 = vpop.f32.mrb[0].mxu0
  %v3943 = vadd.f32 0.0, %v3942
  %v3944 = vpop.f32.mrb[0].mxu0
  %v3945 = vpop.f32.mrb[0].mxu0
  %v3946 = vadd.f32 0.0, %v3945
  %v3947 = vpop.f32.mrb[0].mxu0
  %3948 = vmatprep.mubr.bf16.mxu0 0
  %3949 = vmatmul.mubr.bf16.gmra.mrb[0].mxu0 %v3731
  %v3950 = vpop.f32.mrb[0].mxu0
  %v3951 = vadd.f32 0.0, %v3950
  %v3952 = vpop.f32.mrb[0].mxu0
  %v3953 = vpop.f32.mrb[0].mxu0
  %v3954 = vadd.f32 0.0, %v3953
  %v3955 = vpop.f32.mrb[0].mxu0
  %3956 = vmatprep.mubr.bf16.mxu0 0
  %3957 = vmatmul.mubr.bf16.gmra.mrb[0].mxu0 %v3734
  %v3958 = vpop.f32.mrb[0].mxu0
  %v3959 = vadd.f32 0.0, %v3958
  %v3960 = vpop.f32.mrb[0].mxu0
  %v3961 = vpop.f32.mrb[0].mxu0
  %v3962 = vadd.f32 0.0, %v3961
  %v3963 = vpop.f32.mrb[0].mxu0
  %3964 = vmatprep.mubr.bf16.mxu0 0
  %3965 = vmatmul.mubr.bf16.gmra.mrb[0].mxu0 %v3737
  %v3966 = vpop.f32.mrb[0].mxu0
  %v3967 = vadd.f32 0.0, %v3966
  %v3968 = vpop.f32.mrb[0].mxu0
  %v3969 = vpop.f32.mrb[0].mxu0
  %v3970 = vadd.f32 0.0, %v3969
  %v3971 = vpop.f32.mrb[0].mxu0
  %3972 = vmatprep.mubr.bf16.mxu0 0
  %3973 = vmatmul.mubr.bf16.gmra.mrb[0].mxu0 %v3740
  %v3974 = vpop.f32.mrb[0].mxu0
  %v3975 = vadd.f32 0.0, %v3974
  %v3976 = vpop.f32.mrb[0].mxu0
  %v3977 = vpop.f32.mrb[0].mxu0
  %v3978 = vadd.f32 0.0, %v3977
  %v3979 = vpop.f32.mrb[0].mxu0
  %3980 = vmatprep.mubr.bf16.mxu0 0
  %3981 = vmatmul.mubr.bf16.gmra.mrb[0].mxu0 %v3743
  %v3982 = vpop.f32.mrb[0].mxu0
  %v3983 = vadd.f32 0.0, %v3982
  %v3984 = vpop.f32.mrb[0].mxu0
  %v3985 = vpop.f32.mrb[0].mxu0
  %v3986 = vadd.f32 0.0, %v3985
  %v3987 = vpop.f32.mrb[0].mxu0
  %3988 = vmatprep.mubr.bf16.mxu0 0
  %3989 = vmatmul.mubr.bf16.gmra.mrb[0].mxu0 %v3746
  %v3990 = vpop.f32.mrb[0].mxu0
  %v3991 = vadd.f32 0.0, %v3990
  %v3992 = vpop.f32.mrb[0].mxu0
  %v3993 = vpop.f32.mrb[0].mxu0
  %v3994 = vadd.f32 0.0, %v3993
  %v3995 = vpop.f32.mrb[0].mxu0
  %3996 = vmatprep.mubr.bf16.mxu0 0
  %3997 = vmatmul.mubr.bf16.gmra.mrb[0].mxu0 %v3749
  %v3998 = vpop.f32.mrb[0].mxu0
  %v3999 = vadd.f32 0.0, %v3998
  %v4000 = vpop.f32.mrb[0].mxu0
  %v4001 = vpop.f32.mrb[0].mxu0
  %v4002 = vadd.f32 0.0, %v4001
  %v4003 = vpop.f32.mrb[0].mxu0
  %4004 = vmatprep.mubr.bf16.mxu0 0
  %4005 = vmatmul.mubr.bf16.gmra.mrb[0].mxu0 %v3752
  %v4006 = vpop.f32.mrb[0].mxu0
  %v4007 = vadd.f32 0.0, %v4006
  %v4008 = vpop.f32.mrb[0].mxu0
  %v4009 = vpop.f32.mrb[0].mxu0
  %v4010 = vadd.f32 0.0, %v4009
  %v4011 = vpop.f32.mrb[0].mxu0
  %4012 = vmatprep.mubr.bf16.mxu0 0
  %4013 = vmatmul.mubr.bf16.gmra.mrb[0].mxu0 %v3755
  %v4014 = vpop.f32.mrb[0].mxu0
  %v4015 = vadd.f32 0.0, %v4014
  %v4016 = vpop.f32.mrb[0].mxu0
  %v4017 = vpop.f32.mrb[0].mxu0
  %v4018 = vadd.f32 0.0, %v4017
  %v4019 = vpop.f32.mrb[0].mxu0
  %4020 = vmatprep.mubr.bf16.mxu0 0
  %4021 = vmatmul.mubr.bf16.gmra.mrb[0].mxu0 %v3758
  %v4022 = vpop.f32.mrb[0].mxu0
  %v4023 = vadd.f32 0.0, %v4022
  %v4024 = vpop.f32.mrb[0].mxu0
  %v4025 = vpop.f32.mrb[0].mxu0
  %v4026 = vadd.f32 0.0, %v4025
  %v4027 = vpop.f32.mrb[0].mxu0
  %4028 = vmatprep.mubr.bf16.mxu0 0
  %4029 = vmatmul.mubr.bf16.gmra.mrb[0].mxu0 %v3761
  %v4030 = vpop.f32.mrb[0].mxu0
  %v4031 = vadd.f32 0.0, %v4030
  %v4032 = vpop.f32.mrb[0].mxu0
  %v4033 = vpop.f32.mrb[0].mxu0
  %v4034 = vadd.f32 0.0, %v4033
  %v4035 = vpop.f32.mrb[0].mxu0
  %4036 = vmatprep.mubr.bf16.mxu0 0
  %4037 = vmatmul.mubr.bf16.gmra.mrb[0].mxu0 %v3764
  %v4038 = vpop.f32.mrb[0].mxu0
  %v4039 = vadd.f32 0.0, %v4038
  %v4040 = vpop.f32.mrb[0].mxu0
  %v4041 = vpop.f32.mrb[0].mxu0
  %v4042 = vadd.f32 0.0, %v4041
  %v4043 = vpop.f32.mrb[0].mxu0
  %4044 = vmatprep.mubr.bf16.mxu0 0
  %4045 = vmatmul.mubr.bf16.gmra.mrb[0].mxu0 %v3767
  %v4046 = vpop.f32.mrb[0].mxu0
  %v4047 = vadd.f32 0.0, %v4046
  %v4048 = vpop.f32.mrb[0].mxu0
  %v4049 = vpop.f32.mrb[0].mxu0
  %v4050 = vadd.f32 0.0, %v4049
  %v4051 = vpop.f32.mrb[0].mxu0
  %4052 = vmatprep.mubr.bf16.mxu0 0
  %4053 = vmatmul.mubr.bf16.gmra.mrb[0].mxu0 %v3770
  %v4054 = vpop.f32.mrb[0].mxu0
  %v4055 = vadd.f32 0.0, %v4054
  %v4056 = vpop.f32.mrb[0].mxu0
  %v4057 = vpop.f32.mrb[0].mxu0
  %v4058 = vadd.f32 0.0, %v4057
  %v4059 = vpop.f32.mrb[0].mxu0
  %4060 = vdwg.mxu0
  %v4061 = vpack.c.bf16 %v3810, %v3807
  %v4062 = vpack.c.bf16 %v3818, %v3815
  %v4063 = vpack.c.bf16 %v3826, %v3823
  %v4064 = vpack.c.bf16 %v3834, %v3831
  %v4065 = vpack.c.bf16 %v3842, %v3839
  %v4066 = vpack.c.bf16 %v3850, %v3847
  %v4067 = vpack.c.bf16 %v3858, %v3855
  %v4068 = vpack.c.bf16 %v3866, %v3863
  %v4069 = vpack.c.bf16 %v3874, %v3871
  %v4070 = vpack.c.bf16 %v3882, %v3879
  %v4071 = vpack.c.bf16 %v3890, %v3887
  %v4072 = vpack.c.bf16 %v3898, %v3895
  %v4073 = vpack.c.bf16 %v3906, %v3903
  %v4074 = vpack.c.bf16 %v3914, %v3911
  %v4075 = vpack.c.bf16 %v3922, %v3919
  %v4076 = vpack.c.bf16 %v3930, %v3927
  %v4077 = vpack.c.bf16 %v3938, %v3935
  %v4078 = vpack.c.bf16 %v3946, %v3943
  %v4079 = vpack.c.bf16 %v3954, %v3951
  %v4080 = vpack.c.bf16 %v3962, %v3959
  %v4081 = vpack.c.bf16 %v3970, %v3967
  %v4082 = vpack.c.bf16 %v3978, %v3975
  %v4083 = vpack.c.bf16 %v3986, %v3983
  %v4084 = vpack.c.bf16 %v3994, %v3991
  %v4085 = vpack.c.bf16 %v4002, %v3999
  %v4086 = vpack.c.bf16 %v4010, %v4007
  %v4087 = vpack.c.bf16 %v4018, %v4015
  %v4088 = vpack.c.bf16 %v4026, %v4023
  %v4089 = vpack.c.bf16 %v4034, %v4031
  %v4090 = vpack.c.bf16 %v4042, %v4039
  %v4091 = vpack.c.bf16 %v4050, %v4047
  %v4092 = vpack.c.bf16 %v4058, %v4055
  %4093 = vmatprep.subr.bf16.mxu0 0
  %4094 = vmatpush1.bf16.msra.mxu0 %v4061
  %4095 = vmatprep.subr.bf16.mxu0 0
  %4096 = vmatpush1.bf16.msra.mxu0 %v4062
  %4097 = vmatprep.subr.bf16.mxu0 0
  %4098 = vmatpush1.bf16.msra.mxu0 %v4063
  %4099 = vmatprep.subr.bf16.mxu0 0
  %4100 = vmatpush1.bf16.msra.mxu0 %v4064
  %4101 = vmatprep.subr.bf16.mxu0 0
  %4102 = vmatpush1.bf16.msra.mxu0 0
  %4103 = vmatprep.subr.bf16.mxu0 0
  %4104 = vmatpush1.bf16.msra.mxu0 0
  %4105 = vmatprep.subr.bf16.mxu0 0
  %4106 = vmatpush1.bf16.msra.mxu0 0
  %4107 = vmatprep.subr.bf16.mxu0 0
  %4108 = vmatpush1.bf16.msra.mxu0 0
  %4109 = vmatprep.subr.bf16.mxu0 0
  %4110 = vmatpush1.bf16.msra.mxu0 0
  %4111 = vmatprep.subr.bf16.mxu0 0
  %4112 = vmatpush1.bf16.msra.mxu0 0
  %4113 = vmatprep.subr.bf16.mxu0 0
  %4114 = vmatpush1.bf16.msra.mxu0 0
  %4115 = vmatprep.subr.bf16.mxu0 0
  %4116 = vmatpush1.bf16.msra.mxu0 0
  %4117 = vmatprep.subr.bf16.mxu0 0
  %4118 = vmatpush1.bf16.msra.mxu0 0
  %4119 = vmatprep.subr.bf16.mxu0 0
  %4120 = vmatpush1.bf16.msra.mxu0 0
  %4121 = vmatprep.subr.bf16.mxu0 0
  %4122 = vmatpush1.bf16.msra.mxu0 0
  %4123 = vmatprep.subr.bf16.mxu0 0
  %4124 = vmatpush1.bf16.msra.mxu0 0
  %4125 = vmatprep.mubr.bf16.mxu0 0
  %4126 = vmatmul.mubr.bf16.gmra.mrb[0].mxu0 %v1383
  %v4127 = vpop.f32.mrb[0].mxu0
  %v4128 = vadd.f32 0.0, %v4127
  %v4129 = vpop.f32.mrb[0].mxu0
  %v4130 = vpop.f32.mrb[0].mxu0
  %v4131 = vadd.f32 0.0, %v4130
  %v4132 = vpop.f32.mrb[0].mxu0
  %4133 = vmatprep.mubr.bf16.mxu0 0
  %4134 = vmatmul.mubr.bf16.gmra.mrb[0].mxu0 %v1386
  %v4135 = vpop.f32.mrb[0].mxu0
  %v4136 = vadd.f32 0.0, %v4135
  %v4137 = vpop.f32.mrb[0].mxu0
  %v4138 = vpop.f32.mrb[0].mxu0
  %v4139 = vadd.f32 0.0, %v4138
  %v4140 = vpop.f32.mrb[0].mxu0
  %4141 = vmatprep.mubr.bf16.mxu0 0
  %4142 = vmatmul.mubr.bf16.gmra.mrb[0].mxu0 %v1389
  %v4143 = vpop.f32.mrb[0].mxu0
  %v4144 = vadd.f32 0.0, %v4143
  %v4145 = vpop.f32.mrb[0].mxu0
  %v4146 = vpop.f32.mrb[0].mxu0
  %v4147 = vadd.f32 0.0, %v4146
  %v4148 = vpop.f32.mrb[0].mxu0
  %4149 = vmatprep.mubr.bf16.mxu0 0
  %4150 = vmatmul.mubr.bf16.gmra.mrb[0].mxu0 %v1392
  %v4151 = vpop.f32.mrb[0].mxu0
  %v4152 = vadd.f32 0.0, %v4151
  %v4153 = vpop.f32.mrb[0].mxu0
  %v4154 = vpop.f32.mrb[0].mxu0
  %v4155 = vadd.f32 0.0, %v4154
  %v4156 = vpop.f32.mrb[0].mxu0
  %4157 = vdwg.mxu0
  %4158 = vmatprep.subr.bf16.mxu0 0
  %4159 = vmatpush1.bf16.msra.mxu0 %v4065
  %4160 = vmatprep.subr.bf16.mxu0 0
  %4161 = vmatpush1.bf16.msra.mxu0 %v4066
  %4162 = vmatprep.subr.bf16.mxu0 0
  %4163 = vmatpush1.bf16.msra.mxu0 %v4067
  %4164 = vmatprep.subr.bf16.mxu0 0
  %4165 = vmatpush1.bf16.msra.mxu0 %v4068
  %4166 = vmatprep.subr.bf16.mxu0 0
  %4167 = vmatpush1.bf16.msra.mxu0 0
  %4168 = vmatprep.subr.bf16.mxu0 0
  %4169 = vmatpush1.bf16.msra.mxu0 0
  %4170 = vmatprep.subr.bf16.mxu0 0
  %4171 = vmatpush1.bf16.msra.mxu0 0
  %4172 = vmatprep.subr.bf16.mxu0 0
  %4173 = vmatpush1.bf16.msra.mxu0 0
  %4174 = vmatprep.subr.bf16.mxu0 0
  %4175 = vmatpush1.bf16.msra.mxu0 0
  %4176 = vmatprep.subr.bf16.mxu0 0
  %4177 = vmatpush1.bf16.msra.mxu0 0
  %4178 = vmatprep.subr.bf16.mxu0 0
  %4179 = vmatpush1.bf16.msra.mxu0 0
  %4180 = vmatprep.subr.bf16.mxu0 0
  %4181 = vmatpush1.bf16.msra.mxu0 0
  %4182 = vmatprep.subr.bf16.mxu0 0
  %4183 = vmatpush1.bf16.msra.mxu0 0
  %4184 = vmatprep.subr.bf16.mxu0 0
  %4185 = vmatpush1.bf16.msra.mxu0 0
  %4186 = vmatprep.subr.bf16.mxu0 0
  %4187 = vmatpush1.bf16.msra.mxu0 0
  %4188 = vmatprep.subr.bf16.mxu0 0
  %4189 = vmatpush1.bf16.msra.mxu0 0
  %4190 = vmatprep.mubr.bf16.mxu0 0
  %4191 = vmatmul.mubr.bf16.gmra.mrb[0].mxu0 %v1480
  %v4192 = vpop.f32.mrb[0].mxu0
  %v4193 = vadd.f32 0.0, %v4192
  %v4194 = vpop.f32.mrb[0].mxu0
  %v4195 = vpop.f32.mrb[0].mxu0
  %v4196 = vadd.f32 0.0, %v4195
  %v4197 = vpop.f32.mrb[0].mxu0
  %4198 = vmatprep.mubr.bf16.mxu0 0
  %4199 = vmatmul.mubr.bf16.gmra.mrb[0].mxu0 %v1483
  %v4200 = vpop.f32.mrb[0].mxu0
  %v4201 = vadd.f32 0.0, %v4200
  %v4202 = vpop.f32.mrb[0].mxu0
  %v4203 = vpop.f32.mrb[0].mxu0
  %v4204 = vadd.f32 0.0, %v4203
  %v4205 = vpop.f32.mrb[0].mxu0
  %4206 = vmatprep.mubr.bf16.mxu0 0
  %4207 = vmatmul.mubr.bf16.gmra.mrb[0].mxu0 %v1486
  %v4208 = vpop.f32.mrb[0].mxu0
  %v4209 = vadd.f32 0.0, %v4208
  %v4210 = vpop.f32.mrb[0].mxu0
  %v4211 = vpop.f32.mrb[0].mxu0
  %v4212 = vadd.f32 0.0, %v4211
  %v4213 = vpop.f32.mrb[0].mxu0
  %4214 = vmatprep.mubr.bf16.mxu0 0
  %4215 = vmatmul.mubr.bf16.gmra.mrb[0].mxu0 %v1489
  %v4216 = vpop.f32.mrb[0].mxu0
  %v4217 = vadd.f32 0.0, %v4216
  %v4218 = vpop.f32.mrb[0].mxu0
  %v4219 = vpop.f32.mrb[0].mxu0
  %v4220 = vadd.f32 0.0, %v4219
  %v4221 = vpop.f32.mrb[0].mxu0
  %4222 = vdwg.mxu0
  %4223 = vmatprep.subr.bf16.mxu0 0
  %4224 = vmatpush1.bf16.msra.mxu0 %v4069
  %4225 = vmatprep.subr.bf16.mxu0 0
  %4226 = vmatpush1.bf16.msra.mxu0 %v4070
  %4227 = vmatprep.subr.bf16.mxu0 0
  %4228 = vmatpush1.bf16.msra.mxu0 %v4071
  %4229 = vmatprep.subr.bf16.mxu0 0
  %4230 = vmatpush1.bf16.msra.mxu0 %v4072
  %4231 = vmatprep.subr.bf16.mxu0 0
  %4232 = vmatpush1.bf16.msra.mxu0 0
  %4233 = vmatprep.subr.bf16.mxu0 0
  %4234 = vmatpush1.bf16.msra.mxu0 0
  %4235 = vmatprep.subr.bf16.mxu0 0
  %4236 = vmatpush1.bf16.msra.mxu0 0
  %4237 = vmatprep.subr.bf16.mxu0 0
  %4238 = vmatpush1.bf16.msra.mxu0 0
  %4239 = vmatprep.subr.bf16.mxu0 0
  %4240 = vmatpush1.bf16.msra.mxu0 0
  %4241 = vmatprep.subr.bf16.mxu0 0
  %4242 = vmatpush1.bf16.msra.mxu0 0
  %4243 = vmatprep.subr.bf16.mxu0 0
  %4244 = vmatpush1.bf16.msra.mxu0 0
  %4245 = vmatprep.subr.bf16.mxu0 0
  %4246 = vmatpush1.bf16.msra.mxu0 0
  %4247 = vmatprep.subr.bf16.mxu0 0
  %4248 = vmatpush1.bf16.msra.mxu0 0
  %4249 = vmatprep.subr.bf16.mxu0 0
  %4250 = vmatpush1.bf16.msra.mxu0 0
  %4251 = vmatprep.subr.bf16.mxu0 0
  %4252 = vmatpush1.bf16.msra.mxu0 0
  %4253 = vmatprep.subr.bf16.mxu0 0
  %4254 = vmatpush1.bf16.msra.mxu0 0
  %4255 = vmatprep.mubr.bf16.mxu0 0
  %4256 = vmatmul.mubr.bf16.gmra.mrb[0].mxu0 %v1577
  %v4257 = vpop.f32.mrb[0].mxu0
  %v4258 = vadd.f32 0.0, %v4257
  %v4259 = vpop.f32.mrb[0].mxu0
  %v4260 = vpop.f32.mrb[0].mxu0
  %v4261 = vadd.f32 0.0, %v4260
  %v4262 = vpop.f32.mrb[0].mxu0
  %4263 = vmatprep.mubr.bf16.mxu0 0
  %4264 = vmatmul.mubr.bf16.gmra.mrb[0].mxu0 %v1580
  %v4265 = vpop.f32.mrb[0].mxu0
  %v4266 = vadd.f32 0.0, %v4265
  %v4267 = vpop.f32.mrb[0].mxu0
  %v4268 = vpop.f32.mrb[0].mxu0
  %v4269 = vadd.f32 0.0, %v4268
  %v4270 = vpop.f32.mrb[0].mxu0
  %4271 = vmatprep.mubr.bf16.mxu0 0
  %4272 = vmatmul.mubr.bf16.gmra.mrb[0].mxu0 %v1583
  %v4273 = vpop.f32.mrb[0].mxu0
  %v4274 = vadd.f32 0.0, %v4273
  %v4275 = vpop.f32.mrb[0].mxu0
  %v4276 = vpop.f32.mrb[0].mxu0
  %v4277 = vadd.f32 0.0, %v4276
  %v4278 = vpop.f32.mrb[0].mxu0
  %4279 = vmatprep.mubr.bf16.mxu0 0
  %4280 = vmatmul.mubr.bf16.gmra.mrb[0].mxu0 %v1586
  %v4281 = vpop.f32.mrb[0].mxu0
  %v4282 = vadd.f32 0.0, %v4281
  %v4283 = vpop.f32.mrb[0].mxu0
  %v4284 = vpop.f32.mrb[0].mxu0
  %v4285 = vadd.f32 0.0, %v4284
  %v4286 = vpop.f32.mrb[0].mxu0
  %4287 = vdwg.mxu0
  %4288 = vmatprep.subr.bf16.mxu0 0
  %4289 = vmatpush1.bf16.msra.mxu0 %v4073
  %4290 = vmatprep.subr.bf16.mxu0 0
  %4291 = vmatpush1.bf16.msra.mxu0 %v4074
  %4292 = vmatprep.subr.bf16.mxu0 0
  %4293 = vmatpush1.bf16.msra.mxu0 %v4075
  %4294 = vmatprep.subr.bf16.mxu0 0
  %4295 = vmatpush1.bf16.msra.mxu0 %v4076
  %4296 = vmatprep.subr.bf16.mxu0 0
  %4297 = vmatpush1.bf16.msra.mxu0 0
  %4298 = vmatprep.subr.bf16.mxu0 0
  %4299 = vmatpush1.bf16.msra.mxu0 0
  %4300 = vmatprep.subr.bf16.mxu0 0
  %4301 = vmatpush1.bf16.msra.mxu0 0
  %4302 = vmatprep.subr.bf16.mxu0 0
  %4303 = vmatpush1.bf16.msra.mxu0 0
  %4304 = vmatprep.subr.bf16.mxu0 0
  %4305 = vmatpush1.bf16.msra.mxu0 0
  %4306 = vmatprep.subr.bf16.mxu0 0
  %4307 = vmatpush1.bf16.msra.mxu0 0
  %4308 = vmatprep.subr.bf16.mxu0 0
  %4309 = vmatpush1.bf16.msra.mxu0 0
  %4310 = vmatprep.subr.bf16.mxu0 0
  %4311 = vmatpush1.bf16.msra.mxu0 0
  %4312 = vmatprep.subr.bf16.mxu0 0
  %4313 = vmatpush1.bf16.msra.mxu0 0
  %4314 = vmatprep.subr.bf16.mxu0 0
  %4315 = vmatpush1.bf16.msra.mxu0 0
  %4316 = vmatprep.subr.bf16.mxu0 0
  %4317 = vmatpush1.bf16.msra.mxu0 0
  %4318 = vmatprep.subr.bf16.mxu0 0
  %4319 = vmatpush1.bf16.msra.mxu0 0
  %4320 = vmatprep.mubr.bf16.mxu0 0
  %4321 = vmatmul.mubr.bf16.gmra.mrb[0].mxu0 %v1674
  %v4322 = vpop.f32.mrb[0].mxu0
  %v4323 = vadd.f32 0.0, %v4322
  %v4324 = vpop.f32.mrb[0].mxu0
  %v4325 = vpop.f32.mrb[0].mxu0
  %v4326 = vadd.f32 0.0, %v4325
  %v4327 = vpop.f32.mrb[0].mxu0
  %4328 = vmatprep.mubr.bf16.mxu0 0
  %4329 = vmatmul.mubr.bf16.gmra.mrb[0].mxu0 %v1677
  %v4330 = vpop.f32.mrb[0].mxu0
  %v4331 = vadd.f32 0.0, %v4330
  %v4332 = vpop.f32.mrb[0].mxu0
  %v4333 = vpop.f32.mrb[0].mxu0
  %v4334 = vadd.f32 0.0, %v4333
  %v4335 = vpop.f32.mrb[0].mxu0
  %4336 = vmatprep.mubr.bf16.mxu0 0
  %4337 = vmatmul.mubr.bf16.gmra.mrb[0].mxu0 %v1680
  %v4338 = vpop.f32.mrb[0].mxu0
  %v4339 = vadd.f32 0.0, %v4338
  %v4340 = vpop.f32.mrb[0].mxu0
  %v4341 = vpop.f32.mrb[0].mxu0
  %v4342 = vadd.f32 0.0, %v4341
  %v4343 = vpop.f32.mrb[0].mxu0
  %4344 = vmatprep.mubr.bf16.mxu0 0
  %4345 = vmatmul.mubr.bf16.gmra.mrb[0].mxu0 %v1683
  %v4346 = vpop.f32.mrb[0].mxu0
  %v4347 = vadd.f32 0.0, %v4346
  %v4348 = vpop.f32.mrb[0].mxu0
  %v4349 = vpop.f32.mrb[0].mxu0
  %v4350 = vadd.f32 0.0, %v4349
  %v4351 = vpop.f32.mrb[0].mxu0
  %4352 = vdwg.mxu0
  %4353 = vmatprep.subr.bf16.mxu0 0
  %4354 = vmatpush1.bf16.msra.mxu0 %v4077
  %4355 = vmatprep.subr.bf16.mxu0 0
  %4356 = vmatpush1.bf16.msra.mxu0 %v4078
  %4357 = vmatprep.subr.bf16.mxu0 0
  %4358 = vmatpush1.bf16.msra.mxu0 %v4079
  %4359 = vmatprep.subr.bf16.mxu0 0
  %4360 = vmatpush1.bf16.msra.mxu0 %v4080
  %4361 = vmatprep.subr.bf16.mxu0 0
  %4362 = vmatpush1.bf16.msra.mxu0 0
  %4363 = vmatprep.subr.bf16.mxu0 0
  %4364 = vmatpush1.bf16.msra.mxu0 0
  %4365 = vmatprep.subr.bf16.mxu0 0
  %4366 = vmatpush1.bf16.msra.mxu0 0
  %4367 = vmatprep.subr.bf16.mxu0 0
  %4368 = vmatpush1.bf16.msra.mxu0 0
  %4369 = vmatprep.subr.bf16.mxu0 0
  %4370 = vmatpush1.bf16.msra.mxu0 0
  %4371 = vmatprep.subr.bf16.mxu0 0
  %4372 = vmatpush1.bf16.msra.mxu0 0
  %4373 = vmatprep.subr.bf16.mxu0 0
  %4374 = vmatpush1.bf16.msra.mxu0 0
  %4375 = vmatprep.subr.bf16.mxu0 0
  %4376 = vmatpush1.bf16.msra.mxu0 0
  %4377 = vmatprep.subr.bf16.mxu0 0
  %4378 = vmatpush1.bf16.msra.mxu0 0
  %4379 = vmatprep.subr.bf16.mxu0 0
  %4380 = vmatpush1.bf16.msra.mxu0 0
  %4381 = vmatprep.subr.bf16.mxu0 0
  %4382 = vmatpush1.bf16.msra.mxu0 0
  %4383 = vmatprep.subr.bf16.mxu0 0
  %4384 = vmatpush1.bf16.msra.mxu0 0
  %4385 = vmatprep.mubr.bf16.mxu0 0
  %4386 = vmatmul.mubr.bf16.gmra.mrb[0].mxu0 %v1771
  %v4387 = vpop.f32.mrb[0].mxu0
  %v4388 = vadd.f32 0.0, %v4387
  %v4389 = vpop.f32.mrb[0].mxu0
  %v4390 = vpop.f32.mrb[0].mxu0
  %v4391 = vadd.f32 0.0, %v4390
  %v4392 = vpop.f32.mrb[0].mxu0
  %4393 = vmatprep.mubr.bf16.mxu0 0
  %4394 = vmatmul.mubr.bf16.gmra.mrb[0].mxu0 %v1774
  %v4395 = vpop.f32.mrb[0].mxu0
  %v4396 = vadd.f32 0.0, %v4395
  %v4397 = vpop.f32.mrb[0].mxu0
  %v4398 = vpop.f32.mrb[0].mxu0
  %v4399 = vadd.f32 0.0, %v4398
  %v4400 = vpop.f32.mrb[0].mxu0
  %4401 = vmatprep.mubr.bf16.mxu0 0
  %4402 = vmatmul.mubr.bf16.gmra.mrb[0].mxu0 %v1777
  %v4403 = vpop.f32.mrb[0].mxu0
  %v4404 = vadd.f32 0.0, %v4403
  %v4405 = vpop.f32.mrb[0].mxu0
  %v4406 = vpop.f32.mrb[0].mxu0
  %v4407 = vadd.f32 0.0, %v4406
  %v4408 = vpop.f32.mrb[0].mxu0
  %4409 = vmatprep.mubr.bf16.mxu0 0
  %4410 = vmatmul.mubr.bf16.gmra.mrb[0].mxu0 %v1780
  %v4411 = vpop.f32.mrb[0].mxu0
  %v4412 = vadd.f32 0.0, %v4411
  %v4413 = vpop.f32.mrb[0].mxu0
  %v4414 = vpop.f32.mrb[0].mxu0
  %v4415 = vadd.f32 0.0, %v4414
  %v4416 = vpop.f32.mrb[0].mxu0
  %4417 = vdwg.mxu0
  %4418 = vmatprep.subr.bf16.mxu0 0
  %4419 = vmatpush1.bf16.msra.mxu0 %v4081
  %4420 = vmatprep.subr.bf16.mxu0 0
  %4421 = vmatpush1.bf16.msra.mxu0 %v4082
  %4422 = vmatprep.subr.bf16.mxu0 0
  %4423 = vmatpush1.bf16.msra.mxu0 %v4083
  %4424 = vmatprep.subr.bf16.mxu0 0
  %4425 = vmatpush1.bf16.msra.mxu0 %v4084
  %4426 = vmatprep.subr.bf16.mxu0 0
  %4427 = vmatpush1.bf16.msra.mxu0 0
  %4428 = vmatprep.subr.bf16.mxu0 0
  %4429 = vmatpush1.bf16.msra.mxu0 0
  %4430 = vmatprep.subr.bf16.mxu0 0
  %4431 = vmatpush1.bf16.msra.mxu0 0
  %4432 = vmatprep.subr.bf16.mxu0 0
  %4433 = vmatpush1.bf16.msra.mxu0 0
  %4434 = vmatprep.subr.bf16.mxu0 0
  %4435 = vmatpush1.bf16.msra.mxu0 0
  %4436 = vmatprep.subr.bf16.mxu0 0
  %4437 = vmatpush1.bf16.msra.mxu0 0
  %4438 = vmatprep.subr.bf16.mxu0 0
  %4439 = vmatpush1.bf16.msra.mxu0 0
  %4440 = vmatprep.subr.bf16.mxu0 0
  %4441 = vmatpush1.bf16.msra.mxu0 0
  %4442 = vmatprep.subr.bf16.mxu0 0
  %4443 = vmatpush1.bf16.msra.mxu0 0
  %4444 = vmatprep.subr.bf16.mxu0 0
  %4445 = vmatpush1.bf16.msra.mxu0 0
  %4446 = vmatprep.subr.bf16.mxu0 0
  %4447 = vmatpush1.bf16.msra.mxu0 0
  %4448 = vmatprep.subr.bf16.mxu0 0
  %4449 = vmatpush1.bf16.msra.mxu0 0
  %4450 = vmatprep.mubr.bf16.mxu0 0
  %4451 = vmatmul.mubr.bf16.gmra.mrb[0].mxu0 %v1868
  %v4452 = vpop.f32.mrb[0].mxu0
  %v4453 = vadd.f32 0.0, %v4452
  %v4454 = vpop.f32.mrb[0].mxu0
  %v4455 = vpop.f32.mrb[0].mxu0
  %v4456 = vadd.f32 0.0, %v4455
  %v4457 = vpop.f32.mrb[0].mxu0
  %4458 = vmatprep.mubr.bf16.mxu0 0
  %4459 = vmatmul.mubr.bf16.gmra.mrb[0].mxu0 %v1871
  %v4460 = vpop.f32.mrb[0].mxu0
  %v4461 = vadd.f32 0.0, %v4460
  %v4462 = vpop.f32.mrb[0].mxu0
  %v4463 = vpop.f32.mrb[0].mxu0
  %v4464 = vadd.f32 0.0, %v4463
  %v4465 = vpop.f32.mrb[0].mxu0
  %4466 = vmatprep.mubr.bf16.mxu0 0
  %4467 = vmatmul.mubr.bf16.gmra.mrb[0].mxu0 %v1874
  %v4468 = vpop.f32.mrb[0].mxu0
  %v4469 = vadd.f32 0.0, %v4468
  %v4470 = vpop.f32.mrb[0].mxu0
  %v4471 = vpop.f32.mrb[0].mxu0
  %v4472 = vadd.f32 0.0, %v4471
  %v4473 = vpop.f32.mrb[0].mxu0
  %4474 = vmatprep.mubr.bf16.mxu0 0
  %4475 = vmatmul.mubr.bf16.gmra.mrb[0].mxu0 %v1877
  %v4476 = vpop.f32.mrb[0].mxu0
  %v4477 = vadd.f32 0.0, %v4476
  %v4478 = vpop.f32.mrb[0].mxu0
  %v4479 = vpop.f32.mrb[0].mxu0
  %v4480 = vadd.f32 0.0, %v4479
  %v4481 = vpop.f32.mrb[0].mxu0
  %4482 = vdwg.mxu0
  %4483 = vmatprep.subr.bf16.mxu0 0
  %4484 = vmatpush1.bf16.msra.mxu0 %v4085
  %4485 = vmatprep.subr.bf16.mxu0 0
  %4486 = vmatpush1.bf16.msra.mxu0 %v4086
  %4487 = vmatprep.subr.bf16.mxu0 0
  %4488 = vmatpush1.bf16.msra.mxu0 %v4087
  %4489 = vmatprep.subr.bf16.mxu0 0
  %4490 = vmatpush1.bf16.msra.mxu0 %v4088
  %4491 = vmatprep.subr.bf16.mxu0 0
  %4492 = vmatpush1.bf16.msra.mxu0 0
  %4493 = vmatprep.subr.bf16.mxu0 0
  %4494 = vmatpush1.bf16.msra.mxu0 0
  %4495 = vmatprep.subr.bf16.mxu0 0
  %4496 = vmatpush1.bf16.msra.mxu0 0
  %4497 = vmatprep.subr.bf16.mxu0 0
  %4498 = vmatpush1.bf16.msra.mxu0 0
  %4499 = vmatprep.subr.bf16.mxu0 0
  %4500 = vmatpush1.bf16.msra.mxu0 0
  %4501 = vmatprep.subr.bf16.mxu0 0
  %4502 = vmatpush1.bf16.msra.mxu0 0
  %4503 = vmatprep.subr.bf16.mxu0 0
  %4504 = vmatpush1.bf16.msra.mxu0 0
  %4505 = vmatprep.subr.bf16.mxu0 0
  %4506 = vmatpush1.bf16.msra.mxu0 0
  %4507 = vmatprep.subr.bf16.mxu0 0
  %4508 = vmatpush1.bf16.msra.mxu0 0
  %4509 = vmatprep.subr.bf16.mxu0 0
  %4510 = vmatpush1.bf16.msra.mxu0 0
  %4511 = vmatprep.subr.bf16.mxu0 0
  %4512 = vmatpush1.bf16.msra.mxu0 0
  %4513 = vmatprep.subr.bf16.mxu0 0
  %4514 = vmatpush1.bf16.msra.mxu0 0
  %4515 = vmatprep.mubr.bf16.mxu0 0
  %4516 = vmatmul.mubr.bf16.gmra.mrb[0].mxu0 %v1965
  %v4517 = vpop.f32.mrb[0].mxu0
  %v4518 = vadd.f32 0.0, %v4517
  %v4519 = vpop.f32.mrb[0].mxu0
  %v4520 = vpop.f32.mrb[0].mxu0
  %v4521 = vadd.f32 0.0, %v4520
  %v4522 = vpop.f32.mrb[0].mxu0
  %4523 = vmatprep.mubr.bf16.mxu0 0
  %4524 = vmatmul.mubr.bf16.gmra.mrb[0].mxu0 %v1968
  %v4525 = vpop.f32.mrb[0].mxu0
  %v4526 = vadd.f32 0.0, %v4525
  %v4527 = vpop.f32.mrb[0].mxu0
  %v4528 = vpop.f32.mrb[0].mxu0
  %v4529 = vadd.f32 0.0, %v4528
  %v4530 = vpop.f32.mrb[0].mxu0
  %4531 = vmatprep.mubr.bf16.mxu0 0
  %4532 = vmatmul.mubr.bf16.gmra.mrb[0].mxu0 %v1971
  %v4533 = vpop.f32.mrb[0].mxu0
  %v4534 = vadd.f32 0.0, %v4533
  %v4535 = vpop.f32.mrb[0].mxu0
  %v4536 = vpop.f32.mrb[0].mxu0
  %v4537 = vadd.f32 0.0, %v4536
  %v4538 = vpop.f32.mrb[0].mxu0
  %4539 = vmatprep.mubr.bf16.mxu0 0
  %4540 = vmatmul.mubr.bf16.gmra.mrb[0].mxu0 %v1974
  %v4541 = vpop.f32.mrb[0].mxu0
  %v4542 = vadd.f32 0.0, %v4541
  %v4543 = vpop.f32.mrb[0].mxu0
  %v4544 = vpop.f32.mrb[0].mxu0
  %v4545 = vadd.f32 0.0, %v4544
  %v4546 = vpop.f32.mrb[0].mxu0
  %4547 = vdwg.mxu0
  %4548 = vmatprep.subr.bf16.mxu0 0
  %4549 = vmatpush1.bf16.msra.mxu0 %v4089
  %4550 = vmatprep.subr.bf16.mxu0 0
  %4551 = vmatpush1.bf16.msra.mxu0 %v4090
  %4552 = vmatprep.subr.bf16.mxu0 0
  %4553 = vmatpush1.bf16.msra.mxu0 %v4091
  %4554 = vmatprep.subr.bf16.mxu0 0
  %4555 = vmatpush1.bf16.msra.mxu0 %v4092
  %4556 = vmatprep.subr.bf16.mxu0 0
  %4557 = vmatpush1.bf16.msra.mxu0 0
  %4558 = vmatprep.subr.bf16.mxu0 0
  %4559 = vmatpush1.bf16.msra.mxu0 0
  %4560 = vmatprep.subr.bf16.mxu0 0
  %4561 = vmatpush1.bf16.msra.mxu0 0
  %4562 = vmatprep.subr.bf16.mxu0 0
  %4563 = vmatpush1.bf16.msra.mxu0 0
  %4564 = vmatprep.subr.bf16.mxu0 0
  %4565 = vmatpush1.bf16.msra.mxu0 0
  %4566 = vmatprep.subr.bf16.mxu0 0
  %4567 = vmatpush1.bf16.msra.mxu0 0
  %4568 = vmatprep.subr.bf16.mxu0 0
  %4569 = vmatpush1.bf16.msra.mxu0 0
  %4570 = vmatprep.subr.bf16.mxu0 0
  %4571 = vmatpush1.bf16.msra.mxu0 0
  %4572 = vmatprep.subr.bf16.mxu0 0
  %4573 = vmatpush1.bf16.msra.mxu0 0
  %4574 = vmatprep.subr.bf16.mxu0 0
  %4575 = vmatpush1.bf16.msra.mxu0 0
  %4576 = vmatprep.subr.bf16.mxu0 0
  %4577 = vmatpush1.bf16.msra.mxu0 0
  %4578 = vmatprep.subr.bf16.mxu0 0
  %4579 = vmatpush1.bf16.msra.mxu0 0
  %4580 = vmatprep.mubr.bf16.mxu0 0
  %4581 = vmatmul.mubr.bf16.gmra.mrb[0].mxu0 %v2062
  %v4582 = vpop.f32.mrb[0].mxu0
  %v4583 = vadd.f32 0.0, %v4582
  %v4584 = vpop.f32.mrb[0].mxu0
  %v4585 = vpop.f32.mrb[0].mxu0
  %v4586 = vadd.f32 0.0, %v4585
  %v4587 = vpop.f32.mrb[0].mxu0
  %4588 = vmatprep.mubr.bf16.mxu0 0
  %4589 = vmatmul.mubr.bf16.gmra.mrb[0].mxu0 %v2065
  %v4590 = vpop.f32.mrb[0].mxu0
  %v4591 = vadd.f32 0.0, %v4590
  %v4592 = vpop.f32.mrb[0].mxu0
  %v4593 = vpop.f32.mrb[0].mxu0
  %v4594 = vadd.f32 0.0, %v4593
  %v4595 = vpop.f32.mrb[0].mxu0
  %4596 = vmatprep.mubr.bf16.mxu0 0
  %4597 = vmatmul.mubr.bf16.gmra.mrb[0].mxu0 %v2068
  %v4598 = vpop.f32.mrb[0].mxu0
  %v4599 = vadd.f32 0.0, %v4598
  %v4600 = vpop.f32.mrb[0].mxu0
  %v4601 = vpop.f32.mrb[0].mxu0
  %v4602 = vadd.f32 0.0, %v4601
  %v4603 = vpop.f32.mrb[0].mxu0
  %4604 = vmatprep.mubr.bf16.mxu0 0
  %4605 = vmatmul.mubr.bf16.gmra.mrb[0].mxu0 %v2071
  %v4606 = vpop.f32.mrb[0].mxu0
  %v4607 = vadd.f32 0.0, %v4606
  %v4608 = vpop.f32.mrb[0].mxu0
  %v4609 = vpop.f32.mrb[0].mxu0
  %v4610 = vadd.f32 0.0, %v4609
  %v4611 = vpop.f32.mrb[0].mxu0
  %4612 = vdwg.mxu0
  %v4613 = vld [vmem:[%s8] sm:$0x1]
  %v4615 = vlaneseq
  %v4616 = vshrl.u32 %v4615, 7
  %v4617 = vsub.s32 0, %v4616
  %v4618 = vrot.slane %v4613, %v4617
  %v4620 = vadd.f32 %v4128, %v4618
  %v4621 = vadd.f32 %v4131, %v4618
  %v4622 = vadd.f32 %v4136, %v4618
  %v4623 = vadd.f32 %v4139, %v4618
  %v4624 = vadd.f32 %v4144, %v4618
  %v4625 = vadd.f32 %v4147, %v4618
  %v4626 = vadd.f32 %v4152, %v4618
  %v4627 = vadd.f32 %v4155, %v4618
  %v4628 = vadd.f32 %v4193, %v4618
  %v4629 = vadd.f32 %v4196, %v4618
  %v4630 = vadd.f32 %v4201, %v4618
  %v4631 = vadd.f32 %v4204, %v4618
  %v4632 = vadd.f32 %v4209, %v4618
  %v4633 = vadd.f32 %v4212, %v4618
  %v4634 = vadd.f32 %v4217, %v4618
  %v4635 = vadd.f32 %v4220, %v4618
  %v4636 = vadd.f32 %v4258, %v4618
  %v4637 = vadd.f32 %v4261, %v4618
  %v4638 = vadd.f32 %v4266, %v4618
  %v4639 = vadd.f32 %v4269, %v4618
  %v4640 = vadd.f32 %v4274, %v4618
  %v4641 = vadd.f32 %v4277, %v4618
  %v4642 = vadd.f32 %v4282, %v4618
  %v4643 = vadd.f32 %v4285, %v4618
  %v4644 = vadd.f32 %v4323, %v4618
  %v4645 = vadd.f32 %v4326, %v4618
  %v4646 = vadd.f32 %v4331, %v4618
  %v4647 = vadd.f32 %v4334, %v4618
  %v4648 = vadd.f32 %v4339, %v4618
  %v4649 = vadd.f32 %v4342, %v4618
  %v4650 = vadd.f32 %v4347, %v4618
  %v4651 = vadd.f32 %v4350, %v4618
  %v4652 = vadd.f32 %v4388, %v4618
  %v4653 = vadd.f32 %v4391, %v4618
  %v4654 = vadd.f32 %v4396, %v4618
  %v4655 = vadd.f32 %v4399, %v4618
  %v4656 = vadd.f32 %v4404, %v4618
  %v4657 = vadd.f32 %v4407, %v4618
  %v4658 = vadd.f32 %v4412, %v4618
  %v4659 = vadd.f32 %v4415, %v4618
  %v4660 = vadd.f32 %v4453, %v4618
  %v4661 = vadd.f32 %v4456, %v4618
  %v4662 = vadd.f32 %v4461, %v4618
  %v4663 = vadd.f32 %v4464, %v4618
  %v4664 = vadd.f32 %v4469, %v4618
  %v4665 = vadd.f32 %v4472, %v4618
  %v4666 = vadd.f32 %v4477, %v4618
  %v4667 = vadd.f32 %v4480, %v4618
  %v4668 = vadd.f32 %v4518, %v4618
  %v4669 = vadd.f32 %v4521, %v4618
  %v4670 = vadd.f32 %v4526, %v4618
  %v4671 = vadd.f32 %v4529, %v4618
  %v4672 = vadd.f32 %v4534, %v4618
  %v4673 = vadd.f32 %v4537, %v4618
  %v4674 = vadd.f32 %v4542, %v4618
  %v4675 = vadd.f32 %v4545, %v4618
  %v4676 = vadd.f32 %v4583, %v4618
  %v4677 = vadd.f32 %v4586, %v4618
  %v4678 = vadd.f32 %v4591, %v4618
  %v4679 = vadd.f32 %v4594, %v4618
  %v4680 = vadd.f32 %v4599, %v4618
  %v4681 = vadd.f32 %v4602, %v4618
  %v4682 = vadd.f32 %v4607, %v4618
  %v4683 = vadd.f32 %v4610, %v4618
  %4684 = vmax.xlane.f32.xlu0 %v4620
  %v4685 = vpop.xlane.xlu0 %4684
  %4686 = vmax.xlane.f32.xlu0 %v4621
  %v4687 = vpop.xlane.xlu0 %4686
  %4688 = vmax.xlane.f32.xlu0 %v4622
  %v4689 = vpop.xlane.xlu0 %4688
  %4690 = vmax.xlane.f32.xlu0 %v4623
  %v4691 = vpop.xlane.xlu0 %4690
  %4692 = vmax.xlane.f32.xlu0 %v4624
  %v4693 = vpop.xlane.xlu0 %4692
  %4694 = vmax.xlane.f32.xlu0 %v4625
  %v4695 = vpop.xlane.xlu0 %4694
  %4696 = vmax.xlane.f32.xlu0 %v4626
  %v4697 = vpop.xlane.xlu0 %4696
  %4698 = vmax.xlane.f32.xlu0 %v4627
  %v4699 = vpop.xlane.xlu0 %4698
  %4700 = vmax.xlane.f32.xlu0 %v4628
  %v4701 = vpop.xlane.xlu0 %4700
  %4702 = vmax.xlane.f32.xlu0 %v4629
  %v4703 = vpop.xlane.xlu0 %4702
  %4704 = vmax.xlane.f32.xlu0 %v4630
  %v4705 = vpop.xlane.xlu0 %4704
  %4706 = vmax.xlane.f32.xlu0 %v4631
  %v4707 = vpop.xlane.xlu0 %4706
  %4708 = vmax.xlane.f32.xlu0 %v4632
  %v4709 = vpop.xlane.xlu0 %4708
  %4710 = vmax.xlane.f32.xlu0 %v4633
  %v4711 = vpop.xlane.xlu0 %4710
  %4712 = vmax.xlane.f32.xlu0 %v4634
  %v4713 = vpop.xlane.xlu0 %4712
  %4714 = vmax.xlane.f32.xlu0 %v4635
  %v4715 = vpop.xlane.xlu0 %4714
  %4716 = vmax.xlane.f32.xlu0 %v4636
  %v4717 = vpop.xlane.xlu0 %4716
  %4718 = vmax.xlane.f32.xlu0 %v4637
  %v4719 = vpop.xlane.xlu0 %4718
  %4720 = vmax.xlane.f32.xlu0 %v4638
  %v4721 = vpop.xlane.xlu0 %4720
  %4722 = vmax.xlane.f32.xlu0 %v4639
  %v4723 = vpop.xlane.xlu0 %4722
  %4724 = vmax.xlane.f32.xlu0 %v4640
  %v4725 = vpop.xlane.xlu0 %4724
  %4726 = vmax.xlane.f32.xlu0 %v4641
  %v4727 = vpop.xlane.xlu0 %4726
  %4728 = vmax.xlane.f32.xlu0 %v4642
  %v4729 = vpop.xlane.xlu0 %4728
  %4730 = vmax.xlane.f32.xlu0 %v4643
  %v4731 = vpop.xlane.xlu0 %4730
  %4732 = vmax.xlane.f32.xlu0 %v4644
  %v4733 = vpop.xlane.xlu0 %4732
  %4734 = vmax.xlane.f32.xlu0 %v4645
  %v4735 = vpop.xlane.xlu0 %4734
  %4736 = vmax.xlane.f32.xlu0 %v4646
  %v4737 = vpop.xlane.xlu0 %4736
  %4738 = vmax.xlane.f32.xlu0 %v4647
  %v4739 = vpop.xlane.xlu0 %4738
  %4740 = vmax.xlane.f32.xlu0 %v4648
  %v4741 = vpop.xlane.xlu0 %4740
  %4742 = vmax.xlane.f32.xlu0 %v4649
  %v4743 = vpop.xlane.xlu0 %4742
  %4744 = vmax.xlane.f32.xlu0 %v4650
  %v4745 = vpop.xlane.xlu0 %4744
  %4746 = vmax.xlane.f32.xlu0 %v4651
  %v4747 = vpop.xlane.xlu0 %4746
  %4748 = vmax.xlane.f32.xlu0 %v4652
  %v4749 = vpop.xlane.xlu0 %4748
  %4750 = vmax.xlane.f32.xlu0 %v4653
  %v4751 = vpop.xlane.xlu0 %4750
  %4752 = vmax.xlane.f32.xlu0 %v4654
  %v4753 = vpop.xlane.xlu0 %4752
  %4754 = vmax.xlane.f32.xlu0 %v4655
  %v4755 = vpop.xlane.xlu0 %4754
  %4756 = vmax.xlane.f32.xlu0 %v4656
  %v4757 = vpop.xlane.xlu0 %4756
  %4758 = vmax.xlane.f32.xlu0 %v4657
  %v4759 = vpop.xlane.xlu0 %4758
  %4760 = vmax.xlane.f32.xlu0 %v4658
  %v4761 = vpop.xlane.xlu0 %4760
  %4762 = vmax.xlane.f32.xlu0 %v4659
  %v4763 = vpop.xlane.xlu0 %4762
  %4764 = vmax.xlane.f32.xlu0 %v4660
  %v4765 = vpop.xlane.xlu0 %4764
  %4766 = vmax.xlane.f32.xlu0 %v4661
  %v4767 = vpop.xlane.xlu0 %4766
  %4768 = vmax.xlane.f32.xlu0 %v4662
  %v4769 = vpop.xlane.xlu0 %4768
  %4770 = vmax.xlane.f32.xlu0 %v4663
  %v4771 = vpop.xlane.xlu0 %4770
  %4772 = vmax.xlane.f32.xlu0 %v4664
  %v4773 = vpop.xlane.xlu0 %4772
  %4774 = vmax.xlane.f32.xlu0 %v4665
  %v4775 = vpop.xlane.xlu0 %4774
  %4776 = vmax.xlane.f32.xlu0 %v4666
  %v4777 = vpop.xlane.xlu0 %4776
  %4778 = vmax.xlane.f32.xlu0 %v4667
  %v4779 = vpop.xlane.xlu0 %4778
  %4780 = vmax.xlane.f32.xlu0 %v4668
  %v4781 = vpop.xlane.xlu0 %4780
  %4782 = vmax.xlane.f32.xlu0 %v4669
  %v4783 = vpop.xlane.xlu0 %4782
  %4784 = vmax.xlane.f32.xlu0 %v4670
  %v4785 = vpop.xlane.xlu0 %4784
  %4786 = vmax.xlane.f32.xlu0 %v4671
  %v4787 = vpop.xlane.xlu0 %4786
  %4788 = vmax.xlane.f32.xlu0 %v4672
  %v4789 = vpop.xlane.xlu0 %4788
  %4790 = vmax.xlane.f32.xlu0 %v4673
  %v4791 = vpop.xlane.xlu0 %4790
  %4792 = vmax.xlane.f32.xlu0 %v4674
  %v4793 = vpop.xlane.xlu0 %4792
  %4794 = vmax.xlane.f32.xlu0 %v4675
  %v4795 = vpop.xlane.xlu0 %4794
  %4796 = vmax.xlane.f32.xlu0 %v4676
  %v4797 = vpop.xlane.xlu0 %4796
  %4798 = vmax.xlane.f32.xlu0 %v4677
  %v4799 = vpop.xlane.xlu0 %4798
  %4800 = vmax.xlane.f32.xlu0 %v4678
  %v4801 = vpop.xlane.xlu0 %4800
  %4802 = vmax.xlane.f32.xlu0 %v4679
  %v4803 = vpop.xlane.xlu0 %4802
  %4804 = vmax.xlane.f32.xlu0 %v4680
  %v4805 = vpop.xlane.xlu0 %4804
  %4806 = vmax.xlane.f32.xlu0 %v4681
  %v4807 = vpop.xlane.xlu0 %4806
  %4808 = vmax.xlane.f32.xlu0 %v4682
  %v4809 = vpop.xlane.xlu0 %4808
  %4810 = vmax.xlane.f32.xlu0 %v4683
  %v4811 = vpop.xlane.xlu0 %4810
  %v4812 = vsub.f32 %v4620, %v4685
  %v4813 = vsub.f32 %v4621, %v4687
  %v4814 = vsub.f32 %v4622, %v4689
  %v4815 = vsub.f32 %v4623, %v4691
  %v4816 = vsub.f32 %v4624, %v4693
  %v4817 = vsub.f32 %v4625, %v4695
  %v4818 = vsub.f32 %v4626, %v4697
  %v4819 = vsub.f32 %v4627, %v4699
  %v4820 = vsub.f32 %v4628, %v4701
  %v4821 = vsub.f32 %v4629, %v4703
  %v4822 = vsub.f32 %v4630, %v4705
  %v4823 = vsub.f32 %v4631, %v4707
  %v4824 = vsub.f32 %v4632, %v4709
  %v4825 = vsub.f32 %v4633, %v4711
  %v4826 = vsub.f32 %v4634, %v4713
  %v4827 = vsub.f32 %v4635, %v4715
  %v4828 = vsub.f32 %v4636, %v4717
  %v4829 = vsub.f32 %v4637, %v4719
  %v4830 = vsub.f32 %v4638, %v4721
  %v4831 = vsub.f32 %v4639, %v4723
  %v4832 = vsub.f32 %v4640, %v4725
  %v4833 = vsub.f32 %v4641, %v4727
  %v4834 = vsub.f32 %v4642, %v4729
  %v4835 = vsub.f32 %v4643, %v4731
  %v4836 = vsub.f32 %v4644, %v4733
  %v4837 = vsub.f32 %v4645, %v4735
  %v4838 = vsub.f32 %v4646, %v4737
  %v4839 = vsub.f32 %v4647, %v4739
  %v4840 = vsub.f32 %v4648, %v4741
  %v4841 = vsub.f32 %v4649, %v4743
  %v4842 = vsub.f32 %v4650, %v4745
  %v4843 = vsub.f32 %v4651, %v4747
  %v4844 = vsub.f32 %v4652, %v4749
  %v4845 = vsub.f32 %v4653, %v4751
  %v4846 = vsub.f32 %v4654, %v4753
  %v4847 = vsub.f32 %v4655, %v4755
  %v4848 = vsub.f32 %v4656, %v4757
  %v4849 = vsub.f32 %v4657, %v4759
  %v4850 = vsub.f32 %v4658, %v4761
  %v4851 = vsub.f32 %v4659, %v4763
  %v4852 = vsub.f32 %v4660, %v4765
  %v4853 = vsub.f32 %v4661, %v4767
  %v4854 = vsub.f32 %v4662, %v4769
  %v4855 = vsub.f32 %v4663, %v4771
  %v4856 = vsub.f32 %v4664, %v4773
  %v4857 = vsub.f32 %v4665, %v4775
  %v4858 = vsub.f32 %v4666, %v4777
  %v4859 = vsub.f32 %v4667, %v4779
  %v4860 = vsub.f32 %v4668, %v4781
  %v4861 = vsub.f32 %v4669, %v4783
  %v4862 = vsub.f32 %v4670, %v4785
  %v4863 = vsub.f32 %v4671, %v4787
  %v4864 = vsub.f32 %v4672, %v4789
  %v4865 = vsub.f32 %v4673, %v4791
  %v4866 = vsub.f32 %v4674, %v4793
  %v4867 = vsub.f32 %v4675, %v4795
  %v4868 = vsub.f32 %v4676, %v4797
  %v4869 = vsub.f32 %v4677, %v4799
  %v4870 = vsub.f32 %v4678, %v4801
  %v4871 = vsub.f32 %v4679, %v4803
  %v4872 = vsub.f32 %v4680, %v4805
  %v4873 = vsub.f32 %v4681, %v4807
  %v4874 = vsub.f32 %v4682, %v4809
  %v4875 = vsub.f32 %v4683, %v4811
  %v4876 = vmul.f32 %v4812, 1.442695
  %v4877 = vpow.pop %v4876
  %v4878 = vmul.f32 %v4813, 1.442695
  %v4879 = vpow.pop %v4878
  %v4880 = vmul.f32 %v4814, 1.442695
  %v4881 = vpow.pop %v4880
  %v4882 = vmul.f32 %v4815, 1.442695
  %v4883 = vpow.pop %v4882
  %v4884 = vmul.f32 %v4816, 1.442695
  %v4885 = vpow.pop %v4884
  %v4886 = vmul.f32 %v4817, 1.442695
  %v4887 = vpow.pop %v4886
  %v4888 = vmul.f32 %v4818, 1.442695
  %v4889 = vpow.pop %v4888
  %v4890 = vmul.f32 %v4819, 1.442695
  %v4891 = vpow.pop %v4890
  %v4892 = vmul.f32 %v4820, 1.442695
  %v4893 = vpow.pop %v4892
  %v4894 = vmul.f32 %v4821, 1.442695
  %v4895 = vpow.pop %v4894
  %v4896 = vmul.f32 %v4822, 1.442695
  %v4897 = vpow.pop %v4896
  %v4898 = vmul.f32 %v4823, 1.442695
  %v4899 = vpow.pop %v4898
  %v4900 = vmul.f32 %v4824, 1.442695
  %v4901 = vpow.pop %v4900
  %v4902 = vmul.f32 %v4825, 1.442695
  %v4903 = vpow.pop %v4902
  %v4904 = vmul.f32 %v4826, 1.442695
  %v4905 = vpow.pop %v4904
  %v4906 = vmul.f32 %v4827, 1.442695
  %v4907 = vpow.pop %v4906
  %v4908 = vmul.f32 %v4828, 1.442695
  %v4909 = vpow.pop %v4908
  %v4910 = vmul.f32 %v4829, 1.442695
  %v4911 = vpow.pop %v4910
  %v4912 = vmul.f32 %v4830, 1.442695
  %v4913 = vpow.pop %v4912
  %v4914 = vmul.f32 %v4831, 1.442695
  %v4915 = vpow.pop %v4914
  %v4916 = vmul.f32 %v4832, 1.442695
  %v4917 = vpow.pop %v4916
  %v4918 = vmul.f32 %v4833, 1.442695
  %v4919 = vpow.pop %v4918
  %v4920 = vmul.f32 %v4834, 1.442695
  %v4921 = vpow.pop %v4920
  %v4922 = vmul.f32 %v4835, 1.442695
  %v4923 = vpow.pop %v4922
  %v4924 = vmul.f32 %v4836, 1.442695
  %v4925 = vpow.pop %v4924
  %v4926 = vmul.f32 %v4837, 1.442695
  %v4927 = vpow.pop %v4926
  %v4928 = vmul.f32 %v4838, 1.442695
  %v4929 = vpow.pop %v4928
  %v4930 = vmul.f32 %v4839, 1.442695
  %v4931 = vpow.pop %v4930
  %v4932 = vmul.f32 %v4840, 1.442695
  %v4933 = vpow.pop %v4932
  %v4934 = vmul.f32 %v4841, 1.442695
  %v4935 = vpow.pop %v4934
  %v4936 = vmul.f32 %v4842, 1.442695
  %v4937 = vpow.pop %v4936
  %v4938 = vmul.f32 %v4843, 1.442695
  %v4939 = vpow.pop %v4938
  %v4940 = vmul.f32 %v4844, 1.442695
  %v4941 = vpow.pop %v4940
  %v4942 = vmul.f32 %v4845, 1.442695
  %v4943 = vpow.pop %v4942
  %v4944 = vmul.f32 %v4846, 1.442695
  %v4945 = vpow.pop %v4944
  %v4946 = vmul.f32 %v4847, 1.442695
  %v4947 = vpow.pop %v4946
  %v4948 = vmul.f32 %v4848, 1.442695
  %v4949 = vpow.pop %v4948
  %v4950 = vmul.f32 %v4849, 1.442695
  %v4951 = vpow.pop %v4950
  %v4952 = vmul.f32 %v4850, 1.442695
  %v4953 = vpow.pop %v4952
  %v4954 = vmul.f32 %v4851, 1.442695
  %v4955 = vpow.pop %v4954
  %v4956 = vmul.f32 %v4852, 1.442695
  %v4957 = vpow.pop %v4956
  %v4958 = vmul.f32 %v4853, 1.442695
  %v4959 = vpow.pop %v4958
  %v4960 = vmul.f32 %v4854, 1.442695
  %v4961 = vpow.pop %v4960
  %v4962 = vmul.f32 %v4855, 1.442695
  %v4963 = vpow.pop %v4962
  %v4964 = vmul.f32 %v4856, 1.442695
  %v4965 = vpow.pop %v4964
  %v4966 = vmul.f32 %v4857, 1.442695
  %v4967 = vpow.pop %v4966
  %v4968 = vmul.f32 %v4858, 1.442695
  %v4969 = vpow.pop %v4968
  %v4970 = vmul.f32 %v4859, 1.442695
  %v4971 = vpow.pop %v4970
  %v4972 = vmul.f32 %v4860, 1.442695
  %v4973 = vpow.pop %v4972
  %v4974 = vmul.f32 %v4861, 1.442695
  %v4975 = vpow.pop %v4974
  %v4976 = vmul.f32 %v4862, 1.442695
  %v4977 = vpow.pop %v4976
  %v4978 = vmul.f32 %v4863, 1.442695
  %v4979 = vpow.pop %v4978
  %v4980 = vmul.f32 %v4864, 1.442695
  %v4981 = vpow.pop %v4980
  %v4982 = vmul.f32 %v4865, 1.442695
  %v4983 = vpow.pop %v4982
  %v4984 = vmul.f32 %v4866, 1.442695
  %v4985 = vpow.pop %v4984
  %v4986 = vmul.f32 %v4867, 1.442695
  %v4987 = vpow.pop %v4986
  %v4988 = vmul.f32 %v4868, 1.442695
  %v4989 = vpow.pop %v4988
  %v4990 = vmul.f32 %v4869, 1.442695
  %v4991 = vpow.pop %v4990
  %v4992 = vmul.f32 %v4870, 1.442695
  %v4993 = vpow.pop %v4992
  %v4994 = vmul.f32 %v4871, 1.442695
  %v4995 = vpow.pop %v4994
  %v4996 = vmul.f32 %v4872, 1.442695
  %v4997 = vpow.pop %v4996
  %v4998 = vmul.f32 %v4873, 1.442695
  %v4999 = vpow.pop %v4998
  %v5000 = vmul.f32 %v4874, 1.442695
  %v5001 = vpow.pop %v5000
  %v5002 = vmul.f32 %v4875, 1.442695
  %v5003 = vpow.pop %v5002
  %5004 = vadd.xlane.f32.xlu0 %v4877
  %v5005 = vpop.xlane.xlu0 %5004
  %5006 = vadd.xlane.f32.xlu0 %v4879
  %v5007 = vpop.xlane.xlu0 %5006
  %5008 = vadd.xlane.f32.xlu0 %v4881
  %v5009 = vpop.xlane.xlu0 %5008
  %5010 = vadd.xlane.f32.xlu0 %v4883
  %v5011 = vpop.xlane.xlu0 %5010
  %5012 = vadd.xlane.f32.xlu0 %v4885
  %v5013 = vpop.xlane.xlu0 %5012
  %5014 = vadd.xlane.f32.xlu0 %v4887
  %v5015 = vpop.xlane.xlu0 %5014
  %5016 = vadd.xlane.f32.xlu0 %v4889
  %v5017 = vpop.xlane.xlu0 %5016
  %5018 = vadd.xlane.f32.xlu0 %v4891
  %v5019 = vpop.xlane.xlu0 %5018
  %5020 = vadd.xlane.f32.xlu0 %v4893
  %v5021 = vpop.xlane.xlu0 %5020
  %5022 = vadd.xlane.f32.xlu0 %v4895
  %v5023 = vpop.xlane.xlu0 %5022
  %5024 = vadd.xlane.f32.xlu0 %v4897
  %v5025 = vpop.xlane.xlu0 %5024
  %5026 = vadd.xlane.f32.xlu0 %v4899
  %v5027 = vpop.xlane.xlu0 %5026
  %5028 = vadd.xlane.f32.xlu0 %v4901
  %v5029 = vpop.xlane.xlu0 %5028
  %5030 = vadd.xlane.f32.xlu0 %v4903
  %v5031 = vpop.xlane.xlu0 %5030
  %5032 = vadd.xlane.f32.xlu0 %v4905
  %v5033 = vpop.xlane.xlu0 %5032
  %5034 = vadd.xlane.f32.xlu0 %v4907
  %v5035 = vpop.xlane.xlu0 %5034
  %5036 = vadd.xlane.f32.xlu0 %v4909
  %v5037 = vpop.xlane.xlu0 %5036
  %5038 = vadd.xlane.f32.xlu0 %v4911
  %v5039 = vpop.xlane.xlu0 %5038
  %5040 = vadd.xlane.f32.xlu0 %v4913
  %v5041 = vpop.xlane.xlu0 %5040
  %5042 = vadd.xlane.f32.xlu0 %v4915
  %v5043 = vpop.xlane.xlu0 %5042
  %5044 = vadd.xlane.f32.xlu0 %v4917
  %v5045 = vpop.xlane.xlu0 %5044
  %5046 = vadd.xlane.f32.xlu0 %v4919
  %v5047 = vpop.xlane.xlu0 %5046
  %5048 = vadd.xlane.f32.xlu0 %v4921
  %v5049 = vpop.xlane.xlu0 %5048
  %5050 = vadd.xlane.f32.xlu0 %v4923
  %v5051 = vpop.xlane.xlu0 %5050
  %5052 = vadd.xlane.f32.xlu0 %v4925
  %v5053 = vpop.xlane.xlu0 %5052
  %5054 = vadd.xlane.f32.xlu0 %v4927
  %v5055 = vpop.xlane.xlu0 %5054
  %5056 = vadd.xlane.f32.xlu0 %v4929
  %v5057 = vpop.xlane.xlu0 %5056
  %5058 = vadd.xlane.f32.xlu0 %v4931
  %v5059 = vpop.xlane.xlu0 %5058
  %5060 = vadd.xlane.f32.xlu0 %v4933
  %v5061 = vpop.xlane.xlu0 %5060
  %5062 = vadd.xlane.f32.xlu0 %v4935
  %v5063 = vpop.xlane.xlu0 %5062
  %5064 = vadd.xlane.f32.xlu0 %v4937
  %v5065 = vpop.xlane.xlu0 %5064
  %5066 = vadd.xlane.f32.xlu0 %v4939
  %v5067 = vpop.xlane.xlu0 %5066
  %5068 = vadd.xlane.f32.xlu0 %v4941
  %v5069 = vpop.xlane.xlu0 %5068
  %5070 = vadd.xlane.f32.xlu0 %v4943
  %v5071 = vpop.xlane.xlu0 %5070
  %5072 = vadd.xlane.f32.xlu0 %v4945
  %v5073 = vpop.xlane.xlu0 %5072
  %5074 = vadd.xlane.f32.xlu0 %v4947
  %v5075 = vpop.xlane.xlu0 %5074
  %5076 = vadd.xlane.f32.xlu0 %v4949
  %v5077 = vpop.xlane.xlu0 %5076
  %5078 = vadd.xlane.f32.xlu0 %v4951
  %v5079 = vpop.xlane.xlu0 %5078
  %5080 = vadd.xlane.f32.xlu0 %v4953
  %v5081 = vpop.xlane.xlu0 %5080
  %5082 = vadd.xlane.f32.xlu0 %v4955
  %v5083 = vpop.xlane.xlu0 %5082
  %5084 = vadd.xlane.f32.xlu0 %v4957
  %v5085 = vpop.xlane.xlu0 %5084
  %5086 = vadd.xlane.f32.xlu0 %v4959
  %v5087 = vpop.xlane.xlu0 %5086
  %5088 = vadd.xlane.f32.xlu0 %v4961
  %v5089 = vpop.xlane.xlu0 %5088
  %5090 = vadd.xlane.f32.xlu0 %v4963
  %v5091 = vpop.xlane.xlu0 %5090
  %5092 = vadd.xlane.f32.xlu0 %v4965
  %v5093 = vpop.xlane.xlu0 %5092
  %5094 = vadd.xlane.f32.xlu0 %v4967
  %v5095 = vpop.xlane.xlu0 %5094
  %5096 = vadd.xlane.f32.xlu0 %v4969
  %v5097 = vpop.xlane.xlu0 %5096
  %5098 = vadd.xlane.f32.xlu0 %v4971
  %v5099 = vpop.xlane.xlu0 %5098
  %5100 = vadd.xlane.f32.xlu0 %v4973
  %v5101 = vpop.xlane.xlu0 %5100
  %5102 = vadd.xlane.f32.xlu0 %v4975
  %v5103 = vpop.xlane.xlu0 %5102
  %5104 = vadd.xlane.f32.xlu0 %v4977
  %v5105 = vpop.xlane.xlu0 %5104
  %5106 = vadd.xlane.f32.xlu0 %v4979
  %v5107 = vpop.xlane.xlu0 %5106
  %5108 = vadd.xlane.f32.xlu0 %v4981
  %v5109 = vpop.xlane.xlu0 %5108
  %5110 = vadd.xlane.f32.xlu0 %v4983
  %v5111 = vpop.xlane.xlu0 %5110
  %5112 = vadd.xlane.f32.xlu0 %v4985
  %v5113 = vpop.xlane.xlu0 %5112
  %5114 = vadd.xlane.f32.xlu0 %v4987
  %v5115 = vpop.xlane.xlu0 %5114
  %5116 = vadd.xlane.f32.xlu0 %v4989
  %v5117 = vpop.xlane.xlu0 %5116
  %5118 = vadd.xlane.f32.xlu0 %v4991
  %v5119 = vpop.xlane.xlu0 %5118
  %5120 = vadd.xlane.f32.xlu0 %v4993
  %v5121 = vpop.xlane.xlu0 %5120
  %5122 = vadd.xlane.f32.xlu0 %v4995
  %v5123 = vpop.xlane.xlu0 %5122
  %5124 = vadd.xlane.f32.xlu0 %v4997
  %v5125 = vpop.xlane.xlu0 %5124
  %5126 = vadd.xlane.f32.xlu0 %v4999
  %v5127 = vpop.xlane.xlu0 %5126
  %5128 = vadd.xlane.f32.xlu0 %v5001
  %v5129 = vpop.xlane.xlu0 %5128
  %5130 = vadd.xlane.f32.xlu0 %v5003
  %v5131 = vpop.xlane.xlu0 %5130
  %v5132 = vlog2.pop %v5005
  %v5133 = vmul.f32 %v5132, 0.6931472
  %v5134 = vlog2.pop %v5007
  %v5135 = vmul.f32 %v5134, 0.6931472
  %v5136 = vlog2.pop %v5009
  %v5137 = vmul.f32 %v5136, 0.6931472
  %v5138 = vlog2.pop %v5011
  %v5139 = vmul.f32 %v5138, 0.6931472
  %v5140 = vlog2.pop %v5013
  %v5141 = vmul.f32 %v5140, 0.6931472
  %v5142 = vlog2.pop %v5015
  %v5143 = vmul.f32 %v5142, 0.6931472
  %v5144 = vlog2.pop %v5017
  %v5145 = vmul.f32 %v5144, 0.6931472
  %v5146 = vlog2.pop %v5019
  %v5147 = vmul.f32 %v5146, 0.6931472
  %v5148 = vlog2.pop %v5021
  %v5149 = vmul.f32 %v5148, 0.6931472
  %v5150 = vlog2.pop %v5023
  %v5151 = vmul.f32 %v5150, 0.6931472
  %v5152 = vlog2.pop %v5025
  %v5153 = vmul.f32 %v5152, 0.6931472
  %v5154 = vlog2.pop %v5027
  %v5155 = vmul.f32 %v5154, 0.6931472
  %v5156 = vlog2.pop %v5029
  %v5157 = vmul.f32 %v5156, 0.6931472
  %v5158 = vlog2.pop %v5031
  %v5159 = vmul.f32 %v5158, 0.6931472
  %v5160 = vlog2.pop %v5033
  %v5161 = vmul.f32 %v5160, 0.6931472
  %v5162 = vlog2.pop %v5035
  %v5163 = vmul.f32 %v5162, 0.6931472
  %v5164 = vlog2.pop %v5037
  %v5165 = vmul.f32 %v5164, 0.6931472
  %v5166 = vlog2.pop %v5039
  %v5167 = vmul.f32 %v5166, 0.6931472
  %v5168 = vlog2.pop %v5041
  %v5169 = vmul.f32 %v5168, 0.6931472
  %v5170 = vlog2.pop %v5043
  %v5171 = vmul.f32 %v5170, 0.6931472
  %v5172 = vlog2.pop %v5045
  %v5173 = vmul.f32 %v5172, 0.6931472
  %v5174 = vlog2.pop %v5047
  %v5175 = vmul.f32 %v5174, 0.6931472
  %v5176 = vlog2.pop %v5049
  %v5177 = vmul.f32 %v5176, 0.6931472
  %v5178 = vlog2.pop %v5051
  %v5179 = vmul.f32 %v5178, 0.6931472
  %v5180 = vlog2.pop %v5053
  %v5181 = vmul.f32 %v5180, 0.6931472
  %v5182 = vlog2.pop %v5055
  %v5183 = vmul.f32 %v5182, 0.6931472
  %v5184 = vlog2.pop %v5057
  %v5185 = vmul.f32 %v5184, 0.6931472
  %v5186 = vlog2.pop %v5059
  %v5187 = vmul.f32 %v5186, 0.6931472
  %v5188 = vlog2.pop %v5061
  %v5189 = vmul.f32 %v5188, 0.6931472
  %v5190 = vlog2.pop %v5063
  %v5191 = vmul.f32 %v5190, 0.6931472
  %v5192 = vlog2.pop %v5065
  %v5193 = vmul.f32 %v5192, 0.6931472
  %v5194 = vlog2.pop %v5067
  %v5195 = vmul.f32 %v5194, 0.6931472
  %v5196 = vlog2.pop %v5069
  %v5197 = vmul.f32 %v5196, 0.6931472
  %v5198 = vlog2.pop %v5071
  %v5199 = vmul.f32 %v5198, 0.6931472
  %v5200 = vlog2.pop %v5073
  %v5201 = vmul.f32 %v5200, 0.6931472
  %v5202 = vlog2.pop %v5075
  %v5203 = vmul.f32 %v5202, 0.6931472
  %v5204 = vlog2.pop %v5077
  %v5205 = vmul.f32 %v5204, 0.6931472
  %v5206 = vlog2.pop %v5079
  %v5207 = vmul.f32 %v5206, 0.6931472
  %v5208 = vlog2.pop %v5081
  %v5209 = vmul.f32 %v5208, 0.6931472
  %v5210 = vlog2.pop %v5083
  %v5211 = vmul.f32 %v5210, 0.6931472
  %v5212 = vlog2.pop %v5085
  %v5213 = vmul.f32 %v5212, 0.6931472
  %v5214 = vlog2.pop %v5087
  %v5215 = vmul.f32 %v5214, 0.6931472
  %v5216 = vlog2.pop %v5089
  %v5217 = vmul.f32 %v5216, 0.6931472
  %v5218 = vlog2.pop %v5091
  %v5219 = vmul.f32 %v5218, 0.6931472
  %v5220 = vlog2.pop %v5093
  %v5221 = vmul.f32 %v5220, 0.6931472
  %v5222 = vlog2.pop %v5095
  %v5223 = vmul.f32 %v5222, 0.6931472
  %v5224 = vlog2.pop %v5097
  %v5225 = vmul.f32 %v5224, 0.6931472
  %v5226 = vlog2.pop %v5099
  %v5227 = vmul.f32 %v5226, 0.6931472
  %v5228 = vlog2.pop %v5101
  %v5229 = vmul.f32 %v5228, 0.6931472
  %v5230 = vlog2.pop %v5103
  %v5231 = vmul.f32 %v5230, 0.6931472
  %v5232 = vlog2.pop %v5105
  %v5233 = vmul.f32 %v5232, 0.6931472
  %v5234 = vlog2.pop %v5107
  %v5235 = vmul.f32 %v5234, 0.6931472
  %v5236 = vlog2.pop %v5109
  %v5237 = vmul.f32 %v5236, 0.6931472
  %v5238 = vlog2.pop %v5111
  %v5239 = vmul.f32 %v5238, 0.6931472
  %v5240 = vlog2.pop %v5113
  %v5241 = vmul.f32 %v5240, 0.6931472
  %v5242 = vlog2.pop %v5115
  %v5243 = vmul.f32 %v5242, 0.6931472
  %v5244 = vlog2.pop %v5117
  %v5245 = vmul.f32 %v5244, 0.6931472
  %v5246 = vlog2.pop %v5119
  %v5247 = vmul.f32 %v5246, 0.6931472
  %v5248 = vlog2.pop %v5121
  %v5249 = vmul.f32 %v5248, 0.6931472
  %v5250 = vlog2.pop %v5123
  %v5251 = vmul.f32 %v5250, 0.6931472
  %v5252 = vlog2.pop %v5125
  %v5253 = vmul.f32 %v5252, 0.6931472
  %v5254 = vlog2.pop %v5127
  %v5255 = vmul.f32 %v5254, 0.6931472
  %v5256 = vlog2.pop %v5129
  %v5257 = vmul.f32 %v5256, 0.6931472
  %v5258 = vlog2.pop %v5131
  %v5259 = vmul.f32 %v5258, 0.6931472
  %v5260 = vsub.f32 %v4812, %v5133
  %v5261 = vsub.f32 %v4813, %v5135
  %v5262 = vsub.f32 %v4814, %v5137
  %v5263 = vsub.f32 %v4815, %v5139
  %v5264 = vsub.f32 %v4816, %v5141
  %v5265 = vsub.f32 %v4817, %v5143
  %v5266 = vsub.f32 %v4818, %v5145
  %v5267 = vsub.f32 %v4819, %v5147
  %v5268 = vsub.f32 %v4820, %v5149
  %v5269 = vsub.f32 %v4821, %v5151
  %v5270 = vsub.f32 %v4822, %v5153
  %v5271 = vsub.f32 %v4823, %v5155
  %v5272 = vsub.f32 %v4824, %v5157
  %v5273 = vsub.f32 %v4825, %v5159
  %v5274 = vsub.f32 %v4826, %v5161
  %v5275 = vsub.f32 %v4827, %v5163
  %v5276 = vsub.f32 %v4828, %v5165
  %v5277 = vsub.f32 %v4829, %v5167
  %v5278 = vsub.f32 %v4830, %v5169
  %v5279 = vsub.f32 %v4831, %v5171
  %v5280 = vsub.f32 %v4832, %v5173
  %v5281 = vsub.f32 %v4833, %v5175
  %v5282 = vsub.f32 %v4834, %v5177
  %v5283 = vsub.f32 %v4835, %v5179
  %v5284 = vsub.f32 %v4836, %v5181
  %v5285 = vsub.f32 %v4837, %v5183
  %v5286 = vsub.f32 %v4838, %v5185
  %v5287 = vsub.f32 %v4839, %v5187
  %v5288 = vsub.f32 %v4840, %v5189
  %v5289 = vsub.f32 %v4841, %v5191
  %v5290 = vsub.f32 %v4842, %v5193
  %v5291 = vsub.f32 %v4843, %v5195
  %v5292 = vsub.f32 %v4844, %v5197
  %v5293 = vsub.f32 %v4845, %v5199
  %v5294 = vsub.f32 %v4846, %v5201
  %v5295 = vsub.f32 %v4847, %v5203
  %v5296 = vsub.f32 %v4848, %v5205
  %v5297 = vsub.f32 %v4849, %v5207
  %v5298 = vsub.f32 %v4850, %v5209
  %v5299 = vsub.f32 %v4851, %v5211
  %v5300 = vsub.f32 %v4852, %v5213
  %v5301 = vsub.f32 %v4853, %v5215
  %v5302 = vsub.f32 %v4854, %v5217
  %v5303 = vsub.f32 %v4855, %v5219
  %v5304 = vsub.f32 %v4856, %v5221
  %v5305 = vsub.f32 %v4857, %v5223
  %v5306 = vsub.f32 %v4858, %v5225
  %v5307 = vsub.f32 %v4859, %v5227
  %v5308 = vsub.f32 %v4860, %v5229
  %v5309 = vsub.f32 %v4861, %v5231
  %v5310 = vsub.f32 %v4862, %v5233
  %v5311 = vsub.f32 %v4863, %v5235
  %v5312 = vsub.f32 %v4864, %v5237
  %v5313 = vsub.f32 %v4865, %v5239
  %v5314 = vsub.f32 %v4866, %v5241
  %v5315 = vsub.f32 %v4867, %v5243
  %v5316 = vsub.f32 %v4868, %v5245
  %v5317 = vsub.f32 %v4869, %v5247
  %v5318 = vsub.f32 %v4870, %v5249
  %v5319 = vsub.f32 %v4871, %v5251
  %v5320 = vsub.f32 %v4872, %v5253
  %v5321 = vsub.f32 %v4873, %v5255
  %v5322 = vsub.f32 %v4874, %v5257
  %v5323 = vsub.f32 %v4875, %v5259
  %5324 = vst [vmem:[%s9] sm:$0xff] %v5260
  %5325 = vst [vmem:[%s9 + $0x8] sm:$0xff] %v5261
  %5326 = vst [vmem:[%s9 + $0x10] sm:$0xff] %v5262
  %5327 = vst [vmem:[%s9 + $0x18] sm:$0xff] %v5263
  %5328 = vst [vmem:[%s9 + $0x20] sm:$0xff] %v5264
  %5329 = vst [vmem:[%s9 + $0x28] sm:$0xff] %v5265
  %5330 = vst [vmem:[%s9 + $0x30] sm:$0xff] %v5266
  %5331 = vst [vmem:[%s9 + $0x38] sm:$0xff] %v5267
  %5332 = vst [vmem:[%s9 + $0x40] sm:$0xff] %v5268
  %5333 = vst [vmem:[%s9 + $0x48] sm:$0xff] %v5269
  %5334 = vst [vmem:[%s9 + $0x50] sm:$0xff] %v5270
  %5335 = vst [vmem:[%s9 + $0x58] sm:$0xff] %v5271
  %5336 = vst [vmem:[%s9 + $0x60] sm:$0xff] %v5272
  %5337 = vst [vmem:[%s9 + $0x68] sm:$0xff] %v5273
  %5338 = vst [vmem:[%s9 + $0x70] sm:$0xff] %v5274
  %5339 = vst [vmem:[%s9 + $0x78] sm:$0xff] %v5275
  %5340 = vst [vmem:[%s9 + $0x80] sm:$0xff] %v5276
  %5341 = vst [vmem:[%s9 + $0x88] sm:$0xff] %v5277
  %5342 = vst [vmem:[%s9 + $0x90] sm:$0xff] %v5278
  %5343 = vst [vmem:[%s9 + $0x98] sm:$0xff] %v5279
  %5344 = vst [vmem:[%s9 + $0xa0] sm:$0xff] %v5280
  %5345 = vst [vmem:[%s9 + $0xa8] sm:$0xff] %v5281
  %5346 = vst [vmem:[%s9 + $0xb0] sm:$0xff] %v5282
  %5347 = vst [vmem:[%s9 + $0xb8] sm:$0xff] %v5283
  %5348 = vst [vmem:[%s9 + $0xc0] sm:$0xff] %v5284
  %5349 = vst [vmem:[%s9 + $0xc8] sm:$0xff] %v5285
  %5350 = vst [vmem:[%s9 + $0xd0] sm:$0xff] %v5286
  %5351 = vst [vmem:[%s9 + $0xd8] sm:$0xff] %v5287
  %5352 = vst [vmem:[%s9 + $0xe0] sm:$0xff] %v5288
  %5353 = vst [vmem:[%s9 + $0xe8] sm:$0xff] %v5289
  %5354 = vst [vmem:[%s9 + $0xf0] sm:$0xff] %v5290
  %5355 = vst [vmem:[%s9 + $0xf8] sm:$0xff] %v5291
  %5356 = vst [vmem:[%s9 + $0x100] sm:$0xff] %v5292
  %5357 = vst [vmem:[%s9 + $0x108] sm:$0xff] %v5293
  %5358 = vst [vmem:[%s9 + $0x110] sm:$0xff] %v5294
  %5359 = vst [vmem:[%s9 + $0x118] sm:$0xff] %v5295
  %5360 = vst [vmem:[%s9 + $0x120] sm:$0xff] %v5296
  %5361 = vst [vmem:[%s9 + $0x128] sm:$0xff] %v5297
  %5362 = vst [vmem:[%s9 + $0x130] sm:$0xff] %v5298
  %5363 = vst [vmem:[%s9 + $0x138] sm:$0xff] %v5299
  %5364 = vst [vmem:[%s9 + $0x140] sm:$0xff] %v5300
  %5365 = vst [vmem:[%s9 + $0x148] sm:$0xff] %v5301
  %5366 = vst [vmem:[%s9 + $0x150] sm:$0xff] %v5302
  %5367 = vst [vmem:[%s9 + $0x158] sm:$0xff] %v5303
  %5368 = vst [vmem:[%s9 + $0x160] sm:$0xff] %v5304
  %5369 = vst [vmem:[%s9 + $0x168] sm:$0xff] %v5305
  %5370 = vst [vmem:[%s9 + $0x170] sm:$0xff] %v5306
  %5371 = vst [vmem:[%s9 + $0x178] sm:$0xff] %v5307
  %5372 = vst [vmem:[%s9 + $0x180] sm:$0xff] %v5308
  %5373 = vst [vmem:[%s9 + $0x188] sm:$0xff] %v5309
  %5374 = vst [vmem:[%s9 + $0x190] sm:$0xff] %v5310
  %5375 = vst [vmem:[%s9 + $0x198] sm:$0xff] %v5311
  %5376 = vst [vmem:[%s9 + $0x1a0] sm:$0xff] %v5312
  %5377 = vst [vmem:[%s9 + $0x1a8] sm:$0xff] %v5313
  %5378 = vst [vmem:[%s9 + $0x1b0] sm:$0xff] %v5314
  %5379 = vst [vmem:[%s9 + $0x1b8] sm:$0xff] %v5315
  %5380 = vst [vmem:[%s9 + $0x1c0] sm:$0xff] %v5316
  %5381 = vst [vmem:[%s9 + $0x1c8] sm:$0xff] %v5317
  %5382 = vst [vmem:[%s9 + $0x1d0] sm:$0xff] %v5318
  %5383 = vst [vmem:[%s9 + $0x1d8] sm:$0xff] %v5319
  %5384 = vst [vmem:[%s9 + $0x1e0] sm:$0xff] %v5320
  %5385 = vst [vmem:[%s9 + $0x1e8] sm:$0xff] %v5321
  %5386 = vst [vmem:[%s9 + $0x1f0] sm:$0xff] %v5322
  %5387 = vst [vmem:[%s9 + $0x1f8] sm:$0xff] %v5323
  // Predicated region
  $region38: #{ego_gnn_forward.1} parent=0 // pred_check
    _
  $region39: #{ego_gnn_forward.1} parent=0 // pred_check_branch
    %5389 = sbr.rel (0) target = $region41
  $region40: #{ego_gnn_forward.1} parent=0 // pred_region
    _
  $region41: #{ego_gnn_forward.1} parent=0 // pred_fallthru
    _
  // Predicated region
  $region42: #{ego_gnn_forward.1} parent=0 // pred_check
    _
  $region43: #{ego_gnn_forward.1} parent=0 // pred_check_branch
    %5391 = sbr.rel (0) target = $region45
  $region44: #{ego_gnn_forward.1} parent=0 // pred_region
    _
  $region45: #{ego_gnn_forward.1} parent=0 // pred_fallthru
    _

</llo_original>
